<compile_context>
chip_gen: v7x
topology: tpu7x:2x2x1
jax: 0.10.0
libtpu: 0.0.40
codegen_flags: <defaults>
</compile_context>

<pallas_src>
import math

import jax
import jax.numpy as jnp
from jax import lax
from jax.experimental import pallas as pl
from jax.experimental.pallas import tpu as pltpu

BN_EPS = 1e-5
LANE = 128


# --------------------------------------------------------------------------- helpers
def _round_up(v, m):
    return (v + m - 1) // m * m


def _pad_last(a, target):
    pad = target - a.shape[-1]
    if pad == 0:
        return a
    cfg = [(0, 0)] * (a.ndim - 1) + [(0, pad)]
    return jnp.pad(a, cfg)


def _prep_weight(w_oihw, cp):
    """OIHW -> HWIO, zero-pad Cin/Cout to cp, fold (kx, cin) into one contraction dim, bf16."""
    w = jnp.transpose(w_oihw, (2, 3, 1, 0)).astype(jnp.float32)      # (3, 3, Cin, Cout)
    kh, kw, cin, cout = w.shape
    w = jnp.pad(w, ((0, 0), (0, 0), (0, cp - cin), (0, cp - cout)))  # (3, 3, cp, cp)
    return w.reshape(kh, kw * cp, cp).astype(jnp.bfloat16)           # (3, 3*cp, cp)


def _col_masks(w):
    """Boundary-validity masks for the W (sublane) shift, computed once per kernel."""
    col = lax.broadcasted_iota(jnp.int32, (1, w, 1), 1)
    return col >= 1, col <= w - 2           # valid for dx=-1, dx=+1


def _pick_tile_h(h):
    """Largest divisor of H that is <= max(8, min(32, H//2)); falls back to H."""
    cap = max(8, min(32, h // 2))
    for th in range(min(cap, h), 0, -1):
        if h % th == 0:
            return th
    return h


def _vmem_limit_bytes():
    """~3/4 of physical VMEM, capped at 96 MiB (96 MiB on v5e/v6e, 48 MiB on v7x)."""
    try:
        cap = int(pltpu.get_tpu_info().vmem_capacity_bytes)
    except Exception:
        cap = 128 * 1024 * 1024
    return min(cap * 3 // 4, 96 * 1024 * 1024)


# --------------------------------------------------------------------------- in-kernel conv
def _fill_folded_scratch(rows_f32, fpad_ref, m_lo, m_hi):
    """rows_f32: (TH+2, W, Cp) f32 halo-padded activation window (boundary rows = 0).

    Builds the kx taps ONCE per tile (XLU roll + boundary mask on f32, then a single cast
    to bf16) and stores them as a (TH+2, W, 3*Cp) bf16 folded scratch, so each ky step is
    just an aligned bf16 load + one MXU matmul.
    """
    w = rows_f32.shape[1]
    left = jnp.where(m_lo, pltpu.roll(rows_f32, 1, 1), 0.0)        # kx=0: tap[:, x] = rows[:, x-1]
    right = jnp.where(m_hi, pltpu.roll(rows_f32, w - 1, 1), 0.0)   # kx=2: tap[:, x] = rows[:, x+1]
    fpad_ref[...] = jnp.concatenate([left, rows_f32, right], axis=-1).astype(jnp.bfloat16)


def _conv3x3_from_folded(fpad_ref, w_ref):
    """3x3 'SAME' conv from the pre-folded bf16 scratch.

    Per ky: one dynamic-sliced bf16 load (TH, W, 3*Cp) + one MXU matmul with K = 3*Cp,
    f32 accumulation.  fori_loop(unroll=True) keeps per-ky temporaries' live ranges tight.
    """
    thp2, w, k3 = fpad_ref.shape
    th = thp2 - 2
    cout = w_ref.shape[-1]

    def body(ky, acc):
        folded = fpad_ref[pl.ds(ky, th)].reshape(th * w, k3)
        return acc + jnp.dot(folded, w_ref[ky], preferred_element_type=jnp.float32)

    return lax.fori_loop(0, 3, body, jnp.zeros((th * w, cout), jnp.float32), unroll=True)


def _write_stats(stats_ref, vals_f32):
    """Per-tile, per-channel sum and sum-of-squares (one-pass BN stats)."""
    stats_ref[...] = jnp.concatenate(
        [jnp.sum(vals_f32, axis=0, keepdims=True),
         jnp.sum(vals_f32 * vals_f32, axis=0, keepdims=True)], axis=0)


# --------------------------------------------------------------------------- kernels
def _conv1_stats_kernel(x_ref, w_ref, h_ref, stats_ref, fpad_ref):
    # x_ref: (H, W, Cp) f32 full image (VMEM-resident across the t axis)
    # h_ref: (TH, W, Cp) bf16 output tile; stats_ref: (2, Cp) f32; fpad_ref: bf16 scratch
    H, W, Cp = x_ref.shape
    TH = h_ref.shape[0]
    start = pl.program_id(1) * TH

    top = jnp.where(start > 0, x_ref[pl.ds(jnp.maximum(start - 1, 0), 1)], 0.0)
    bot = jnp.where(start + TH < H, x_ref[pl.ds(jnp.minimum(start + TH, H - 1), 1)], 0.0)
    rows = jnp.concatenate([top, x_ref[pl.ds(start, TH)], bot], axis=0)   # (TH+2, W, Cp) f32

    m_lo, m_hi = _col_masks(W)
    _fill_folded_scratch(rows, fpad_ref, m_lo, m_hi)
    acc = _conv3x3_from_folded(fpad_ref, w_ref)                           # (TH*W, Cp) f32

    acc_bf = acc.astype(jnp.bfloat16)
    h_ref[...] = acc_bf.reshape(TH, W, Cp)
    _write_stats(stats_ref, acc_bf.astype(jnp.float32))   # stats consistent with stored bf16


def _bn_relu_conv2_stats_kernel(h1_ref, scale_ref, shift_ref, w_ref,
                                h2_ref, stats_ref, fpad_ref):
    # h1_ref: (H, W, Cp) bf16 full image (resident across t); scale/shift: (1, Cp) f32
    H, W, Cp = h1_ref.shape
    TH = h2_ref.shape[0]
    start = pl.program_id(1) * TH
    scale = scale_ref[...].reshape(1, 1, Cp)
    shift = shift_ref[...].reshape(1, 1, Cp)

    def act(rows_bf16):
        # BN1 affine + ReLU in f32 (bf16 only at the HBM boundary; v5e has no bf16 VALU).
        return jnp.maximum(rows_bf16.astype(jnp.float32) * scale + shift, 0.0)

    # Conv2's SAME padding applies to its input `a`, so true image-boundary rows are 0.
    top = jnp.where(start > 0, act(h1_ref[pl.ds(jnp.maximum(start - 1, 0), 1)]), 0.0)
    bot = jnp.where(start + TH < H, act(h1_ref[pl.ds(jnp.minimum(start + TH, H - 1), 1)]), 0.0)
    rows = jnp.concatenate([top, act(h1_ref[pl.ds(start, TH)]), bot], axis=0)

    m_lo, m_hi = _col_masks(W)
    _fill_folded_scratch(rows, fpad_ref, m_lo, m_hi)
    acc = _conv3x3_from_folded(fpad_ref, w_ref)

    acc_bf = acc.astype(jnp.bfloat16)
    h2_ref[...] = acc_bf.reshape(TH, W, Cp)
    _write_stats(stats_ref, acc_bf.astype(jnp.float32))


def _bn_add_relu_kernel(h2_ref, x_ref, scale_ref, shift_ref, o_ref):
    # h2_ref: (TH, W, Cp) bf16; x_ref/o_ref: (TH, W, Cp) f32 (o aliases x's HBM buffer)
    Cp = x_ref.shape[-1]
    scale = scale_ref[...].reshape(1, 1, Cp)
    shift = shift_ref[...].reshape(1, 1, Cp)
    h2 = h2_ref[...].astype(jnp.float32)
    o_ref[...] = jnp.maximum(h2 * scale + shift + x_ref[...], 0.0)


# --------------------------------------------------------------------------- wrapper
def _bn_scale_shift(stats, count, gamma_p, beta_p, eps=BN_EPS):
    """Fold per-tile partial stats into the BN affine: y = x*scale + shift."""
    s = jnp.sum(stats[:, :, 0, :], axis=(0, 1))
    ss = jnp.sum(stats[:, :, 1, :], axis=(0, 1))
    mean = s / count
    var = jnp.maximum(ss / count - mean * mean, 0.0)     # biased (training-mode) variance
    scale = gamma_p * lax.rsqrt(var + eps)
    shift = beta_p - mean * scale
    return scale.reshape(1, -1).astype(jnp.float32), shift.reshape(1, -1).astype(jnp.float32)


def resblock_forward(x_nchw, params):
    """NCHW in/out (PyTorch convention); the Pallas kernels run in NHWC, C padded to 128."""
    w1, g1, b1, w2, g2, b2 = params
    N, C, H, W = x_nchw.shape
    if W % 8 != 0:
        # TODO(synk): W not a multiple of 8 would force VMEM relayouts on the reshapes.
        raise NotImplementedError("resblock_forward requires W % 8 == 0")
    Cp = _round_up(max(C, LANE), LANE)
    TH = _pick_tile_h(H)
    nH = H // TH

    x_p = _pad_last(jnp.transpose(x_nchw, (0, 2, 3, 1)).astype(jnp.float32), Cp)
    w1_p = _prep_weight(w1, Cp)
    w2_p = _prep_weight(w2, Cp)
    g1_p = _pad_last(g1.astype(jnp.float32), Cp)
    b1_p = _pad_last(b1.astype(jnp.float32), Cp)
    g2_p = _pad_last(g2.astype(jnp.float32), Cp)
    b2_p = _pad_last(b2.astype(jnp.float32), Cp)

    grid = (N, nH)
    # Conv-input image: constant index along t -> fetched once per image, resident in VMEM.
    img_spec = pl.BlockSpec((None, H, W, Cp), lambda n, t: (n, 0, 0, 0))
    # Per-step TH-row tile (outputs of all passes; inputs of the pure-streaming pass C).
    tile_spec = pl.BlockSpec((None, TH, W, Cp), lambda n, t: (n, t, 0, 0))
    w_spec = pl.BlockSpec((3, 3 * Cp, Cp), lambda n, t: (0, 0, 0))
    stats_spec = pl.BlockSpec((None, None, 2, Cp), lambda n, t: (n, t, 0, 0))
    vec_spec = pl.BlockSpec((1, Cp), lambda n, t: (0, 0))

    cparams = pltpu.CompilerParams(
        dimension_semantics=("parallel", "parallel"),
        vmem_limit_bytes=_vmem_limit_bytes(),
    )
    fold_scratch = pltpu.VMEM((TH + 2, W, 3 * Cp), jnp.bfloat16)

    conv_flops = 2 * N * H * W * (9 * Cp) * Cp
    img_f32 = N * H * W * Cp * 4
    img_bf16 = N * H * W * Cp * 2
    w_bytes = 3 * 3 * Cp * Cp * 2
    stats_bytes = N * nH * 2 * Cp * 4
    count = float(N * H * W)

    # ---- pass A: conv1 + per-tile BN1 partial stats ----------------------------------
    h1, st1 = pl.pallas_call(
        _conv1_stats_kernel,
        grid=grid,
        in_specs=[img_spec, w_spec],
        out_specs=[tile_spec, stats_spec],
        out_shape=(jax.ShapeDtypeStruct((N, H, W, Cp), jnp.bfloat16),
                   jax.ShapeDtypeStruct((N, nH, 2, Cp), jnp.float32)),
        scratch_shapes=[fold_scratch],
        compiler_params=cparams,
        cost_estimate=pl.CostEstimate(
            flops=conv_flops, transcendentals=0,
            bytes_accessed=img_f32 + img_bf16 + w_bytes + stats_bytes),
    )(x_p, w1_p)

    scale1, shift1 = _bn_scale_shift(st1, count, g1_p, b1_p)

    # ---- pass B: bn1(affine) + ReLU + conv2 + per-tile BN2 partial stats -------------
    h2, st2 = pl.pallas_call(
        _bn_relu_conv2_stats_kernel,
        grid=grid,
        in_specs=[img_spec, vec_spec, vec_spec, w_spec],
        out_specs=[tile_spec, stats_spec],
        out_shape=(jax.ShapeDtypeStruct((N, H, W, Cp), jnp.bfloat16),
                   jax.ShapeDtypeStruct((N, nH, 2, Cp), jnp.float32)),
        scratch_shapes=[fold_scratch],
        compiler_params=cparams,
        cost_estimate=pl.CostEstimate(
            flops=conv_flops, transcendentals=0,
            bytes_accessed=2 * img_bf16 + w_bytes + stats_bytes),
    )(h1, scale1, shift1, w2_p)

    scale2, shift2 = _bn_scale_shift(st2, count, g2_p, b2_p)

    # ---- pass C: bn2(affine) + identity add + ReLU (pure HBM stream) -----------------
    # Output aliases x_p's HBM buffer (dead after this pass).
    y_p = pl.pallas_call(
        _bn_add_relu_kernel,
        grid=grid,
        in_specs=[tile_spec, tile_spec, vec_spec, vec_spec],
        out_specs=tile_spec,
        out_shape=jax.ShapeDtypeStruct((N, H, W, Cp), jnp.float32),
        input_output_aliases={1: 0},
        compiler_params=cparams,
        cost_estimate=pl.CostEstimate(
            flops=4 * N * H * W * Cp, transcendentals=0,
            bytes_accessed=img_bf16 + 2 * img_f32),
    )(h2, x_p, scale2, shift2)

    return jnp.transpose(y_p[..., :C], (0, 3, 1, 2))


# --------------------------------------------------------------------------- reference
def resblock_ref(x_nchw, params, *, mxu_dtype=jnp.float32, storage_dtype=None):
    """Pure-JAX reference matching PyTorch ResBlock.forward (training-mode BN).

    mxu_dtype=bf16 mirrors the kernel's bf16 MXU inputs (f32 accumulation);
    storage_dtype=bf16 mirrors the kernel's bf16 HBM intermediates (h1/h2).
    """
    w1, g1, b1, w2, g2, b2 = params
    x = jnp.transpose(x_nchw, (0, 2, 3, 1)).astype(jnp.float32)
    prec = lax.Precision.HIGHEST if mxu_dtype == jnp.float32 else lax.Precision.DEFAULT

    def conv(t, w):
        return lax.conv_general_dilated(
            t.astype(mxu_dtype),
            jnp.transpose(w, (2, 3, 1, 0)).astype(mxu_dtype),
            window_strides=(1, 1), padding="SAME",
            dimension_numbers=("NHWC", "HWIO", "NHWC"),
            preferred_element_type=jnp.float32,
            precision=prec)

    def store(t):
        return t if storage_dtype is None else t.astype(storage_dtype).astype(jnp.float32)

    def bn(t, g, b):
        m = jnp.mean(t, axis=(0, 1, 2), keepdims=True)
        v = jnp.mean((t - m) ** 2, axis=(0, 1, 2), keepdims=True)
        return (t - m) / jnp.sqrt(v + BN_EPS) * g + b

    h = jax.nn.relu(bn(store(conv(x, w1)), g1, b1))
    h = bn(store(conv(h, w2)), g2, b2)
    out = jax.nn.relu(h + x)
    return jnp.transpose(out, (0, 3, 1, 2))


# --------------------------------------------------------------------------- main
if __name__ == "__main__":
    # Small shapes: inplanes = planes = 4, batch = 2, spatial = 16x16 (stride=1).
    N, C, H, W = 2, 4, 16, 16
    key = jax.random.PRNGKey(0)
    kx_, kw1, kw2, kg1, kb1, kg2, kb2 = jax.random.split(key, 7)

    x = jax.random.normal(kx_, (N, C, H, W), jnp.float32)

    std = math.sqrt(2.0 / (C * 3 * 3))
    w1 = jax.random.normal(kw1, (C, C, 3, 3), jnp.float32) * std     # conv1 weight (OIHW, no bias)
    w2 = jax.random.normal(kw2, (C, C, 3, 3), jnp.float32) * std     # conv2 weight (OIHW, no bias)
    g1 = 1.0 + 0.1 * jax.random.normal(kg1, (C,), jnp.float32)       # bn1 gamma
    b1 = 0.1 * jax.random.normal(kb1, (C,), jnp.float32)             # bn1 beta
    g2 = 1.0 + 0.1 * jax.random.normal(kg2, (C,), jnp.float32)       # bn2 gamma
    b2 = 0.1 * jax.random.normal(kb2, (C,), jnp.float32)             # bn2 beta
    params = (w1, g1, b1, w2, g2, b2)

    y = jax.block_until_ready(jax.jit(resblock_forward)(x, params))

    # Tight check vs a reference mirroring the kernel's numerics (bf16 MXU inputs,
    # f32 accumulation, bf16 HBM intermediates).
    y_ref_match = jax.block_until_ready(
        resblock_ref(x, params, mxu_dtype=jnp.bfloat16, storage_dtype=jnp.bfloat16))
    if not jnp.allclose(y, y_ref_match, atol=1e-2, rtol=1e-2):
        max_err = float(jnp.max(jnp.abs(y - y_ref_match)))
        raise AssertionError(f"mismatch vs bf16-numerics reference, max abs err = {max_err}")

    # Loose sanity check vs the full-f32 PyTorch-equivalent reference (tolerance widened
    # for the bf16 MXU inputs and bf16 intermediates adopted per the performance review).
    y_ref_f32 = jax.block_until_ready(resblock_ref(x, params, mxu_dtype=jnp.float32))
    if not jnp.allclose(y, y_ref_f32, atol=5e-2, rtol=5e-2):
        max_err = float(jnp.max(jnp.abs(y - y_ref_f32)))
        raise AssertionError(f"mismatch vs f32 reference, max abs err = {max_err}")

    print("KERNEL_OK")
</pallas_src>

<mosaic_0001>
module attributes {stable_mosaic.version = 11 : i64} {
  func.func @_conv1_stats_kernel(%arg0: i32, %arg1: i32, %arg2: memref<1x16x16x128xf32, #tpu.memory_space<vmem>>, %arg3: memref<3x384x128xbf16, #tpu.memory_space<vmem>>, %arg4: memref<1x8x16x128xbf16, #tpu.memory_space<vmem>>, %arg5: memref<1x1x2x128xf32, #tpu.memory_space<vmem>>, %arg6: memref<10x16x384xbf16, #tpu.memory_space<vmem>>) attributes {dimension_semantics = [#tpu.dimension_semantics<parallel>, #tpu.dimension_semantics<parallel>], iteration_bounds = array<i64: 2, 2>, scalar_prefetch = 0 : i64, scratch_operands = 1 : i64, tpu.core_type = #tpu.core_type<tc>, window_params = [{transform_indices = @transform_0, window_bounds = array<i64: 1, 16, 16, 128>}, {pipeline_mode = #tpu.pipeline_mode<synchronous>, transform_indices = @transform_1, window_bounds = array<i64: 3, 384, 128>}, {transform_indices = @transform_2, window_bounds = array<i64: 1, 8, 16, 128>}, {transform_indices = @transform_3, window_bounds = array<i64: 1, 1, 2, 128>}]} {
    %c8_i32 = arith.constant 8 : i32
    %0 = arith.muli %arg1, %c8_i32 : i32
    %c0_i32 = arith.constant 0 : i32
    %1 = arith.cmpi sgt, %0, %c0_i32 : i32
    %c1_i32 = arith.constant 1 : i32
    %2 = arith.subi %0, %c1_i32 : i32
    %c0_i32_0 = arith.constant 0 : i32
    %3 = arith.maxsi %2, %c0_i32_0 : i32
    %c0 = arith.constant 0 : index
    %4 = arith.index_cast %3 : i32 to index
    %c0_1 = arith.constant 0 : index
    %c0_2 = arith.constant 0 : index
    %5 = vector.load %arg2[%c0, %4, %c0_1, %c0_2] : memref<1x16x16x128xf32, #tpu.memory_space<vmem>>, vector<1x1x16x128xf32>
    %6 = vector.shape_cast %5 : vector<1x1x16x128xf32> to vector<1x16x128xf32>
    %cst = arith.constant 0.000000e+00 : f32
    %7 = vector.broadcast %cst : f32 to vector<1x16x128xf32>
    %8 = arith.select %1, %6, %7 : vector<1x16x128xf32>
    %c8_i32_3 = arith.constant 8 : i32
    %9 = arith.addi %0, %c8_i32_3 : i32
    %c16_i32 = arith.constant 16 : i32
    %10 = arith.cmpi slt, %9, %c16_i32 : i32
    %c8_i32_4 = arith.constant 8 : i32
    %11 = arith.addi %0, %c8_i32_4 : i32
    %c15_i32 = arith.constant 15 : i32
    %12 = arith.minsi %11, %c15_i32 : i32
    %c0_5 = arith.constant 0 : index
    %13 = arith.index_cast %12 : i32 to index
    %c0_6 = arith.constant 0 : index
    %c0_7 = arith.constant 0 : index
    %14 = vector.load %arg2[%c0_5, %13, %c0_6, %c0_7] : memref<1x16x16x128xf32, #tpu.memory_space<vmem>>, vector<1x1x16x128xf32>
    %15 = vector.shape_cast %14 : vector<1x1x16x128xf32> to vector<1x16x128xf32>
    %cst_8 = arith.constant 0.000000e+00 : f32
    %16 = vector.broadcast %cst_8 : f32 to vector<1x16x128xf32>
    %17 = arith.select %10, %15, %16 : vector<1x16x128xf32>
    %c0_9 = arith.constant 0 : index
    %18 = arith.index_cast %0 : i32 to index
    %c0_10 = arith.constant 0 : index
    %c0_11 = arith.constant 0 : index
    %19 = vector.load %arg2[%c0_9, %18, %c0_10, %c0_11] : memref<1x16x16x128xf32, #tpu.memory_space<vmem>>, vector<1x8x16x128xf32>
    %20 = vector.shape_cast %19 : vector<1x8x16x128xf32> to vector<8x16x128xf32>
    %21 = tpu.concatenate %8, %20, %17 in 0 : vector<1x16x128xf32>, vector<8x16x128xf32>, vector<1x16x128xf32> -> vector<10x16x128xf32>
    %22 = tpu.iota {dimensions = array<i32: 1>} : vector<1x16x1xi32>
    %c1_i32_12 = arith.constant 1 : i32
    %23 = vector.broadcast %c1_i32_12 : i32 to vector<1x16x1xi32>
    %24 = arith.cmpi sge, %22, %23 : vector<1x16x1xi32>
    %c14_i32 = arith.constant 14 : i32
    %25 = vector.broadcast %c14_i32 : i32 to vector<1x16x1xi32>
    %26 = arith.cmpi sle, %22, %25 : vector<1x16x1xi32>
    %c1_i32_13 = arith.constant 1 : i32
    %27 = tpu.dynamic_rotate %21 by %c1_i32_13 dim 1 : vector<10x16x128xf32>, i32 -> vector<10x16x128xf32>
    %cst_14 = arith.constant 0.000000e+00 : f32
    %28 = vector.shape_cast %24 : vector<1x16x1xi1> to vector<1x16x1xi1>
    %29 = vector.broadcast %28 : vector<1x16x1xi1> to vector<10x16x128xi1>
    %30 = vector.broadcast %cst_14 : f32 to vector<10x16x128xf32>
    %31 = arith.select %29, %27, %30 : vector<10x16x128xi1>, vector<10x16x128xf32>
    %c15_i32_15 = arith.constant 15 : i32
    %32 = tpu.dynamic_rotate %21 by %c15_i32_15 dim 1 : vector<10x16x128xf32>, i32 -> vector<10x16x128xf32>
    %cst_16 = arith.constant 0.000000e+00 : f32
    %33 = vector.shape_cast %26 : vector<1x16x1xi1> to vector<1x16x1xi1>
    %34 = vector.broadcast %33 : vector<1x16x1xi1> to vector<10x16x128xi1>
    %35 = vector.broadcast %cst_16 : f32 to vector<10x16x128xf32>
    %36 = arith.select %34, %32, %35 : vector<10x16x128xi1>, vector<10x16x128xf32>
    %37 = tpu.concatenate %31, %21, %36 in 2 : vector<10x16x128xf32>, vector<10x16x128xf32>, vector<10x16x128xf32> -> vector<10x16x384xf32>
    %38 = arith.truncf %37 : vector<10x16x384xf32> to vector<10x16x384xbf16>
    %c0_17 = arith.constant 0 : index
    %c0_18 = arith.constant 0 : index
    %c0_19 = arith.constant 0 : index
    %39 = vector.load %arg6[%c0_17, %c0_18, %c0_19] : memref<10x16x384xbf16, #tpu.memory_space<vmem>>, vector<10x16x384xbf16>
    tpu.vector_store %arg6[%c0_17, %c0_18, %c0_19], %38 {strides = array<i32>} : memref<10x16x384xbf16, #tpu.memory_space<vmem>>, vector<10x16x384xbf16>,
    %cst_20 = arith.constant 0.000000e+00 : f32
    %40 = vector.broadcast %cst_20 : f32 to vector<128x128xf32>
    %c0_i32_21 = arith.constant 0 : i32
    %41 = arith.index_cast %c0_i32_21 : i32 to index
    %c0_22 = arith.constant 0 : index
    %c0_23 = arith.constant 0 : index
    %42 = vector.load %arg6[%41, %c0_22, %c0_23] : memref<10x16x384xbf16, #tpu.memory_space<vmem>>, vector<8x16x384xbf16>
    %43 = vector.shape_cast %42 : vector<8x16x384xbf16> to vector<128x384xbf16>
    %44 = arith.index_cast %c0_i32_21 : i32 to index
    %c0_24 = arith.constant 0 : index
    %c0_25 = arith.constant 0 : index
    %45 = vector.load %arg3[%44, %c0_24, %c0_25] : memref<3x384x128xbf16, #tpu.memory_space<vmem>>, vector<1x384x128xbf16>
    %46 = vector.shape_cast %45 : vector<1x384x128xbf16> to vector<384x128xbf16>
    %cst_26 = arith.constant dense<0.000000e+00> : vector<128x128xf32>
    %47 = tpu.matmul %43, %46, %cst_26 {dimension_numbers = #tpu.dot_dimension_numbers<[1], [0], [0], [1], [0, 0, 1, 1], [], []>} : vector<128x384xbf16>, vector<384x128xbf16>, vector<128x128xf32> -> vector<128x128xf32>
    %48 = arith.addf %40, %47 : vector<128x128xf32>
    %c1_i32_27 = arith.constant 1 : i32
    %49 = arith.index_cast %c1_i32_27 : i32 to index
    %c0_28 = arith.constant 0 : index
    %c0_29 = arith.constant 0 : index
    %50 = vector.load %arg6[%49, %c0_28, %c0_29] : memref<10x16x384xbf16, #tpu.memory_space<vmem>>, vector<8x16x384xbf16>
    %51 = vector.shape_cast %50 : vector<8x16x384xbf16> to vector<128x384xbf16>
    %52 = arith.index_cast %c1_i32_27 : i32 to index
    %c0_30 = arith.constant 0 : index
    %c0_31 = arith.constant 0 : index
    %53 = vector.load %arg3[%52, %c0_30, %c0_31] : memref<3x384x128xbf16, #tpu.memory_space<vmem>>, vector<1x384x128xbf16>
    %54 = vector.shape_cast %53 : vector<1x384x128xbf16> to vector<384x128xbf16>
    %cst_32 = arith.constant dense<0.000000e+00> : vector<128x128xf32>
    %55 = tpu.matmul %51, %54, %cst_32 {dimension_numbers = #tpu.dot_dimension_numbers<[1], [0], [0], [1], [0, 0, 1, 1], [], []>} : vector<128x384xbf16>, vector<384x128xbf16>, vector<128x128xf32> -> vector<128x128xf32>
    %56 = arith.addf %48, %55 : vector<128x128xf32>
    %c2_i32 = arith.constant 2 : i32
    %57 = arith.index_cast %c2_i32 : i32 to index
    %c0_33 = arith.constant 0 : index
    %c0_34 = arith.constant 0 : index
    %58 = vector.load %arg6[%57, %c0_33, %c0_34] : memref<10x16x384xbf16, #tpu.memory_space<vmem>>, vector<8x16x384xbf16>
    %59 = vector.shape_cast %58 : vector<8x16x384xbf16> to vector<128x384xbf16>
    %60 = arith.index_cast %c2_i32 : i32 to index
    %c0_35 = arith.constant 0 : index
    %c0_36 = arith.constant 0 : index
    %61 = vector.load %arg3[%60, %c0_35, %c0_36] : memref<3x384x128xbf16, #tpu.memory_space<vmem>>, vector<1x384x128xbf16>
    %62 = vector.shape_cast %61 : vector<1x384x128xbf16> to vector<384x128xbf16>
    %cst_37 = arith.constant dense<0.000000e+00> : vector<128x128xf32>
    %63 = tpu.matmul %59, %62, %cst_37 {dimension_numbers = #tpu.dot_dimension_numbers<[1], [0], [0], [1], [0, 0, 1, 1], [], []>} : vector<128x384xbf16>, vector<384x128xbf16>, vector<128x128xf32> -> vector<128x128xf32>
    %64 = arith.addf %56, %63 : vector<128x128xf32>
    %c3_i32 = arith.constant 3 : i32
    %65 = arith.truncf %64 : vector<128x128xf32> to vector<128x128xbf16>
    %66 = vector.shape_cast %65 : vector<128x128xbf16> to vector<8x16x128xbf16>
    %c0_38 = arith.constant 0 : index
    %c0_39 = arith.constant 0 : index
    %c0_40 = arith.constant 0 : index
    %c0_41 = arith.constant 0 : index
    %67 = vector.load %arg4[%c0_38, %c0_39, %c0_40, %c0_41] : memref<1x8x16x128xbf16, #tpu.memory_space<vmem>>, vector<1x8x16x128xbf16>
    %68 = vector.shape_cast %67 : vector<1x8x16x128xbf16> to vector<8x16x128xbf16>
    %69 = vector.shape_cast %66 : vector<8x16x128xbf16> to vector<1x8x16x128xbf16>
    tpu.vector_store %arg4[%c0_38, %c0_39, %c0_40, %c0_41], %69 {strides = array<i32>} : memref<1x8x16x128xbf16, #tpu.memory_space<vmem>>, vector<1x8x16x128xbf16>,
    %70 = arith.extf %65 : vector<128x128xbf16> to vector<128x128xf32>
    %cst_42 = arith.constant dense<0.000000e+00> : vector<128xf32>
    %71 = vector.multi_reduction <add>, %70, %cst_42 [0] : vector<128x128xf32> to vector<128xf32>
    %72 = vector.shape_cast %71 : vector<128xf32> to vector<1x128xf32>
    %73 = arith.mulf %70, %70 : vector<128x128xf32>
    %cst_43 = arith.constant dense<0.000000e+00> : vector<128xf32>
    %74 = vector.multi_reduction <add>, %73, %cst_43 [0] : vector<128x128xf32> to vector<128xf32>
    %75 = vector.shape_cast %74 : vector<128xf32> to vector<1x128xf32>
    %76 = tpu.concatenate %72, %75 in 0 : vector<1x128xf32>, vector<1x128xf32> -> vector<2x128xf32>
    %c0_44 = arith.constant 0 : index
    %c0_45 = arith.constant 0 : index
    %c0_46 = arith.constant 0 : index
    %c0_47 = arith.constant 0 : index
    %77 = vector.load %arg5[%c0_44, %c0_45, %c0_46, %c0_47] : memref<1x1x2x128xf32, #tpu.memory_space<vmem>>, vector<1x1x2x128xf32>
    %78 = vector.shape_cast %77 : vector<1x1x2x128xf32> to vector<2x128xf32>
    %79 = vector.shape_cast %76 : vector<2x128xf32> to vector<1x1x2x128xf32>
    tpu.vector_store %arg5[%c0_44, %c0_45, %c0_46, %c0_47], %79 {strides = array<i32>} : memref<1x1x2x128xf32, #tpu.memory_space<vmem>>, vector<1x1x2x128xf32>,
    return
  }
  func.func @transform_0(%arg0: i32, %arg1: i32) -> (i32, i32, i32, i32) {
    %c0_i32 = arith.constant 0 : i32
    %c0_i32_0 = arith.constant 0 : i32
    %c0_i32_1 = arith.constant 0 : i32
    %c0_i32_2 = arith.constant 0 : i32
    return %arg0, %c0_i32, %c0_i32_0, %c0_i32_1 : i32, i32, i32, i32
  }
  func.func @transform_1(%arg0: i32, %arg1: i32) -> (i32, i32, i32) {
    %c0_i32 = arith.constant 0 : i32
    %c0_i32_0 = arith.constant 0 : i32
    %c0_i32_1 = arith.constant 0 : i32
    %c0_i32_2 = arith.constant 0 : i32
    return %c0_i32, %c0_i32_0, %c0_i32_1 : i32, i32, i32
  }
  func.func @transform_2(%arg0: i32, %arg1: i32) -> (i32, i32, i32, i32) {
    %c0_i32 = arith.constant 0 : i32
    %c0_i32_0 = arith.constant 0 : i32
    %c0_i32_1 = arith.constant 0 : i32
    return %arg0, %arg1, %c0_i32, %c0_i32_0 : i32, i32, i32, i32
  }
  func.func @transform_3(%arg0: i32, %arg1: i32) -> (i32, i32, i32, i32) {
    %c0_i32 = arith.constant 0 : i32
    %c0_i32_0 = arith.constant 0 : i32
    %c0_i32_1 = arith.constant 0 : i32
    return %arg0, %arg1, %c0_i32, %c0_i32_0 : i32, i32, i32, i32
  }
}

module attributes {stable_mosaic.version = 11 : i64} {
  func.func @_bn_relu_conv2_stats_kernel(%arg0: i32, %arg1: i32, %arg2: memref<1x16x16x128xbf16, #tpu.memory_space<vmem>>, %arg3: memref<1x128xf32, #tpu.memory_space<vmem>>, %arg4: memref<1x128xf32, #tpu.memory_space<vmem>>, %arg5: memref<3x384x128xbf16, #tpu.memory_space<vmem>>, %arg6: memref<1x8x16x128xbf16, #tpu.memory_space<vmem>>, %arg7: memref<1x1x2x128xf32, #tpu.memory_space<vmem>>, %arg8: memref<10x16x384xbf16, #tpu.memory_space<vmem>>) attributes {dimension_semantics = [#tpu.dimension_semantics<parallel>, #tpu.dimension_semantics<parallel>], iteration_bounds = array<i64: 2, 2>, scalar_prefetch = 0 : i64, scratch_operands = 1 : i64, tpu.core_type = #tpu.core_type<tc>, window_params = [{transform_indices = @transform_0, window_bounds = array<i64: 1, 16, 16, 128>}, {pipeline_mode = #tpu.pipeline_mode<synchronous>, transform_indices = @transform_1, window_bounds = array<i64: 1, 128>}, {pipeline_mode = #tpu.pipeline_mode<synchronous>, transform_indices = @transform_2, window_bounds = array<i64: 1, 128>}, {pipeline_mode = #tpu.pipeline_mode<synchronous>, transform_indices = @transform_3, window_bounds = array<i64: 3, 384, 128>}, {transform_indices = @transform_4, window_bounds = array<i64: 1, 8, 16, 128>}, {transform_indices = @transform_5, window_bounds = array<i64: 1, 1, 2, 128>}]} {
    %c8_i32 = arith.constant 8 : i32
    %0 = arith.muli %arg1, %c8_i32 : i32
    %c0 = arith.constant 0 : index
    %c0_0 = arith.constant 0 : index
    %1 = vector.load %arg3[%c0, %c0_0] : memref<1x128xf32, #tpu.memory_space<vmem>>, vector<1x128xf32>
    %2 = vector.shape_cast %1 : vector<1x128xf32> to vector<1x1x128xf32>
    %c0_1 = arith.constant 0 : index
    %c0_2 = arith.constant 0 : index
    %3 = vector.load %arg4[%c0_1, %c0_2] : memref<1x128xf32, #tpu.memory_space<vmem>>, vector<1x128xf32>
    %4 = vector.shape_cast %3 : vector<1x128xf32> to vector<1x1x128xf32>
    %c0_i32 = arith.constant 0 : i32
    %5 = arith.cmpi sgt, %0, %c0_i32 : i32
    %c1_i32 = arith.constant 1 : i32
    %6 = arith.subi %0, %c1_i32 : i32
    %c0_i32_3 = arith.constant 0 : i32
    %7 = arith.maxsi %6, %c0_i32_3 : i32
    %c0_4 = arith.constant 0 : index
    %8 = arith.index_cast %7 : i32 to index
    %c0_5 = arith.constant 0 : index
    %c0_6 = arith.constant 0 : index
    %9 = vector.load %arg2[%c0_4, %8, %c0_5, %c0_6] : memref<1x16x16x128xbf16, #tpu.memory_space<vmem>>, vector<1x1x16x128xbf16>
    %10 = vector.shape_cast %9 : vector<1x1x16x128xbf16> to vector<1x16x128xbf16>
    %11 = arith.extf %10 : vector<1x16x128xbf16> to vector<1x16x128xf32>
    %12 = vector.broadcast %2 : vector<1x1x128xf32> to vector<1x16x128xf32>
    %13 = arith.mulf %11, %12 : vector<1x16x128xf32>
    %14 = vector.broadcast %4 : vector<1x1x128xf32> to vector<1x16x128xf32>
    %15 = arith.addf %13, %14 : vector<1x16x128xf32>
    %cst = arith.constant 0.000000e+00 : f32
    %16 = vector.broadcast %cst : f32 to vector<1x16x128xf32>
    %17 = arith.maximumf %15, %16 : vector<1x16x128xf32>
    %cst_7 = arith.constant 0.000000e+00 : f32
    %18 = vector.broadcast %cst_7 : f32 to vector<1x16x128xf32>
    %19 = arith.select %5, %17, %18 : vector<1x16x128xf32>
    %c8_i32_8 = arith.constant 8 : i32
    %20 = arith.addi %0, %c8_i32_8 : i32
    %c16_i32 = arith.constant 16 : i32
    %21 = arith.cmpi slt, %20, %c16_i32 : i32
    %c8_i32_9 = arith.constant 8 : i32
    %22 = arith.addi %0, %c8_i32_9 : i32
    %c15_i32 = arith.constant 15 : i32
    %23 = arith.minsi %22, %c15_i32 : i32
    %c0_10 = arith.constant 0 : index
    %24 = arith.index_cast %23 : i32 to index
    %c0_11 = arith.constant 0 : index
    %c0_12 = arith.constant 0 : index
    %25 = vector.load %arg2[%c0_10, %24, %c0_11, %c0_12] : memref<1x16x16x128xbf16, #tpu.memory_space<vmem>>, vector<1x1x16x128xbf16>
    %26 = vector.shape_cast %25 : vector<1x1x16x128xbf16> to vector<1x16x128xbf16>
    %27 = arith.extf %26 : vector<1x16x128xbf16> to vector<1x16x128xf32>
    %28 = vector.broadcast %2 : vector<1x1x128xf32> to vector<1x16x128xf32>
    %29 = arith.mulf %27, %28 : vector<1x16x128xf32>
    %30 = vector.broadcast %4 : vector<1x1x128xf32> to vector<1x16x128xf32>
    %31 = arith.addf %29, %30 : vector<1x16x128xf32>
    %cst_13 = arith.constant 0.000000e+00 : f32
    %32 = vector.broadcast %cst_13 : f32 to vector<1x16x128xf32>
    %33 = arith.maximumf %31, %32 : vector<1x16x128xf32>
    %cst_14 = arith.constant 0.000000e+00 : f32
    %34 = vector.broadcast %cst_14 : f32 to vector<1x16x128xf32>
    %35 = arith.select %21, %33, %34 : vector<1x16x128xf32>
    %c0_15 = arith.constant 0 : index
    %36 = arith.index_cast %0 : i32 to index
    %c0_16 = arith.constant 0 : index
    %c0_17 = arith.constant 0 : index
    %37 = vector.load %arg2[%c0_15, %36, %c0_16, %c0_17] : memref<1x16x16x128xbf16, #tpu.memory_space<vmem>>, vector<1x8x16x128xbf16>
    %38 = vector.shape_cast %37 : vector<1x8x16x128xbf16> to vector<8x16x128xbf16>
    %39 = arith.extf %38 : vector<8x16x128xbf16> to vector<8x16x128xf32>
    %40 = vector.broadcast %2 : vector<1x1x128xf32> to vector<8x16x128xf32>
    %41 = arith.mulf %39, %40 : vector<8x16x128xf32>
    %42 = vector.broadcast %4 : vector<1x1x128xf32> to vector<8x16x128xf32>
    %43 = arith.addf %41, %42 : vector<8x16x128xf32>
    %cst_18 = arith.constant 0.000000e+00 : f32
    %44 = vector.broadcast %cst_18 : f32 to vector<8x16x128xf32>
    %45 = arith.maximumf %43, %44 : vector<8x16x128xf32>
    %46 = tpu.concatenate %19, %45, %35 in 0 : vector<1x16x128xf32>, vector<8x16x128xf32>, vector<1x16x128xf32> -> vector<10x16x128xf32>
    %47 = tpu.iota {dimensions = array<i32: 1>} : vector<1x16x1xi32>
    %c1_i32_19 = arith.constant 1 : i32
    %48 = vector.broadcast %c1_i32_19 : i32 to vector<1x16x1xi32>
    %49 = arith.cmpi sge, %47, %48 : vector<1x16x1xi32>
    %c14_i32 = arith.constant 14 : i32
    %50 = vector.broadcast %c14_i32 : i32 to vector<1x16x1xi32>
    %51 = arith.cmpi sle, %47, %50 : vector<1x16x1xi32>
    %c1_i32_20 = arith.constant 1 : i32
    %52 = tpu.dynamic_rotate %46 by %c1_i32_20 dim 1 : vector<10x16x128xf32>, i32 -> vector<10x16x128xf32>
    %cst_21 = arith.constant 0.000000e+00 : f32
    %53 = vector.shape_cast %49 : vector<1x16x1xi1> to vector<1x16x1xi1>
    %54 = vector.broadcast %53 : vector<1x16x1xi1> to vector<10x16x128xi1>
    %55 = vector.broadcast %cst_21 : f32 to vector<10x16x128xf32>
    %56 = arith.select %54, %52, %55 : vector<10x16x128xi1>, vector<10x16x128xf32>
    %c15_i32_22 = arith.constant 15 : i32
    %57 = tpu.dynamic_rotate %46 by %c15_i32_22 dim 1 : vector<10x16x128xf32>, i32 -> vector<10x16x128xf32>
    %cst_23 = arith.constant 0.000000e+00 : f32
    %58 = vector.shape_cast %51 : vector<1x16x1xi1> to vector<1x16x1xi1>
    %59 = vector.broadcast %58 : vector<1x16x1xi1> to vector<10x16x128xi1>
    %60 = vector.broadcast %cst_23 : f32 to vector<10x16x128xf32>
    %61 = arith.select %59, %57, %60 : vector<10x16x128xi1>, vector<10x16x128xf32>
    %62 = tpu.concatenate %56, %46, %61 in 2 : vector<10x16x128xf32>, vector<10x16x128xf32>, vector<10x16x128xf32> -> vector<10x16x384xf32>
    %63 = arith.truncf %62 : vector<10x16x384xf32> to vector<10x16x384xbf16>
    %c0_24 = arith.constant 0 : index
    %c0_25 = arith.constant 0 : index
    %c0_26 = arith.constant 0 : index
    %64 = vector.load %arg8[%c0_24, %c0_25, %c0_26] : memref<10x16x384xbf16, #tpu.memory_space<vmem>>, vector<10x16x384xbf16>
    tpu.vector_store %arg8[%c0_24, %c0_25, %c0_26], %63 {strides = array<i32>} : memref<10x16x384xbf16, #tpu.memory_space<vmem>>, vector<10x16x384xbf16>,
    %cst_27 = arith.constant 0.000000e+00 : f32
    %65 = vector.broadcast %cst_27 : f32 to vector<128x128xf32>
    %c0_i32_28 = arith.constant 0 : i32
    %66 = arith.index_cast %c0_i32_28 : i32 to index
    %c0_29 = arith.constant 0 : index
    %c0_30 = arith.constant 0 : index
    %67 = vector.load %arg8[%66, %c0_29, %c0_30] : memref<10x16x384xbf16, #tpu.memory_space<vmem>>, vector<8x16x384xbf16>
    %68 = vector.shape_cast %67 : vector<8x16x384xbf16> to vector<128x384xbf16>
    %69 = arith.index_cast %c0_i32_28 : i32 to index
    %c0_31 = arith.constant 0 : index
    %c0_32 = arith.constant 0 : index
    %70 = vector.load %arg5[%69, %c0_31, %c0_32] : memref<3x384x128xbf16, #tpu.memory_space<vmem>>, vector<1x384x128xbf16>
    %71 = vector.shape_cast %70 : vector<1x384x128xbf16> to vector<384x128xbf16>
    %cst_33 = arith.constant dense<0.000000e+00> : vector<128x128xf32>
    %72 = tpu.matmul %68, %71, %cst_33 {dimension_numbers = #tpu.dot_dimension_numbers<[1], [0], [0], [1], [0, 0, 1, 1], [], []>} : vector<128x384xbf16>, vector<384x128xbf16>, vector<128x128xf32> -> vector<128x128xf32>
    %73 = arith.addf %65, %72 : vector<128x128xf32>
    %c1_i32_34 = arith.constant 1 : i32
    %74 = arith.index_cast %c1_i32_34 : i32 to index
    %c0_35 = arith.constant 0 : index
    %c0_36 = arith.constant 0 : index
    %75 = vector.load %arg8[%74, %c0_35, %c0_36] : memref<10x16x384xbf16, #tpu.memory_space<vmem>>, vector<8x16x384xbf16>
    %76 = vector.shape_cast %75 : vector<8x16x384xbf16> to vector<128x384xbf16>
    %77 = arith.index_cast %c1_i32_34 : i32 to index
    %c0_37 = arith.constant 0 : index
    %c0_38 = arith.constant 0 : index
    %78 = vector.load %arg5[%77, %c0_37, %c0_38] : memref<3x384x128xbf16, #tpu.memory_space<vmem>>, vector<1x384x128xbf16>
    %79 = vector.shape_cast %78 : vector<1x384x128xbf16> to vector<384x128xbf16>
    %cst_39 = arith.constant dense<0.000000e+00> : vector<128x128xf32>
    %80 = tpu.matmul %76, %79, %cst_39 {dimension_numbers = #tpu.dot_dimension_numbers<[1], [0], [0], [1], [0, 0, 1, 1], [], []>} : vector<128x384xbf16>, vector<384x128xbf16>, vector<128x128xf32> -> vector<128x128xf32>
    %81 = arith.addf %73, %80 : vector<128x128xf32>
    %c2_i32 = arith.constant 2 : i32
    %82 = arith.index_cast %c2_i32 : i32 to index
    %c0_40 = arith.constant 0 : index
    %c0_41 = arith.constant 0 : index
    %83 = vector.load %arg8[%82, %c0_40, %c0_41] : memref<10x16x384xbf16, #tpu.memory_space<vmem>>, vector<8x16x384xbf16>
    %84 = vector.shape_cast %83 : vector<8x16x384xbf16> to vector<128x384xbf16>
    %85 = arith.index_cast %c2_i32 : i32 to index
    %c0_42 = arith.constant 0 : index
    %c0_43 = arith.constant 0 : index
    %86 = vector.load %arg5[%85, %c0_42, %c0_43] : memref<3x384x128xbf16, #tpu.memory_space<vmem>>, vector<1x384x128xbf16>
    %87 = vector.shape_cast %86 : vector<1x384x128xbf16> to vector<384x128xbf16>
    %cst_44 = arith.constant dense<0.000000e+00> : vector<128x128xf32>
    %88 = tpu.matmul %84, %87, %cst_44 {dimension_numbers = #tpu.dot_dimension_numbers<[1], [0], [0], [1], [0, 0, 1, 1], [], []>} : vector<128x384xbf16>, vector<384x128xbf16>, vector<128x128xf32> -> vector<128x128xf32>
    %89 = arith.addf %81, %88 : vector<128x128xf32>
    %c3_i32 = arith.constant 3 : i32
    %90 = arith.truncf %89 : vector<128x128xf32> to vector<128x128xbf16>
    %91 = vector.shape_cast %90 : vector<128x128xbf16> to vector<8x16x128xbf16>
    %c0_45 = arith.constant 0 : index
    %c0_46 = arith.constant 0 : index
    %c0_47 = arith.constant 0 : index
    %c0_48 = arith.constant 0 : index
    %92 = vector.load %arg6[%c0_45, %c0_46, %c0_47, %c0_48] : memref<1x8x16x128xbf16, #tpu.memory_space<vmem>>, vector<1x8x16x128xbf16>
    %93 = vector.shape_cast %92 : vector<1x8x16x128xbf16> to vector<8x16x128xbf16>
    %94 = vector.shape_cast %91 : vector<8x16x128xbf16> to vector<1x8x16x128xbf16>
    tpu.vector_store %arg6[%c0_45, %c0_46, %c0_47, %c0_48], %94 {strides = array<i32>} : memref<1x8x16x128xbf16, #tpu.memory_space<vmem>>, vector<1x8x16x128xbf16>,
    %95 = arith.extf %90 : vector<128x128xbf16> to vector<128x128xf32>
    %cst_49 = arith.constant dense<0.000000e+00> : vector<128xf32>
    %96 = vector.multi_reduction <add>, %95, %cst_49 [0] : vector<128x128xf32> to vector<128xf32>
    %97 = vector.shape_cast %96 : vector<128xf32> to vector<1x128xf32>
    %98 = arith.mulf %95, %95 : vector<128x128xf32>
    %cst_50 = arith.constant dense<0.000000e+00> : vector<128xf32>
    %99 = vector.multi_reduction <add>, %98, %cst_50 [0] : vector<128x128xf32> to vector<128xf32>
    %100 = vector.shape_cast %99 : vector<128xf32> to vector<1x128xf32>
    %101 = tpu.concatenate %97, %100 in 0 : vector<1x128xf32>, vector<1x128xf32> -> vector<2x128xf32>
    %c0_51 = arith.constant 0 : index
    %c0_52 = arith.constant 0 : index
    %c0_53 = arith.constant 0 : index
    %c0_54 = arith.constant 0 : index
    %102 = vector.load %arg7[%c0_51, %c0_52, %c0_53, %c0_54] : memref<1x1x2x128xf32, #tpu.memory_space<vmem>>, vector<1x1x2x128xf32>
    %103 = vector.shape_cast %102 : vector<1x1x2x128xf32> to vector<2x128xf32>
    %104 = vector.shape_cast %101 : vector<2x128xf32> to vector<1x1x2x128xf32>
    tpu.vector_store %arg7[%c0_51, %c0_52, %c0_53, %c0_54], %104 {strides = array<i32>} : memref<1x1x2x128xf32, #tpu.memory_space<vmem>>, vector<1x1x2x128xf32>,
    return
  }
  func.func @transform_0(%arg0: i32, %arg1: i32) -> (i32, i32, i32, i32) {
    %c0_i32 = arith.constant 0 : i32
    %c0_i32_0 = arith.constant 0 : i32
    %c0_i32_1 = arith.constant 0 : i32
    %c0_i32_2 = arith.constant 0 : i32
    return %arg0, %c0_i32, %c0_i32_0, %c0_i32_1 : i32, i32, i32, i32
  }
  func.func @transform_1(%arg0: i32, %arg1: i32) -> (i32, i32) {
    %c0_i32 = arith.constant 0 : i32
    %c0_i32_0 = arith.constant 0 : i32
    %c0_i32_1 = arith.constant 0 : i32
    return %c0_i32, %c0_i32_0 : i32, i32
  }
  func.func @transform_2(%arg0: i32, %arg1: i32) -> (i32, i32) {
    %c0_i32 = arith.constant 0 : i32
    %c0_i32_0 = arith.constant 0 : i32
    %c0_i32_1 = arith.constant 0 : i32
    return %c0_i32, %c0_i32_0 : i32, i32
  }
  func.func @transform_3(%arg0: i32, %arg1: i32) -> (i32, i32, i32) {
    %c0_i32 = arith.constant 0 : i32
    %c0_i32_0 = arith.constant 0 : i32
    %c0_i32_1 = arith.constant 0 : i32
    %c0_i32_2 = arith.constant 0 : i32
    return %c0_i32, %c0_i32_0, %c0_i32_1 : i32, i32, i32
  }
  func.func @transform_4(%arg0: i32, %arg1: i32) -> (i32, i32, i32, i32) {
    %c0_i32 = arith.constant 0 : i32
    %c0_i32_0 = arith.constant 0 : i32
    %c0_i32_1 = arith.constant 0 : i32
    return %arg0, %arg1, %c0_i32, %c0_i32_0 : i32, i32, i32, i32
  }
  func.func @transform_5(%arg0: i32, %arg1: i32) -> (i32, i32, i32, i32) {
    %c0_i32 = arith.constant 0 : i32
    %c0_i32_0 = arith.constant 0 : i32
    %c0_i32_1 = arith.constant 0 : i32
    return %arg0, %arg1, %c0_i32, %c0_i32_0 : i32, i32, i32, i32
  }
}

module attributes {stable_mosaic.version = 11 : i64} {
  func.func @_bn_add_relu_kernel(%arg0: i32, %arg1: i32, %arg2: memref<1x8x16x128xbf16, #tpu.memory_space<vmem>>, %arg3: memref<1x8x16x128xf32, #tpu.memory_space<vmem>>, %arg4: memref<1x128xf32, #tpu.memory_space<vmem>>, %arg5: memref<1x128xf32, #tpu.memory_space<vmem>>, %arg6: memref<1x8x16x128xf32, #tpu.memory_space<vmem>>) attributes {dimension_semantics = [#tpu.dimension_semantics<parallel>, #tpu.dimension_semantics<parallel>], iteration_bounds = array<i64: 2, 2>, scalar_prefetch = 0 : i64, scratch_operands = 0 : i64, tpu.core_type = #tpu.core_type<tc>, window_params = [{transform_indices = @transform_0, window_bounds = array<i64: 1, 8, 16, 128>}, {transform_indices = @transform_1, window_bounds = array<i64: 1, 8, 16, 128>}, {pipeline_mode = #tpu.pipeline_mode<synchronous>, transform_indices = @transform_2, window_bounds = array<i64: 1, 128>}, {pipeline_mode = #tpu.pipeline_mode<synchronous>, transform_indices = @transform_3, window_bounds = array<i64: 1, 128>}, {transform_indices = @transform_4, window_bounds = array<i64: 1, 8, 16, 128>}]} {
    %c0 = arith.constant 0 : index
    %c0_0 = arith.constant 0 : index
    %0 = vector.load %arg4[%c0, %c0_0] : memref<1x128xf32, #tpu.memory_space<vmem>>, vector<1x128xf32>
    %1 = vector.shape_cast %0 : vector<1x128xf32> to vector<1x1x128xf32>
    %c0_1 = arith.constant 0 : index
    %c0_2 = arith.constant 0 : index
    %2 = vector.load %arg5[%c0_1, %c0_2] : memref<1x128xf32, #tpu.memory_space<vmem>>, vector<1x128xf32>
    %3 = vector.shape_cast %2 : vector<1x128xf32> to vector<1x1x128xf32>
    %c0_3 = arith.constant 0 : index
    %c0_4 = arith.constant 0 : index
    %c0_5 = arith.constant 0 : index
    %c0_6 = arith.constant 0 : index
    %4 = vector.load %arg2[%c0_3, %c0_4, %c0_5, %c0_6] : memref<1x8x16x128xbf16, #tpu.memory_space<vmem>>, vector<1x8x16x128xbf16>
    %5 = vector.shape_cast %4 : vector<1x8x16x128xbf16> to vector<8x16x128xbf16>
    %6 = arith.extf %5 : vector<8x16x128xbf16> to vector<8x16x128xf32>
    %7 = vector.broadcast %1 : vector<1x1x128xf32> to vector<8x16x128xf32>
    %8 = arith.mulf %6, %7 : vector<8x16x128xf32>
    %9 = vector.broadcast %3 : vector<1x1x128xf32> to vector<8x16x128xf32>
    %10 = arith.addf %8, %9 : vector<8x16x128xf32>
    %c0_7 = arith.constant 0 : index
    %c0_8 = arith.constant 0 : index
    %c0_9 = arith.constant 0 : index
    %c0_10 = arith.constant 0 : index
    %11 = vector.load %arg3[%c0_7, %c0_8, %c0_9, %c0_10] : memref<1x8x16x128xf32, #tpu.memory_space<vmem>>, vector<1x8x16x128xf32>
    %12 = vector.shape_cast %11 : vector<1x8x16x128xf32> to vector<8x16x128xf32>
    %13 = arith.addf %10, %12 : vector<8x16x128xf32>
    %cst = arith.constant 0.000000e+00 : f32
    %14 = vector.broadcast %cst : f32 to vector<8x16x128xf32>
    %15 = arith.maximumf %13, %14 : vector<8x16x128xf32>
    %c0_11 = arith.constant 0 : index
    %c0_12 = arith.constant 0 : index
    %c0_13 = arith.constant 0 : index
    %c0_14 = arith.constant 0 : index
    %16 = vector.load %arg6[%c0_11, %c0_12, %c0_13, %c0_14] : memref<1x8x16x128xf32, #tpu.memory_space<vmem>>, vector<1x8x16x128xf32>
    %17 = vector.shape_cast %16 : vector<1x8x16x128xf32> to vector<8x16x128xf32>
    %18 = vector.shape_cast %15 : vector<8x16x128xf32> to vector<1x8x16x128xf32>
    tpu.vector_store %arg6[%c0_11, %c0_12, %c0_13, %c0_14], %18 {strides = array<i32>} : memref<1x8x16x128xf32, #tpu.memory_space<vmem>>, vector<1x8x16x128xf32>,
    return
  }
  func.func @transform_0(%arg0: i32, %arg1: i32) -> (i32, i32, i32, i32) {
    %c0_i32 = arith.constant 0 : i32
    %c0_i32_0 = arith.constant 0 : i32
    %c0_i32_1 = arith.constant 0 : i32
    return %arg0, %arg1, %c0_i32, %c0_i32_0 : i32, i32, i32, i32
  }
  func.func @transform_1(%arg0: i32, %arg1: i32) -> (i32, i32, i32, i32) {
    %c0_i32 = arith.constant 0 : i32
    %c0_i32_0 = arith.constant 0 : i32
    %c0_i32_1 = arith.constant 0 : i32
    return %arg0, %arg1, %c0_i32, %c0_i32_0 : i32, i32, i32, i32
  }
  func.func @transform_2(%arg0: i32, %arg1: i32) -> (i32, i32) {
    %c0_i32 = arith.constant 0 : i32
    %c0_i32_0 = arith.constant 0 : i32
    %c0_i32_1 = arith.constant 0 : i32
    return %c0_i32, %c0_i32_0 : i32, i32
  }
  func.func @transform_3(%arg0: i32, %arg1: i32) -> (i32, i32) {
    %c0_i32 = arith.constant 0 : i32
    %c0_i32_0 = arith.constant 0 : i32
    %c0_i32_1 = arith.constant 0 : i32
    return %c0_i32, %c0_i32_0 : i32, i32
  }
  func.func @transform_4(%arg0: i32, %arg1: i32) -> (i32, i32, i32, i32) {
    %c0_i32 = arith.constant 0 : i32
    %c0_i32_0 = arith.constant 0 : i32
    %c0_i32_1 = arith.constant 0 : i32
    return %arg0, %arg1, %c0_i32, %c0_i32_0 : i32, i32, i32, i32
  }
}

</mosaic_0001>

<llo_original>
// kernel: resblock_forward.5
$region0: #{resblock_forward.5}
  #allocation0 [shape = 'u32[]', space=smem, size = 0x4, offset = 0x4, fixed_abs, tag = 'smem constant byte address 0x4 - core index']
  #allocation1 [shape = 'u32[144,128]{1,0:T(1,128)}', space=vmem, size = 0x12000, scoped, tag = 'internal scratch']
  %s0 = inlined_call_operand.hbm [shape: bf16[2,16,16,128], index: 0, kind: input, shape index: {}]
  %s1 = inlined_call_operand.hbm [shape: f32[2,16,16,128], index: 1, kind: input, shape index: {}, may-alias: {1,4}]
  %s2 = inlined_call_operand.hbm [shape: f32[1,128], index: 2, kind: input, shape index: {}]
  %s3 = inlined_call_operand.hbm [shape: f32[1,128], index: 3, kind: input, shape index: {}]
  %s4 = inlined_call_operand.hbm [shape: f32[2,16,16,128], index: 4, kind: output, shape index: {}, may-alias: {1,4}]
  %s5 = sld [smem:[#allocation0]]
  $region65: #{resblock_forward.5} parent=0
    _
  %s7 = ssub.s32 1, %s5
  %s8 = scalar_select 0, %s7, %s5
  $region1: #{resblock_forward.5} parent=0
    #allocation2 [shape = 'u8[65536]{0}', space=vmem, size = 0x10000, scoped, tag = 'input window, operand 0']
    #allocation3 [shape = 's32[2]{0}', space=sflag, size = 0x8, scoped, tag = 'scoped memory for resblock_forward.5']
    #allocation4 [shape = 's32[2]{0}', space=sflag, size = 0x8, scoped, tag = 'scoped memory for resblock_forward.5']
    #allocation5 [shape = 'u8[131072]{0}', space=vmem, size = 0x20000, scoped, tag = 'input window, operand 1']
    #allocation6 [shape = 's32[2]{0}', space=sflag, size = 0x8, scoped, tag = 'scoped memory for resblock_forward.5']
    #allocation7 [shape = 'u8[512]{0}', space=vmem, size = 0x400, scoped, tag = 'input window, operand 2, single buffered']
    #allocation8 [shape = 'u8[512]{0}', space=vmem, size = 0x400, scoped, tag = 'input window, operand 3, single buffered']
    #allocation9 [shape = 's32[1]{0}', space=sflag, size = 0x4, scoped, tag = 'scoped memory for resblock_forward.5']
    #allocation10 [shape = 'u8[131072]{0}', space=vmem, size = 0x20000, scoped, tag = 'output window, operand 0']
    %9 = vsyncpa [#allocation3], 0
    %s10 = scalar_lea.sflag [#allocation3], 1
    %11 = vsyncpa %s10, 0
    %12 = vsyncpa [#allocation6], 0
    %s13 = scalar_lea.sflag [#allocation6], 1
    %14 = vsyncpa %s13, 0
    %15 = vsyncpa [#allocation9], 0
    %16 = vsyncpa [#allocation4], 0
    %s17 = scalar_lea.sflag [#allocation4], 1
    %18 = vsyncpa %s17, 0
    loop: start=0, step=1, limit=6
    $region2: #{resblock_forward.5} parent=1 // loop_pre_header
      _
    $region3: #{resblock_forward.5} parent=1 // loop_header
      %s20 = sphi 0, %s24
      %p21 = scmp.ge.s32.totalorder %s20, 6
      %s27 = sphi 0, %s39
      %s28 = sphi 0, %s35
      %s29 = sphi 0, %s27
      %s30 = sphi 0, %s28
      %s31 = sphi 0, %s29
      %s32 = sphi 0, %s30
      %s44 = sphi 0, %s46
      %s47 = sphi 0, %s44
      %s48 = sphi 0, %s47
      %s64 = sphi 0, %s48
      %s72 = sphi 0, %s74
      %s75 = sphi 0, %s72
      %s76 = sphi 0, %s75
      %s92 = sphi 0, %s76
      %s96 = sphi 0, %s96
      %s98 = sphi 0, %s96
      %s99 = sphi 0, %s98
      %s113 = sphi 0, %s99
      %s117 = sphi 0, %s117
      %s119 = sphi 0, %s117
      %s120 = sphi 0, %s119
      %s134 = sphi 0, %s120
      %s142 = sphi 0, %s144
      %s145 = sphi 0, %s142
      %s146 = sphi 0, %s145
      %s162 = sphi 0, %s146
    $region4: #{resblock_forward.5} parent=1 // loop_header_branch
      %23 = sbr.rel (%p21) target = $region8
    $region5: #{resblock_forward.5} parent=1 // loop_body
      %s25 = ssub.s32 %s20, 1
      %s26 = ssub.s32 %s20, 2
      %s33 = sadd.s32 1, %s28
      %p34 = scmp.ge.s32.totalorder %s33, 2
      %s35 = scalar_select %p34, 0, %s33
      %s36 = sadd.s32 1, %s27
      %s37 = scalar_select %p34, %s36, %s27
      %p38 = scmp.ge.s32.totalorder %s37, 2
      %s39 = scalar_select %p38, 0, %s37
      %s40 = ssub.s32 %s27, %s39
      %s41 = ssub.s32 %s28, %s35
      %s42 = sor.u32 %s40, %s41
      %p43 = scmp.eq.s32.totalorder %s42, 0
      %s45 = sadd.s32 %s44, 1
      %s46 = scalar_select %p43, %s44, %s45
      %p49 = pneg %p43
      %p50 = scmp.eq.s32.totalorder %s20, 3
      %p51 = por %p49, %p50
      %p52 = scmp.ne.s32.totalorder %s44, %s47
      %p53 = scmp.eq.s32.totalorder %s20, 0
      %p54 = por %p52, %p53
      %p55 = scmp.ne.s32.totalorder %s44, %s47
      %p56 = scmp.eq.s32.totalorder %s25, 3
      %p57 = por %p55, %p56
      %p58 = scmp.ne.s32.totalorder %s47, %s48
      %p59 = scmp.eq.s32.totalorder %s25, 0
      %p60 = por %p58, %p59
      %p61 = scmp.ne.s32.totalorder %s47, %s48
      %p62 = scmp.eq.s32.totalorder %s26, 3
      %p63 = por %p61, %p62
      %p65 = scmp.ne.s32.totalorder %s48, %s64
      %p66 = scmp.eq.s32.totalorder %s26, 0
      %p67 = por %p65, %p66
      %s68 = ssub.s32 %s27, %s39
      %s69 = ssub.s32 %s28, %s35
      %s70 = sor.u32 %s68, %s69
      %p71 = scmp.eq.s32.totalorder %s70, 0
      %s73 = sadd.s32 %s72, 1
      %s74 = scalar_select %p71, %s72, %s73
      %p77 = pneg %p71
      %p78 = scmp.eq.s32.totalorder %s20, 3
      %p79 = por %p77, %p78
      %p80 = scmp.ne.s32.totalorder %s72, %s75
      %p81 = scmp.eq.s32.totalorder %s20, 0
      %p82 = por %p80, %p81
      %p83 = scmp.ne.s32.totalorder %s72, %s75
      %p84 = scmp.eq.s32.totalorder %s25, 3
      %p85 = por %p83, %p84
      %p86 = scmp.ne.s32.totalorder %s75, %s76
      %p87 = scmp.eq.s32.totalorder %s25, 0
      %p88 = por %p86, %p87
      %p89 = scmp.ne.s32.totalorder %s75, %s76
      %p90 = scmp.eq.s32.totalorder %s26, 3
      %p91 = por %p89, %p90
      %p93 = scmp.ne.s32.totalorder %s76, %s92
      %p94 = scmp.eq.s32.totalorder %s26, 0
      %p95 = por %p93, %p94
      %s97 = sadd.s32 %s96, 1
      %p100 = scmp.eq.s32.totalorder %s20, 3
      %p101 = scmp.ne.s32.totalorder %s96, %s98
      %p102 = scmp.eq.s32.totalorder %s20, 0
      %p103 = por %p101, %p102
      %p104 = scmp.ne.s32.totalorder %s96, %s98
      %p105 = scmp.eq.s32.totalorder %s25, 3
      %p106 = por %p104, %p105
      %p107 = scmp.ne.s32.totalorder %s98, %s99
      %p108 = scmp.eq.s32.totalorder %s25, 0
      %p109 = por %p107, %p108
      %p110 = scmp.ne.s32.totalorder %s98, %s99
      %p111 = scmp.eq.s32.totalorder %s26, 3
      %p112 = por %p110, %p111
      %p114 = scmp.ne.s32.totalorder %s99, %s113
      %p115 = scmp.eq.s32.totalorder %s26, 0
      %p116 = por %p114, %p115
      %s118 = sadd.s32 %s117, 1
      %p121 = scmp.eq.s32.totalorder %s20, 3
      %p122 = scmp.ne.s32.totalorder %s117, %s119
      %p123 = scmp.eq.s32.totalorder %s20, 0
      %p124 = por %p122, %p123
      %p125 = scmp.ne.s32.totalorder %s117, %s119
      %p126 = scmp.eq.s32.totalorder %s25, 3
      %p127 = por %p125, %p126
      %p128 = scmp.ne.s32.totalorder %s119, %s120
      %p129 = scmp.eq.s32.totalorder %s25, 0
      %p130 = por %p128, %p129
      %p131 = scmp.ne.s32.totalorder %s119, %s120
      %p132 = scmp.eq.s32.totalorder %s26, 3
      %p133 = por %p131, %p132
      %p135 = scmp.ne.s32.totalorder %s120, %s134
      %p136 = scmp.eq.s32.totalorder %s26, 0
      %p137 = por %p135, %p136
      %s138 = ssub.s32 %s27, %s39
      %s139 = ssub.s32 %s28, %s35
      %s140 = sor.u32 %s138, %s139
      %p141 = scmp.eq.s32.totalorder %s140, 0
      %s143 = sadd.s32 %s142, 1
      %s144 = scalar_select %p141, %s142, %s143
      %p147 = pneg %p141
      %p148 = scmp.eq.s32.totalorder %s20, 3
      %p149 = por %p147, %p148
      %p150 = scmp.ne.s32.totalorder %s142, %s145
      %p151 = scmp.eq.s32.totalorder %s20, 0
      %p152 = por %p150, %p151
      %p153 = scmp.ne.s32.totalorder %s142, %s145
      %p154 = scmp.eq.s32.totalorder %s25, 3
      %p155 = por %p153, %p154
      %p156 = scmp.ne.s32.totalorder %s145, %s146
      %p157 = scmp.eq.s32.totalorder %s25, 0
      %p158 = por %p156, %p157
      %p159 = scmp.ne.s32.totalorder %s145, %s146
      %p160 = scmp.eq.s32.totalorder %s26, 3
      %p161 = por %p159, %p160
      %p163 = scmp.ne.s32.totalorder %s146, %s162
      %p164 = scmp.eq.s32.totalorder %s26, 0
      %p165 = por %p163, %p164
      %p166 = scmp.le.s32.totalorder 1, %s20
      %p167 = scmp.lt.s32.totalorder %s20, 5
      %p168 = pnand %p166, %p167
      %p169 = pneg %p168
      // Predicated region
      $region9: #{resblock_forward.5} parent=5 // pred_check
        _
      $region10: #{resblock_forward.5} parent=5 // pred_check_branch
        %171 = sbr.rel (%p168) target = $region12
      $region11: #{resblock_forward.5} parent=5 // pred_region
        %s172 = ssub.s32 %s20, 1
        // Predicated region
        $region13: #{resblock_forward.5} parent=11 // pred_check
          %p173 = pneg %p109
        $region14: #{resblock_forward.5} parent=11 // pred_check_branch
          %175 = sbr.rel (%p173) target = $region16
        $region15: #{resblock_forward.5} parent=11 // pred_region
          %s177 = ssub.s32 16, 16
          %178 = vsyncadd [#allocation6], %s177
          %s180 = sshll.u32 [#allocation7], 4
          %s181 = int_to_ptr.vmem [resolvable:$true] %s180
          %183 = dma.hbm_to_vmem [thread:$0]  %s2, 16, %s181, [#allocation6]
        $region16: #{resblock_forward.5} parent=11 // pred_fallthru
          _
        // Predicated region
        $region17: #{resblock_forward.5} parent=11 // pred_check
          %p184 = pneg %p130
        $region18: #{resblock_forward.5} parent=11 // pred_check_branch
          %186 = sbr.rel (%p184) target = $region20
        $region19: #{resblock_forward.5} parent=11 // pred_region
          %s188 = ssub.s32 16, 16
          %189 = vsyncadd [#allocation9], %s188
          %s191 = sshll.u32 [#allocation8], 4
          %s192 = int_to_ptr.vmem [resolvable:$true] %s191
          %194 = dma.hbm_to_vmem [thread:$0]  %s3, 16, %s192, [#allocation9]
        $region20: #{resblock_forward.5} parent=11 // pred_fallthru
          _
      $region12: #{resblock_forward.5} parent=5 // pred_fallthru
        _
      %p195 = scmp.lt.s32.totalorder %s20, 4
      // Predicated region
      $region21: #{resblock_forward.5} parent=5 // pred_check
        %p196 = pneg %p195
      $region22: #{resblock_forward.5} parent=5 // pred_check_branch
        %198 = sbr.rel (%p196) target = $region24
      $region23: #{resblock_forward.5} parent=5 // pred_region
        // Predicated region
        $region25: #{resblock_forward.5} parent=23 // pred_check
          %p199 = pneg %p54
        $region26: #{resblock_forward.5} parent=23 // pred_check_branch
          %201 = sbr.rel (%p199) target = $region28
        $region27: #{resblock_forward.5} parent=23 // pred_region
          %s202 = sand.u32 %s44, 1
          %s203 = scalar_lea.sflag [#allocation3], %s202
          %s204 = sand.u32 %s44, 1
          %s205 = smul.addr %s204, 64
          %s206 = scalar_lea.vmem [#allocation2], %s205
          %s207 = smul.u32 8, %s28
          %s209 = ssub.s32 1024, 1024
          %210 = vsyncadd %s203, %s209
          %s211 = smul.addr %s207, 2
          %s212 = smul.addr %s27, 32
          %s213 = sadd.s32 %s211, %s212
          %s214 = smul.addr %s213, 64
          %s215 = scalar_lea.hbm %s0, %s214
          %s216 = sshll.u32 %s206, 4
          %s217 = int_to_ptr.vmem [resolvable:$true] %s216
          %222 = dma.hbm_to_vmem [thread:$0]  %s215, 1024, %s217, %s203, 64, 64, 4
        $region28: #{resblock_forward.5} parent=23 // pred_fallthru
          _
        // Predicated region
        $region29: #{resblock_forward.5} parent=23 // pred_check
          %p223 = pneg %p82
        $region30: #{resblock_forward.5} parent=23 // pred_check_branch
          %225 = sbr.rel (%p223) target = $region32
        $region31: #{resblock_forward.5} parent=23 // pred_region
          %s226 = sand.u32 %s20, 1
          %s227 = scalar_lea.sflag [#allocation6], %s226
          %s228 = sand.u32 %s72, 1
          %s229 = smul.addr %s228, 128
          %s230 = scalar_lea.vmem [#allocation5], %s229
          %s231 = smul.u32 8, %s28
          %s233 = ssub.s32 2048, 2048
          %234 = vsyncadd %s227, %s233
          %s235 = smul.addr %s231, 2
          %s236 = smul.addr %s27, 32
          %s237 = sadd.s32 %s235, %s236
          %s238 = smul.addr %s237, 128
          %s239 = scalar_lea.hbm %s1, %s238
          %s240 = sshll.u32 %s230, 4
          %s241 = int_to_ptr.vmem [resolvable:$true] %s240
          %246 = dma.hbm_to_vmem [thread:$0]  %s239, 2048, %s241, %s227, 128, 128, 8
        $region32: #{resblock_forward.5} parent=23 // pred_fallthru
          _
      $region24: #{resblock_forward.5} parent=5 // pred_fallthru
        _
      %p247 = scmp.le.s32.totalorder 1, %s20
      %p248 = scmp.lt.s32.totalorder %s20, 5
      %p249 = pnand %p247, %p248
      %p250 = pneg %p249
      // Predicated region
      $region33: #{resblock_forward.5} parent=5 // pred_check
        _
      $region34: #{resblock_forward.5} parent=5 // pred_check_branch
        %252 = sbr.rel (%p249) target = $region36
      $region35: #{resblock_forward.5} parent=5 // pred_region
        %s253 = ssub.s32 %s20, 1
        %s254 = sand.u32 %s47, 1
        %s255 = scalar_lea.sflag [#allocation3], %s254
        %s256 = sand.u32 %s47, 1
        %s257 = smul.addr %s256, 64
        %s258 = scalar_lea.vmem [#allocation2], %s257
        // Predicated region
        $region37: #{resblock_forward.5} parent=35 // pred_check
          %p259 = pneg %p60
        $region38: #{resblock_forward.5} parent=35 // pred_check_branch
          %261 = sbr.rel (%p259) target = $region40
        $region39: #{resblock_forward.5} parent=35 // pred_region
          %262 = dma.done %s255, 1024
        $region40: #{resblock_forward.5} parent=35 // pred_fallthru
          _
        %s263 = sand.u32 %s25, 1
        %s264 = scalar_lea.sflag [#allocation6], %s263
        %s265 = sand.u32 %s75, 1
        %s266 = smul.addr %s265, 128
        %s267 = scalar_lea.vmem [#allocation5], %s266
        // Predicated region
        $region41: #{resblock_forward.5} parent=35 // pred_check
          %p268 = pneg %p88
        $region42: #{resblock_forward.5} parent=35 // pred_check_branch
          %270 = sbr.rel (%p268) target = $region44
        $region43: #{resblock_forward.5} parent=35 // pred_region
          %271 = dma.done %s264, 2048
        $region44: #{resblock_forward.5} parent=35 // pred_fallthru
          _
        // Predicated region
        $region45: #{resblock_forward.5} parent=35 // pred_check
          %p272 = pneg %p109
        $region46: #{resblock_forward.5} parent=35 // pred_check_branch
          %274 = sbr.rel (%p272) target = $region48
        $region47: #{resblock_forward.5} parent=35 // pred_region
          %275 = dma.done [#allocation6], 16
        $region48: #{resblock_forward.5} parent=35 // pred_fallthru
          _
        // Predicated region
        $region49: #{resblock_forward.5} parent=35 // pred_check
          %p276 = pneg %p130
        $region50: #{resblock_forward.5} parent=35 // pred_check_branch
          %278 = sbr.rel (%p276) target = $region52
        $region51: #{resblock_forward.5} parent=35 // pred_region
          %279 = dma.done [#allocation9], 16
        $region52: #{resblock_forward.5} parent=35 // pred_fallthru
          _
        %s280 = sand.u32 %s47, 1
        %s281 = scalar_lea.sflag [#allocation3], %s280
        %s282 = sand.u32 %s47, 1
        %s283 = smul.addr %s282, 64
        %s284 = scalar_lea.vmem [#allocation2], %s283
        %p285 = pneg %p60
        %p286 = pneg %p57
        %s287 = sand.u32 %s25, 1
        %s288 = scalar_lea.sflag [#allocation6], %s287
        %s289 = sand.u32 %s75, 1
        %s290 = smul.addr %s289, 128
        %s291 = scalar_lea.vmem [#allocation5], %s290
        %p292 = pneg %p88
        %p293 = pneg %p85
        %p294 = pneg %p109
        %p295 = pneg %p106
        %p296 = pneg %p130
        %p297 = pneg %p127
        %p298 = pneg %p158
        %p299 = pneg %p155
        %s300 = sand.u32 %s145, 1
        %s301 = scalar_lea.sflag [#allocation4], %s300
        %s302 = sand.u32 %s145, 1
        %s303 = smul.addr %s302, 128
        %s304 = scalar_lea.vmem [#allocation10], %s303
        %s305 = smul.u32 8, %s30
        %s306 = smul.u32 8, %s30
        %s307 = smul.u32 8, %s30
        %v308 = vld [vmem:[#allocation7] sm:$0x1]
        %v309 = vld [vmem:[#allocation8] sm:$0x1]
        %v310 = vld [vmem:[%s258] sm:$0xf]
        %v311 = vld [vmem:[%s258 + $0x4] sm:$0xf]
        %v312 = vld [vmem:[%s258 + $0x8] sm:$0xf]
        %v313 = vld [vmem:[%s258 + $0xc] sm:$0xf]
        %v314 = vld [vmem:[%s258 + $0x10] sm:$0xf]
        %v315 = vld [vmem:[%s258 + $0x14] sm:$0xf]
        %v316 = vld [vmem:[%s258 + $0x18] sm:$0xf]
        %v317 = vld [vmem:[%s258 + $0x1c] sm:$0xf]
        %v318 = vld [vmem:[%s258 + $0x20] sm:$0xf]
        %v319 = vld [vmem:[%s258 + $0x24] sm:$0xf]
        %v320 = vld [vmem:[%s258 + $0x28] sm:$0xf]
        %v321 = vld [vmem:[%s258 + $0x2c] sm:$0xf]
        %v322 = vld [vmem:[%s258 + $0x30] sm:$0xf]
        %v323 = vld [vmem:[%s258 + $0x34] sm:$0xf]
        %v324 = vld [vmem:[%s258 + $0x38] sm:$0xf]
        %v325 = vld [vmem:[%s258 + $0x3c] sm:$0xf]
        %v326 = vunpack.c.l.bf16 %v310
        %v327 = vunpack.c.l.bf16 %v311
        %v328 = vunpack.c.l.bf16 %v312
        %v329 = vunpack.c.l.bf16 %v313
        %v330 = vunpack.c.l.bf16 %v314
        %v331 = vunpack.c.l.bf16 %v315
        %v332 = vunpack.c.l.bf16 %v316
        %v333 = vunpack.c.l.bf16 %v317
        %v334 = vunpack.c.l.bf16 %v318
        %v335 = vunpack.c.l.bf16 %v319
        %v336 = vunpack.c.l.bf16 %v320
        %v337 = vunpack.c.l.bf16 %v321
        %v338 = vunpack.c.l.bf16 %v322
        %v339 = vunpack.c.l.bf16 %v323
        %v340 = vunpack.c.l.bf16 %v324
        %v341 = vunpack.c.l.bf16 %v325
        %v343 = vlaneseq
        %v344 = vshrl.u32 %v343, 7
        %v345 = vsub.s32 0, %v344
        %v346 = vrot.slane %v308, %v345
        %v348 = vmul.f32 %v326, %v346
        %v349 = vmul.f32 %v327, %v346
        %v350 = vmul.f32 %v328, %v346
        %v351 = vmul.f32 %v329, %v346
        %v352 = vmul.f32 %v330, %v346
        %v353 = vmul.f32 %v331, %v346
        %v354 = vmul.f32 %v332, %v346
        %v355 = vmul.f32 %v333, %v346
        %v356 = vmul.f32 %v334, %v346
        %v357 = vmul.f32 %v335, %v346
        %v358 = vmul.f32 %v336, %v346
        %v359 = vmul.f32 %v337, %v346
        %v360 = vmul.f32 %v338, %v346
        %v361 = vmul.f32 %v339, %v346
        %v362 = vmul.f32 %v340, %v346
        %v363 = vmul.f32 %v341, %v346
        %v365 = vlaneseq
        %v366 = vshrl.u32 %v365, 7
        %v367 = vsub.s32 0, %v366
        %v368 = vrot.slane %v309, %v367
        %v370 = vadd.f32 %v348, %v368
        %v371 = vadd.f32 %v349, %v368
        %v372 = vadd.f32 %v350, %v368
        %v373 = vadd.f32 %v351, %v368
        %v374 = vadd.f32 %v352, %v368
        %v375 = vadd.f32 %v353, %v368
        %v376 = vadd.f32 %v354, %v368
        %v377 = vadd.f32 %v355, %v368
        %v378 = vadd.f32 %v356, %v368
        %v379 = vadd.f32 %v357, %v368
        %v380 = vadd.f32 %v358, %v368
        %v381 = vadd.f32 %v359, %v368
        %v382 = vadd.f32 %v360, %v368
        %v383 = vadd.f32 %v361, %v368
        %v384 = vadd.f32 %v362, %v368
        %v385 = vadd.f32 %v363, %v368
        %v386 = vld [vmem:[%s267] sm:$0xff]
        %v387 = vld [vmem:[%s267 + $0x8] sm:$0xff]
        %v388 = vld [vmem:[%s267 + $0x10] sm:$0xff]
        %v389 = vld [vmem:[%s267 + $0x18] sm:$0xff]
        %v390 = vld [vmem:[%s267 + $0x20] sm:$0xff]
        %v391 = vld [vmem:[%s267 + $0x28] sm:$0xff]
        %v392 = vld [vmem:[%s267 + $0x30] sm:$0xff]
        %v393 = vld [vmem:[%s267 + $0x38] sm:$0xff]
        %v394 = vld [vmem:[%s267 + $0x40] sm:$0xff]
        %v395 = vld [vmem:[%s267 + $0x48] sm:$0xff]
        %v396 = vld [vmem:[%s267 + $0x50] sm:$0xff]
        %v397 = vld [vmem:[%s267 + $0x58] sm:$0xff]
        %v398 = vld [vmem:[%s267 + $0x60] sm:$0xff]
        %v399 = vld [vmem:[%s267 + $0x68] sm:$0xff]
        %v400 = vld [vmem:[%s267 + $0x70] sm:$0xff]
        %v401 = vld [vmem:[%s267 + $0x78] sm:$0xff]
        %v402 = vadd.f32 %v370, %v386
        %v403 = vadd.f32 %v371, %v387
        %v404 = vadd.f32 %v372, %v388
        %v405 = vadd.f32 %v373, %v389
        %v406 = vadd.f32 %v374, %v390
        %v407 = vadd.f32 %v375, %v391
        %v408 = vadd.f32 %v376, %v392
        %v409 = vadd.f32 %v377, %v393
        %v410 = vadd.f32 %v378, %v394
        %v411 = vadd.f32 %v379, %v395
        %v412 = vadd.f32 %v380, %v396
        %v413 = vadd.f32 %v381, %v397
        %v414 = vadd.f32 %v382, %v398
        %v415 = vadd.f32 %v383, %v399
        %v416 = vadd.f32 %v384, %v400
        %v417 = vadd.f32 %v385, %v401
        %v418 = vmax.f32 %v402, 0.0
        %v419 = vmax.f32 %v403, 0.0
        %v420 = vmax.f32 %v404, 0.0
        %v421 = vmax.f32 %v405, 0.0
        %v422 = vmax.f32 %v406, 0.0
        %v423 = vmax.f32 %v407, 0.0
        %v424 = vmax.f32 %v408, 0.0
        %v425 = vmax.f32 %v409, 0.0
        %v426 = vmax.f32 %v410, 0.0
        %v427 = vmax.f32 %v411, 0.0
        %v428 = vmax.f32 %v412, 0.0
        %v429 = vmax.f32 %v413, 0.0
        %v430 = vmax.f32 %v414, 0.0
        %v431 = vmax.f32 %v415, 0.0
        %v432 = vmax.f32 %v416, 0.0
        %v433 = vmax.f32 %v417, 0.0
        %434 = vst [vmem:[%s304] sm:$0xff] %v418
        %435 = vst [vmem:[%s304 + $0x8] sm:$0xff] %v419
        %436 = vst [vmem:[%s304 + $0x10] sm:$0xff] %v420
        %437 = vst [vmem:[%s304 + $0x18] sm:$0xff] %v421
        %438 = vst [vmem:[%s304 + $0x20] sm:$0xff] %v422
        %439 = vst [vmem:[%s304 + $0x28] sm:$0xff] %v423
        %440 = vst [vmem:[%s304 + $0x30] sm:$0xff] %v424
        %441 = vst [vmem:[%s304 + $0x38] sm:$0xff] %v425
        %442 = vst [vmem:[%s304 + $0x40] sm:$0xff] %v426
        %443 = vst [vmem:[%s304 + $0x48] sm:$0xff] %v427
        %444 = vst [vmem:[%s304 + $0x50] sm:$0xff] %v428
        %445 = vst [vmem:[%s304 + $0x58] sm:$0xff] %v429
        %446 = vst [vmem:[%s304 + $0x60] sm:$0xff] %v430
        %447 = vst [vmem:[%s304 + $0x68] sm:$0xff] %v431
        %448 = vst [vmem:[%s304 + $0x70] sm:$0xff] %v432
        %449 = vst [vmem:[%s304 + $0x78] sm:$0xff] %v433
        %s450 = sand.u32 %s145, 1
        %s451 = scalar_lea.sflag [#allocation4], %s450
        %s452 = sand.u32 %s145, 1
        %s453 = smul.addr %s452, 128
        %s454 = scalar_lea.vmem [#allocation10], %s453
        // Predicated region
        $region53: #{resblock_forward.5} parent=35 // pred_check
          %p455 = pneg %p155
        $region54: #{resblock_forward.5} parent=35 // pred_check_branch
          %457 = sbr.rel (%p455) target = $region56
        $region55: #{resblock_forward.5} parent=35 // pred_region
          %s458 = smul.u32 8, %s30
          %s460 = ssub.s32 2048, 2048
          %461 = vsyncadd %s451, %s460
          %s462 = smul.addr %s458, 2
          %s463 = smul.addr %s29, 32
          %s464 = sadd.s32 %s462, %s463
          %s465 = smul.addr %s464, 128
          %s466 = scalar_lea.hbm %s4, %s465
          %s467 = sshll.u32 %s454, 4
          %s468 = int_to_ptr.vmem [resolvable:$true] %s467
          %473 = dma.vmem_to_hbm [thread:$0]  %s468, 2048, %s466, %s451, 128, 128, 8
        $region56: #{resblock_forward.5} parent=35 // pred_fallthru
          _
      $region36: #{resblock_forward.5} parent=5 // pred_fallthru
        _
      %p474 = scmp.le.s32.totalorder 2, %s20
      // Predicated region
      $region57: #{resblock_forward.5} parent=5 // pred_check
        %p475 = pneg %p474
      $region58: #{resblock_forward.5} parent=5 // pred_check_branch
        %477 = sbr.rel (%p475) target = $region60
      $region59: #{resblock_forward.5} parent=5 // pred_region
        %s478 = ssub.s32 %s20, 2
        // Predicated region
        $region61: #{resblock_forward.5} parent=59 // pred_check
          %p479 = pneg %p161
        $region62: #{resblock_forward.5} parent=59 // pred_check_branch
          %481 = sbr.rel (%p479) target = $region64
        $region63: #{resblock_forward.5} parent=59 // pred_region
          %s482 = sand.u32 %s146, 1
          %s483 = scalar_lea.sflag [#allocation4], %s482
          %s484 = sand.u32 %s146, 1
          %s485 = smul.addr %s484, 128
          %s486 = scalar_lea.vmem [#allocation10], %s485
          %487 = dma.done %s483, 2048
        $region64: #{resblock_forward.5} parent=59 // pred_fallthru
          _
      $region60: #{resblock_forward.5} parent=5 // pred_fallthru
        _
    $region6: #{resblock_forward.5} parent=1 // loop_footer
      %s24 = sadd.s32 1, %s20
    $region7: #{resblock_forward.5} parent=1 // loop_footer_branch
      %19 = sbr.rel target = $region3
    $region8: #{resblock_forward.5} parent=1 // loop_exit
      _
    %488 = vsyncpa [#allocation3], 1
    %s489 = scalar_lea.sflag [#allocation3], 1
    %490 = vsyncpa %s489, 1
    %491 = vsyncpa [#allocation6], 1
    %s492 = scalar_lea.sflag [#allocation6], 1
    %493 = vsyncpa %s492, 1
    %494 = vsyncpa [#allocation9], 1
    %495 = vsyncpa [#allocation4], 1
    %s496 = scalar_lea.sflag [#allocation4], 1
    %497 = vsyncpa %s496, 1

// kernel: resblock_forward.4
$region0: #{resblock_forward.4}
  #allocation0 [shape = 'u32[]', space=smem, size = 0x4, offset = 0x4, fixed_abs, tag = 'smem constant byte address 0x4 - core index']
  #allocation1 [shape = 'u32[144,128]{1,0:T(1,128)}', space=vmem, size = 0x12000, scoped, tag = 'internal scratch']
  #allocation2 [shape = 'bf16[10,16,384]{2,1,0:T(16,128)(2,1)}', space=vmem, size = 0x1e000, scoped, tag = 'scratch operand']
  %s0 = inlined_call_operand.hbm [shape: bf16[2,16,16,128], index: 0, kind: input, shape index: {}]
  %s1 = inlined_call_operand.hbm [shape: f32[1,128], index: 1, kind: input, shape index: {}]
  %s2 = inlined_call_operand.hbm [shape: f32[1,128], index: 2, kind: input, shape index: {}]
  %s3 = inlined_call_operand.hbm [shape: bf16[3,384,128], index: 3, kind: input, shape index: {}]
  %s4 = inlined_call_operand.hbm [shape: bf16[2,16,16,128], index: 4, kind: output, shape index: {0}]
  %s5 = inlined_call_operand.hbm [shape: f32[2,2,2,128], index: 5, kind: output, shape index: {1}]
  %6 = xla_tuple %s4, %s5
  %s7 = sld [smem:[#allocation0]]
  $region73: #{resblock_forward.4} parent=0
    _
  %s9 = ssub.s32 1, %s7
  %s10 = scalar_select 0, %s9, %s7
  $region1: #{resblock_forward.4} parent=0
    #allocation3 [shape = 'u8[131072]{0}', space=vmem, size = 0x20000, scoped, tag = 'input window, operand 0']
    #allocation4 [shape = 's32[2]{0}', space=sflag, size = 0x8, scoped, tag = 'scoped memory for resblock_forward.4']
    #allocation5 [shape = 's32[2]{0}', space=sflag, size = 0x8, scoped, tag = 'scoped memory for resblock_forward.4']
    #allocation6 [shape = 'u8[512]{0}', space=vmem, size = 0x400, scoped, tag = 'input window, operand 1, single buffered']
    #allocation7 [shape = 's32[1]{0}', space=sflag, size = 0x4, scoped, tag = 'scoped memory for resblock_forward.4']
    #allocation8 [shape = 'u8[512]{0}', space=vmem, size = 0x400, scoped, tag = 'input window, operand 2, single buffered']
    #allocation9 [shape = 'u8[294912]{0}', space=vmem, size = 0x48000, scoped, tag = 'input window, operand 3, single buffered']
    #allocation10 [shape = 's32[1]{0}', space=sflag, size = 0x4, scoped, tag = 'scoped memory for resblock_forward.4']
    #allocation11 [shape = 'u8[65536]{0}', space=vmem, size = 0x10000, scoped, tag = 'output window, operand 0']
    #allocation12 [shape = 'u8[2048]{0}', space=vmem, size = 0x800, scoped, tag = 'output window, operand 1']
    #allocation13 [shape = 's32[2]{0}', space=sflag, size = 0x8, scoped, tag = 'scoped memory for resblock_forward.4']
    %11 = vsyncpa [#allocation4], 0
    %s12 = scalar_lea.sflag [#allocation4], 1
    %13 = vsyncpa %s12, 0
    %14 = vsyncpa [#allocation7], 0
    %15 = vsyncpa [#allocation10], 0
    %16 = vsyncpa [#allocation5], 0
    %s17 = scalar_lea.sflag [#allocation5], 1
    %18 = vsyncpa %s17, 0
    %19 = vsyncpa [#allocation13], 0
    %s20 = scalar_lea.sflag [#allocation13], 1
    %21 = vsyncpa %s20, 0
    loop: start=0, step=1, limit=6
    $region2: #{resblock_forward.4} parent=1 // loop_pre_header
      _
    $region3: #{resblock_forward.4} parent=1 // loop_header
      %s23 = sphi 0, %s27
      %p24 = scmp.ge.s32.totalorder %s23, 6
      %s30 = sphi 0, %s42
      %s31 = sphi 0, %s38
      %s32 = sphi 0, %s30
      %s33 = sphi 0, %s31
      %s34 = sphi 0, %s32
      %s35 = sphi 0, %s33
      %s45 = sphi 0, %s47
      %s48 = sphi 0, %s45
      %s49 = sphi 0, %s48
      %s65 = sphi 0, %s49
      %s69 = sphi 0, %s69
      %s71 = sphi 0, %s69
      %s72 = sphi 0, %s71
      %s86 = sphi 0, %s72
      %s90 = sphi 0, %s90
      %s92 = sphi 0, %s90
      %s93 = sphi 0, %s92
      %s107 = sphi 0, %s93
      %s111 = sphi 0, %s111
      %s113 = sphi 0, %s111
      %s114 = sphi 0, %s113
      %s128 = sphi 0, %s114
      %s136 = sphi 0, %s138
      %s139 = sphi 0, %s136
      %s140 = sphi 0, %s139
      %s156 = sphi 0, %s140
      %s164 = sphi 0, %s166
      %s167 = sphi 0, %s164
      %s168 = sphi 0, %s167
      %s184 = sphi 0, %s168
    $region4: #{resblock_forward.4} parent=1 // loop_header_branch
      %26 = sbr.rel (%p24) target = $region8
    $region5: #{resblock_forward.4} parent=1 // loop_body
      %s28 = ssub.s32 %s23, 1
      %s29 = ssub.s32 %s23, 2
      %s36 = sadd.s32 1, %s31
      %p37 = scmp.ge.s32.totalorder %s36, 2
      %s38 = scalar_select %p37, 0, %s36
      %s39 = sadd.s32 1, %s30
      %s40 = scalar_select %p37, %s39, %s30
      %p41 = scmp.ge.s32.totalorder %s40, 2
      %s42 = scalar_select %p41, 0, %s40
      %s43 = ssub.s32 %s30, %s42
      %p44 = scmp.eq.s32.totalorder %s43, 0
      %s46 = sadd.s32 %s45, 1
      %s47 = scalar_select %p44, %s45, %s46
      %p50 = pneg %p44
      %p51 = scmp.eq.s32.totalorder %s23, 3
      %p52 = por %p50, %p51
      %p53 = scmp.ne.s32.totalorder %s45, %s48
      %p54 = scmp.eq.s32.totalorder %s23, 0
      %p55 = por %p53, %p54
      %p56 = scmp.ne.s32.totalorder %s45, %s48
      %p57 = scmp.eq.s32.totalorder %s28, 3
      %p58 = por %p56, %p57
      %p59 = scmp.ne.s32.totalorder %s48, %s49
      %p60 = scmp.eq.s32.totalorder %s28, 0
      %p61 = por %p59, %p60
      %p62 = scmp.ne.s32.totalorder %s48, %s49
      %p63 = scmp.eq.s32.totalorder %s29, 3
      %p64 = por %p62, %p63
      %p66 = scmp.ne.s32.totalorder %s49, %s65
      %p67 = scmp.eq.s32.totalorder %s29, 0
      %p68 = por %p66, %p67
      %s70 = sadd.s32 %s69, 1
      %p73 = scmp.eq.s32.totalorder %s23, 3
      %p74 = scmp.ne.s32.totalorder %s69, %s71
      %p75 = scmp.eq.s32.totalorder %s23, 0
      %p76 = por %p74, %p75
      %p77 = scmp.ne.s32.totalorder %s69, %s71
      %p78 = scmp.eq.s32.totalorder %s28, 3
      %p79 = por %p77, %p78
      %p80 = scmp.ne.s32.totalorder %s71, %s72
      %p81 = scmp.eq.s32.totalorder %s28, 0
      %p82 = por %p80, %p81
      %p83 = scmp.ne.s32.totalorder %s71, %s72
      %p84 = scmp.eq.s32.totalorder %s29, 3
      %p85 = por %p83, %p84
      %p87 = scmp.ne.s32.totalorder %s72, %s86
      %p88 = scmp.eq.s32.totalorder %s29, 0
      %p89 = por %p87, %p88
      %s91 = sadd.s32 %s90, 1
      %p94 = scmp.eq.s32.totalorder %s23, 3
      %p95 = scmp.ne.s32.totalorder %s90, %s92
      %p96 = scmp.eq.s32.totalorder %s23, 0
      %p97 = por %p95, %p96
      %p98 = scmp.ne.s32.totalorder %s90, %s92
      %p99 = scmp.eq.s32.totalorder %s28, 3
      %p100 = por %p98, %p99
      %p101 = scmp.ne.s32.totalorder %s92, %s93
      %p102 = scmp.eq.s32.totalorder %s28, 0
      %p103 = por %p101, %p102
      %p104 = scmp.ne.s32.totalorder %s92, %s93
      %p105 = scmp.eq.s32.totalorder %s29, 3
      %p106 = por %p104, %p105
      %p108 = scmp.ne.s32.totalorder %s93, %s107
      %p109 = scmp.eq.s32.totalorder %s29, 0
      %p110 = por %p108, %p109
      %s112 = sadd.s32 %s111, 1
      %p115 = scmp.eq.s32.totalorder %s23, 3
      %p116 = scmp.ne.s32.totalorder %s111, %s113
      %p117 = scmp.eq.s32.totalorder %s23, 0
      %p118 = por %p116, %p117
      %p119 = scmp.ne.s32.totalorder %s111, %s113
      %p120 = scmp.eq.s32.totalorder %s28, 3
      %p121 = por %p119, %p120
      %p122 = scmp.ne.s32.totalorder %s113, %s114
      %p123 = scmp.eq.s32.totalorder %s28, 0
      %p124 = por %p122, %p123
      %p125 = scmp.ne.s32.totalorder %s113, %s114
      %p126 = scmp.eq.s32.totalorder %s29, 3
      %p127 = por %p125, %p126
      %p129 = scmp.ne.s32.totalorder %s114, %s128
      %p130 = scmp.eq.s32.totalorder %s29, 0
      %p131 = por %p129, %p130
      %s132 = ssub.s32 %s30, %s42
      %s133 = ssub.s32 %s31, %s38
      %s134 = sor.u32 %s132, %s133
      %p135 = scmp.eq.s32.totalorder %s134, 0
      %s137 = sadd.s32 %s136, 1
      %s138 = scalar_select %p135, %s136, %s137
      %p141 = pneg %p135
      %p142 = scmp.eq.s32.totalorder %s23, 3
      %p143 = por %p141, %p142
      %p144 = scmp.ne.s32.totalorder %s136, %s139
      %p145 = scmp.eq.s32.totalorder %s23, 0
      %p146 = por %p144, %p145
      %p147 = scmp.ne.s32.totalorder %s136, %s139
      %p148 = scmp.eq.s32.totalorder %s28, 3
      %p149 = por %p147, %p148
      %p150 = scmp.ne.s32.totalorder %s139, %s140
      %p151 = scmp.eq.s32.totalorder %s28, 0
      %p152 = por %p150, %p151
      %p153 = scmp.ne.s32.totalorder %s139, %s140
      %p154 = scmp.eq.s32.totalorder %s29, 3
      %p155 = por %p153, %p154
      %p157 = scmp.ne.s32.totalorder %s140, %s156
      %p158 = scmp.eq.s32.totalorder %s29, 0
      %p159 = por %p157, %p158
      %s160 = ssub.s32 %s30, %s42
      %s161 = ssub.s32 %s31, %s38
      %s162 = sor.u32 %s160, %s161
      %p163 = scmp.eq.s32.totalorder %s162, 0
      %s165 = sadd.s32 %s164, 1
      %s166 = scalar_select %p163, %s164, %s165
      %p169 = pneg %p163
      %p170 = scmp.eq.s32.totalorder %s23, 3
      %p171 = por %p169, %p170
      %p172 = scmp.ne.s32.totalorder %s164, %s167
      %p173 = scmp.eq.s32.totalorder %s23, 0
      %p174 = por %p172, %p173
      %p175 = scmp.ne.s32.totalorder %s164, %s167
      %p176 = scmp.eq.s32.totalorder %s28, 3
      %p177 = por %p175, %p176
      %p178 = scmp.ne.s32.totalorder %s167, %s168
      %p179 = scmp.eq.s32.totalorder %s28, 0
      %p180 = por %p178, %p179
      %p181 = scmp.ne.s32.totalorder %s167, %s168
      %p182 = scmp.eq.s32.totalorder %s29, 3
      %p183 = por %p181, %p182
      %p185 = scmp.ne.s32.totalorder %s168, %s184
      %p186 = scmp.eq.s32.totalorder %s29, 0
      %p187 = por %p185, %p186
      %p188 = scmp.le.s32.totalorder 1, %s23
      %p189 = scmp.lt.s32.totalorder %s23, 5
      %p190 = pnand %p188, %p189
      %p191 = pneg %p190
      // Predicated region
      $region9: #{resblock_forward.4} parent=5 // pred_check
        _
      $region10: #{resblock_forward.4} parent=5 // pred_check_branch
        %193 = sbr.rel (%p190) target = $region12
      $region11: #{resblock_forward.4} parent=5 // pred_region
        %s194 = ssub.s32 %s23, 1
        // Predicated region
        $region13: #{resblock_forward.4} parent=11 // pred_check
          %p195 = pneg %p82
        $region14: #{resblock_forward.4} parent=11 // pred_check_branch
          %197 = sbr.rel (%p195) target = $region16
        $region15: #{resblock_forward.4} parent=11 // pred_region
          %s199 = ssub.s32 16, 16
          %200 = vsyncadd [#allocation7], %s199
          %s202 = sshll.u32 [#allocation6], 4
          %s203 = int_to_ptr.vmem [resolvable:$true] %s202
          %205 = dma.hbm_to_vmem [thread:$0]  %s1, 16, %s203, [#allocation7]
        $region16: #{resblock_forward.4} parent=11 // pred_fallthru
          _
        // Predicated region
        $region17: #{resblock_forward.4} parent=11 // pred_check
          %p206 = pneg %p103
        $region18: #{resblock_forward.4} parent=11 // pred_check_branch
          %208 = sbr.rel (%p206) target = $region20
        $region19: #{resblock_forward.4} parent=11 // pred_region
          %s210 = ssub.s32 16, 16
          %211 = vsyncadd [#allocation7], %s210
          %s213 = sshll.u32 [#allocation8], 4
          %s214 = int_to_ptr.vmem [resolvable:$true] %s213
          %216 = dma.hbm_to_vmem [thread:$0]  %s2, 16, %s214, [#allocation7]
        $region20: #{resblock_forward.4} parent=11 // pred_fallthru
          _
        // Predicated region
        $region21: #{resblock_forward.4} parent=11 // pred_check
          %p217 = pneg %p124
        $region22: #{resblock_forward.4} parent=11 // pred_check_branch
          %219 = sbr.rel (%p217) target = $region24
        $region23: #{resblock_forward.4} parent=11 // pred_region
          %s221 = ssub.s32 9216, 9216
          %222 = vsyncadd [#allocation10], %s221
          %s223 = sshll.u32 [#allocation9], 4
          %s224 = int_to_ptr.vmem [resolvable:$true] %s223
          %229 = dma.hbm_to_vmem [thread:$0]  %s3, 9216, %s224, [#allocation10], 64, 64, 4
        $region24: #{resblock_forward.4} parent=11 // pred_fallthru
          _
      $region12: #{resblock_forward.4} parent=5 // pred_fallthru
        _
      %p230 = scmp.lt.s32.totalorder %s23, 4
      // Predicated region
      $region25: #{resblock_forward.4} parent=5 // pred_check
        %p231 = pneg %p230
      $region26: #{resblock_forward.4} parent=5 // pred_check_branch
        %233 = sbr.rel (%p231) target = $region28
      $region27: #{resblock_forward.4} parent=5 // pred_region
        // Predicated region
        $region29: #{resblock_forward.4} parent=27 // pred_check
          %p234 = pneg %p55
        $region30: #{resblock_forward.4} parent=27 // pred_check_branch
          %236 = sbr.rel (%p234) target = $region32
        $region31: #{resblock_forward.4} parent=27 // pred_region
          %s237 = sand.u32 %s45, 1
          %s238 = scalar_lea.sflag [#allocation4], %s237
          %s239 = sand.u32 %s45, 1
          %s240 = smul.addr %s239, 128
          %s241 = scalar_lea.vmem [#allocation3], %s240
          %s243 = ssub.s32 2048, 2048
          %244 = vsyncadd %s238, %s243
          %s245 = smul.addr %s30, 32
          %s246 = smul.addr %s245, 64
          %s247 = scalar_lea.hbm %s0, %s246
          %s248 = sshll.u32 %s241, 4
          %s249 = int_to_ptr.vmem [resolvable:$true] %s248
          %254 = dma.hbm_to_vmem [thread:$0]  %s247, 2048, %s249, %s238, 64, 64, 4
        $region32: #{resblock_forward.4} parent=27 // pred_fallthru
          _
      $region28: #{resblock_forward.4} parent=5 // pred_fallthru
        _
      %p255 = scmp.le.s32.totalorder 1, %s23
      %p256 = scmp.lt.s32.totalorder %s23, 5
      %p257 = pnand %p255, %p256
      %p258 = pneg %p257
      // Predicated region
      $region33: #{resblock_forward.4} parent=5 // pred_check
        _
      $region34: #{resblock_forward.4} parent=5 // pred_check_branch
        %260 = sbr.rel (%p257) target = $region36
      $region35: #{resblock_forward.4} parent=5 // pred_region
        %s261 = ssub.s32 %s23, 1
        %s262 = sand.u32 %s48, 1
        %s263 = scalar_lea.sflag [#allocation4], %s262
        %s264 = sand.u32 %s48, 1
        %s265 = smul.addr %s264, 128
        %s266 = scalar_lea.vmem [#allocation3], %s265
        // Predicated region
        $region37: #{resblock_forward.4} parent=35 // pred_check
          %p267 = pneg %p61
        $region38: #{resblock_forward.4} parent=35 // pred_check_branch
          %269 = sbr.rel (%p267) target = $region40
        $region39: #{resblock_forward.4} parent=35 // pred_region
          %270 = dma.done %s263, 2048
        $region40: #{resblock_forward.4} parent=35 // pred_fallthru
          _
        // Predicated region
        $region41: #{resblock_forward.4} parent=35 // pred_check
          %p271 = pneg %p82
        $region42: #{resblock_forward.4} parent=35 // pred_check_branch
          %273 = sbr.rel (%p271) target = $region44
        $region43: #{resblock_forward.4} parent=35 // pred_region
          %274 = dma.done [#allocation7], 16
        $region44: #{resblock_forward.4} parent=35 // pred_fallthru
          _
        // Predicated region
        $region45: #{resblock_forward.4} parent=35 // pred_check
          %p275 = pneg %p103
        $region46: #{resblock_forward.4} parent=35 // pred_check_branch
          %277 = sbr.rel (%p275) target = $region48
        $region47: #{resblock_forward.4} parent=35 // pred_region
          %278 = dma.done [#allocation7], 16
        $region48: #{resblock_forward.4} parent=35 // pred_fallthru
          _
        // Predicated region
        $region49: #{resblock_forward.4} parent=35 // pred_check
          %p279 = pneg %p124
        $region50: #{resblock_forward.4} parent=35 // pred_check_branch
          %281 = sbr.rel (%p279) target = $region52
        $region51: #{resblock_forward.4} parent=35 // pred_region
          %282 = dma.done [#allocation10], 9216
        $region52: #{resblock_forward.4} parent=35 // pred_fallthru
          _
        %s283 = sand.u32 %s48, 1
        %s284 = scalar_lea.sflag [#allocation4], %s283
        %s285 = sand.u32 %s48, 1
        %s286 = smul.addr %s285, 128
        %s287 = scalar_lea.vmem [#allocation3], %s286
        %p288 = pneg %p61
        %p289 = pneg %p58
        %p290 = pneg %p82
        %p291 = pneg %p79
        %p292 = pneg %p103
        %p293 = pneg %p100
        %p294 = pneg %p124
        %p295 = pneg %p121
        %p296 = pneg %p152
        %p297 = pneg %p149
        %s298 = sand.u32 %s139, 1
        %s299 = scalar_lea.sflag [#allocation5], %s298
        %s300 = sand.u32 %s139, 1
        %s301 = smul.addr %s300, 64
        %s302 = scalar_lea.vmem [#allocation11], %s301
        %p303 = pneg %p180
        %p304 = pneg %p177
        %s305 = sand.u32 %s167, 1
        %s306 = scalar_lea.sflag [#allocation13], %s305
        %s307 = sand.u32 %s167, 1
        %s308 = smul.addr %s307, 2
        %s309 = scalar_lea.vmem [#allocation12], %s308
        %s310 = smul.u32 8, %s33
        %s312 = smul.u32 %s33, 8
        %v313 = vld [vmem:[#allocation6] sm:$0x1]
        %v314 = vld [vmem:[#allocation8] sm:$0x1]
        %p315 = scmp.gt.s32.totalorder %s312, 0
        %s316 = ssub.s32 %s312, 1
        %p317 = scmp.gt.s32.totalorder %s316, 0
        %s318 = scalar_select %p317, %s316, 0
        %s319 = smul.u32 %s318, 2
        %s320 = smul.addr %s319, 4
        %s321 = scalar_lea.vmem %s266, %s320 [#allocation3]
        %v322 = vld [vmem:[%s321] sm:$0xf]
        %v323 = vld [vmem:[%s321 + $0x4] sm:$0xf]
        %v324 = vunpack.c.l.bf16 %v322
        %v325 = vunpack.c.l.bf16 %v323
        %v327 = vlaneseq
        %v328 = vshrl.u32 %v327, 7
        %v329 = vsub.s32 0, %v328
        %v330 = vrot.slane %v313, %v329
        %v332 = vmul.f32 %v324, %v330
        %v333 = vmul.f32 %v325, %v330
        %v335 = vlaneseq
        %v336 = vshrl.u32 %v335, 7
        %v337 = vsub.s32 0, %v336
        %v338 = vrot.slane %v314, %v337
        %v340 = vadd.f32 %v332, %v338
        %v341 = vadd.f32 %v333, %v338
        %v342 = vmax.f32 %v340, 0.0
        %v343 = vmax.f32 %v341, 0.0
        %s344 = scalar_select %p315, 1, 0
        %v345 = vstv %s344
        %vm346 = vcmp.eq.s32.totalorder %v345, 1
        %v347 = vsel %vm346, %v342, 0.0
        %v348 = vsel %vm346, %v343, 0.0
        %s349 = sadd.s32 %s312, 8
        %p350 = scmp.lt.s32.totalorder %s349, 16
        %p351 = scmp.lt.s32.totalorder %s349, 15
        %s352 = scalar_select %p351, %s349, 15
        %s353 = smul.u32 %s352, 2
        %s354 = smul.addr %s353, 4
        %s355 = scalar_lea.vmem %s266, %s354 [#allocation3]
        %v356 = vld [vmem:[%s355] sm:$0xf]
        %v357 = vld [vmem:[%s355 + $0x4] sm:$0xf]
        %v358 = vunpack.c.l.bf16 %v356
        %v359 = vunpack.c.l.bf16 %v357
        %v360 = vmul.f32 %v358, %v330
        %v361 = vmul.f32 %v359, %v330
        %v362 = vadd.f32 %v360, %v338
        %v363 = vadd.f32 %v361, %v338
        %v364 = vmax.f32 %v362, 0.0
        %v365 = vmax.f32 %v363, 0.0
        %s366 = scalar_select %p350, 1, 0
        %v367 = vstv %s366
        %vm368 = vcmp.eq.s32.totalorder %v367, 1
        %v369 = vsel %vm368, %v364, 0.0
        %v370 = vsel %vm368, %v365, 0.0
        %s371 = smul.u32 %s312, 2
        %s372 = smul.addr %s371, 4
        %s373 = scalar_lea.vmem %s266, %s372 [#allocation3]
        %v374 = vld [vmem:[%s373] sm:$0xf]
        %v375 = vld [vmem:[%s373 + $0x4] sm:$0xf]
        %v376 = vld [vmem:[%s373 + $0x8] sm:$0xf]
        %v377 = vld [vmem:[%s373 + $0xc] sm:$0xf]
        %v378 = vld [vmem:[%s373 + $0x10] sm:$0xf]
        %v379 = vld [vmem:[%s373 + $0x14] sm:$0xf]
        %v380 = vld [vmem:[%s373 + $0x18] sm:$0xf]
        %v381 = vld [vmem:[%s373 + $0x1c] sm:$0xf]
        %v382 = vld [vmem:[%s373 + $0x20] sm:$0xf]
        %v383 = vld [vmem:[%s373 + $0x24] sm:$0xf]
        %v384 = vld [vmem:[%s373 + $0x28] sm:$0xf]
        %v385 = vld [vmem:[%s373 + $0x2c] sm:$0xf]
        %v386 = vld [vmem:[%s373 + $0x30] sm:$0xf]
        %v387 = vld [vmem:[%s373 + $0x34] sm:$0xf]
        %v388 = vld [vmem:[%s373 + $0x38] sm:$0xf]
        %v389 = vld [vmem:[%s373 + $0x3c] sm:$0xf]
        %v390 = vunpack.c.l.bf16 %v374
        %v391 = vunpack.c.l.bf16 %v375
        %v392 = vunpack.c.l.bf16 %v376
        %v393 = vunpack.c.l.bf16 %v377
        %v394 = vunpack.c.l.bf16 %v378
        %v395 = vunpack.c.l.bf16 %v379
        %v396 = vunpack.c.l.bf16 %v380
        %v397 = vunpack.c.l.bf16 %v381
        %v398 = vunpack.c.l.bf16 %v382
        %v399 = vunpack.c.l.bf16 %v383
        %v400 = vunpack.c.l.bf16 %v384
        %v401 = vunpack.c.l.bf16 %v385
        %v402 = vunpack.c.l.bf16 %v386
        %v403 = vunpack.c.l.bf16 %v387
        %v404 = vunpack.c.l.bf16 %v388
        %v405 = vunpack.c.l.bf16 %v389
        %v406 = vmul.f32 %v390, %v330
        %v407 = vmul.f32 %v391, %v330
        %v408 = vmul.f32 %v392, %v330
        %v409 = vmul.f32 %v393, %v330
        %v410 = vmul.f32 %v394, %v330
        %v411 = vmul.f32 %v395, %v330
        %v412 = vmul.f32 %v396, %v330
        %v413 = vmul.f32 %v397, %v330
        %v414 = vmul.f32 %v398, %v330
        %v415 = vmul.f32 %v399, %v330
        %v416 = vmul.f32 %v400, %v330
        %v417 = vmul.f32 %v401, %v330
        %v418 = vmul.f32 %v402, %v330
        %v419 = vmul.f32 %v403, %v330
        %v420 = vmul.f32 %v404, %v330
        %v421 = vmul.f32 %v405, %v330
        %v422 = vadd.f32 %v406, %v338
        %v423 = vadd.f32 %v407, %v338
        %v424 = vadd.f32 %v408, %v338
        %v425 = vadd.f32 %v409, %v338
        %v426 = vadd.f32 %v410, %v338
        %v427 = vadd.f32 %v411, %v338
        %v428 = vadd.f32 %v412, %v338
        %v429 = vadd.f32 %v413, %v338
        %v430 = vadd.f32 %v414, %v338
        %v431 = vadd.f32 %v415, %v338
        %v432 = vadd.f32 %v416, %v338
        %v433 = vadd.f32 %v417, %v338
        %v434 = vadd.f32 %v418, %v338
        %v435 = vadd.f32 %v419, %v338
        %v436 = vadd.f32 %v420, %v338
        %v437 = vadd.f32 %v421, %v338
        %v438 = vmax.f32 %v422, 0.0
        %v439 = vmax.f32 %v423, 0.0
        %v440 = vmax.f32 %v424, 0.0
        %v441 = vmax.f32 %v425, 0.0
        %v442 = vmax.f32 %v426, 0.0
        %v443 = vmax.f32 %v427, 0.0
        %v444 = vmax.f32 %v428, 0.0
        %v445 = vmax.f32 %v429, 0.0
        %v446 = vmax.f32 %v430, 0.0
        %v447 = vmax.f32 %v431, 0.0
        %v448 = vmax.f32 %v432, 0.0
        %v449 = vmax.f32 %v433, 0.0
        %v450 = vmax.f32 %v434, 0.0
        %v451 = vmax.f32 %v435, 0.0
        %v452 = vmax.f32 %v436, 0.0
        %v453 = vmax.f32 %v437, 0.0
        %v454 = vlaneseq
        %v455 = vshrl.u32 %v454, 7
        %v456 = vadd.s32 %v455, 8
        %vm457 = vcmp.ge.s32.totalorder %v455, 1
        %vm458 = vcmp.ge.s32.totalorder %v456, 1
        %vm459 = vcmp.le.s32.totalorder %v455, 14
        %vm460 = vcmp.le.s32.totalorder %v456, 14
        %v461 = vrot.slane %v347, 7
        %v462 = vrot.slane %v438, 7
        %v463 = vrot.slane %v440, 7
        %v464 = vrot.slane %v442, 7
        %v465 = vrot.slane %v444, 7
        %v466 = vrot.slane %v446, 7
        %v467 = vrot.slane %v448, 7
        %v468 = vrot.slane %v450, 7
        %v469 = vrot.slane %v452, 7
        %v470 = vrot.slane %v369, 7
        %v471 = vrot.slane %v348, 7
        %v472 = vrot.slane %v439, 7
        %v473 = vrot.slane %v441, 7
        %v474 = vrot.slane %v443, 7
        %v475 = vrot.slane %v445, 7
        %v476 = vrot.slane %v447, 7
        %v477 = vrot.slane %v449, 7
        %v478 = vrot.slane %v451, 7
        %v479 = vrot.slane %v453, 7
        %v480 = vrot.slane %v370, 7
        %vm481 = vcmp.lt.s32.totalorder %v455, 1
        %v482 = vsel %vm481, %v461, %v471
        %v483 = vsel %vm481, %v462, %v472
        %v484 = vsel %vm481, %v463, %v473
        %v485 = vsel %vm481, %v464, %v474
        %v486 = vsel %vm481, %v465, %v475
        %v487 = vsel %vm481, %v466, %v476
        %v488 = vsel %vm481, %v467, %v477
        %v489 = vsel %vm481, %v468, %v478
        %v490 = vsel %vm481, %v469, %v479
        %v491 = vsel %vm481, %v470, %v480
        %v492 = vsel %vm481, %v471, %v461
        %v493 = vsel %vm481, %v472, %v462
        %v494 = vsel %vm481, %v473, %v463
        %v495 = vsel %vm481, %v474, %v464
        %v496 = vsel %vm481, %v475, %v465
        %v497 = vsel %vm481, %v476, %v466
        %v498 = vsel %vm481, %v477, %v467
        %v499 = vsel %vm481, %v478, %v468
        %v500 = vsel %vm481, %v479, %v469
        %v501 = vsel %vm481, %v480, %v470
        %v502 = vsel %vm457, 1, 0
        %v503 = vsel %vm458, 1, 0
        %vm504 = vcmp.eq.s32.totalorder %v502, 1
        %vm505 = vcmp.eq.s32.totalorder %v503, 1
        %v506 = vsel %vm504, %v492, 0.0
        %v507 = vsel %vm505, %v482, 0.0
        %v508 = vsel %vm504, %v493, 0.0
        %v509 = vsel %vm505, %v483, 0.0
        %v510 = vsel %vm504, %v494, 0.0
        %v511 = vsel %vm505, %v484, 0.0
        %v512 = vsel %vm504, %v495, 0.0
        %v513 = vsel %vm505, %v485, 0.0
        %v514 = vsel %vm504, %v496, 0.0
        %v515 = vsel %vm505, %v486, 0.0
        %v516 = vsel %vm504, %v497, 0.0
        %v517 = vsel %vm505, %v487, 0.0
        %v518 = vsel %vm504, %v498, 0.0
        %v519 = vsel %vm505, %v488, 0.0
        %v520 = vsel %vm504, %v499, 0.0
        %v521 = vsel %vm505, %v489, 0.0
        %v522 = vsel %vm504, %v500, 0.0
        %v523 = vsel %vm505, %v490, 0.0
        %v524 = vsel %vm504, %v501, 0.0
        %v525 = vsel %vm505, %v491, 0.0
        %v526 = vrot.slane %v347, 1
        %v527 = vrot.slane %v438, 1
        %v528 = vrot.slane %v440, 1
        %v529 = vrot.slane %v442, 1
        %v530 = vrot.slane %v444, 1
        %v531 = vrot.slane %v446, 1
        %v532 = vrot.slane %v448, 1
        %v533 = vrot.slane %v450, 1
        %v534 = vrot.slane %v452, 1
        %v535 = vrot.slane %v369, 1
        %v536 = vrot.slane %v348, 1
        %v537 = vrot.slane %v439, 1
        %v538 = vrot.slane %v441, 1
        %v539 = vrot.slane %v443, 1
        %v540 = vrot.slane %v445, 1
        %v541 = vrot.slane %v447, 1
        %v542 = vrot.slane %v449, 1
        %v543 = vrot.slane %v451, 1
        %v544 = vrot.slane %v453, 1
        %v545 = vrot.slane %v370, 1
        %vm546 = vcmp.lt.s32.totalorder %v455, 7
        %v547 = vsel %vm546, %v526, %v536
        %v548 = vsel %vm546, %v527, %v537
        %v549 = vsel %vm546, %v528, %v538
        %v550 = vsel %vm546, %v529, %v539
        %v551 = vsel %vm546, %v530, %v540
        %v552 = vsel %vm546, %v531, %v541
        %v553 = vsel %vm546, %v532, %v542
        %v554 = vsel %vm546, %v533, %v543
        %v555 = vsel %vm546, %v534, %v544
        %v556 = vsel %vm546, %v535, %v545
        %v557 = vsel %vm546, %v536, %v526
        %v558 = vsel %vm546, %v537, %v527
        %v559 = vsel %vm546, %v538, %v528
        %v560 = vsel %vm546, %v539, %v529
        %v561 = vsel %vm546, %v540, %v530
        %v562 = vsel %vm546, %v541, %v531
        %v563 = vsel %vm546, %v542, %v532
        %v564 = vsel %vm546, %v543, %v533
        %v565 = vsel %vm546, %v544, %v534
        %v566 = vsel %vm546, %v545, %v535
        %v567 = vsel %vm459, 1, 0
        %v568 = vsel %vm460, 1, 0
        %vm569 = vcmp.eq.s32.totalorder %v567, 1
        %vm570 = vcmp.eq.s32.totalorder %v568, 1
        %v571 = vsel %vm569, %v547, 0.0
        %v572 = vsel %vm570, %v557, 0.0
        %v573 = vsel %vm569, %v548, 0.0
        %v574 = vsel %vm570, %v558, 0.0
        %v575 = vsel %vm569, %v549, 0.0
        %v576 = vsel %vm570, %v559, 0.0
        %v577 = vsel %vm569, %v550, 0.0
        %v578 = vsel %vm570, %v560, 0.0
        %v579 = vsel %vm569, %v551, 0.0
        %v580 = vsel %vm570, %v561, 0.0
        %v581 = vsel %vm569, %v552, 0.0
        %v582 = vsel %vm570, %v562, 0.0
        %v583 = vsel %vm569, %v553, 0.0
        %v584 = vsel %vm570, %v563, 0.0
        %v585 = vsel %vm569, %v554, 0.0
        %v586 = vsel %vm570, %v564, 0.0
        %v587 = vsel %vm569, %v555, 0.0
        %v588 = vsel %vm570, %v565, 0.0
        %v589 = vsel %vm569, %v556, 0.0
        %v590 = vsel %vm570, %v566, 0.0
        %v591 = vpack.c.bf16 %v507, %v506
        %v592 = vpack.c.bf16 %v348, %v347
        %v593 = vpack.c.bf16 %v572, %v571
        %v594 = vpack.c.bf16 %v509, %v508
        %v595 = vpack.c.bf16 %v439, %v438
        %v596 = vpack.c.bf16 %v574, %v573
        %v597 = vpack.c.bf16 %v511, %v510
        %v598 = vpack.c.bf16 %v441, %v440
        %v599 = vpack.c.bf16 %v576, %v575
        %v600 = vpack.c.bf16 %v513, %v512
        %v601 = vpack.c.bf16 %v443, %v442
        %v602 = vpack.c.bf16 %v578, %v577
        %v603 = vpack.c.bf16 %v515, %v514
        %v604 = vpack.c.bf16 %v445, %v444
        %v605 = vpack.c.bf16 %v580, %v579
        %v606 = vpack.c.bf16 %v517, %v516
        %v607 = vpack.c.bf16 %v447, %v446
        %v608 = vpack.c.bf16 %v582, %v581
        %v609 = vpack.c.bf16 %v519, %v518
        %v610 = vpack.c.bf16 %v449, %v448
        %v611 = vpack.c.bf16 %v584, %v583
        %v612 = vpack.c.bf16 %v521, %v520
        %v613 = vpack.c.bf16 %v451, %v450
        %v614 = vpack.c.bf16 %v586, %v585
        %v615 = vpack.c.bf16 %v523, %v522
        %v616 = vpack.c.bf16 %v453, %v452
        %v617 = vpack.c.bf16 %v588, %v587
        %v618 = vpack.c.bf16 %v525, %v524
        %v619 = vpack.c.bf16 %v370, %v369
        %v620 = vpack.c.bf16 %v590, %v589
        %621 = vst [vmem:[#allocation2] sm:$0xff] %v591
        %622 = vst [vmem:[#allocation2 + $0x8] sm:$0xff] %v592
        %623 = vst [vmem:[#allocation2 + $0x10] sm:$0xff] %v593
        %624 = vst [vmem:[#allocation2 + $0x18] sm:$0xff] %v594
        %625 = vst [vmem:[#allocation2 + $0x20] sm:$0xff] %v595
        %626 = vst [vmem:[#allocation2 + $0x28] sm:$0xff] %v596
        %627 = vst [vmem:[#allocation2 + $0x30] sm:$0xff] %v597
        %628 = vst [vmem:[#allocation2 + $0x38] sm:$0xff] %v598
        %629 = vst [vmem:[#allocation2 + $0x40] sm:$0xff] %v599
        %630 = vst [vmem:[#allocation2 + $0x48] sm:$0xff] %v600
        %631 = vst [vmem:[#allocation2 + $0x50] sm:$0xff] %v601
        %632 = vst [vmem:[#allocation2 + $0x58] sm:$0xff] %v602
        %633 = vst [vmem:[#allocation2 + $0x60] sm:$0xff] %v603
        %634 = vst [vmem:[#allocation2 + $0x68] sm:$0xff] %v604
        %635 = vst [vmem:[#allocation2 + $0x70] sm:$0xff] %v605
        %636 = vst [vmem:[#allocation2 + $0x78] sm:$0xff] %v606
        %637 = vst [vmem:[#allocation2 + $0x80] sm:$0xff] %v607
        %638 = vst [vmem:[#allocation2 + $0x88] sm:$0xff] %v608
        %639 = vst [vmem:[#allocation2 + $0x90] sm:$0xff] %v609
        %640 = vst [vmem:[#allocation2 + $0x98] sm:$0xff] %v610
        %641 = vst [vmem:[#allocation2 + $0xa0] sm:$0xff] %v611
        %642 = vst [vmem:[#allocation2 + $0xa8] sm:$0xff] %v612
        %643 = vst [vmem:[#allocation2 + $0xb0] sm:$0xff] %v613
        %644 = vst [vmem:[#allocation2 + $0xb8] sm:$0xff] %v614
        %645 = vst [vmem:[#allocation2 + $0xc0] sm:$0xff] %v615
        %646 = vst [vmem:[#allocation2 + $0xc8] sm:$0xff] %v616
        %647 = vst [vmem:[#allocation2 + $0xd0] sm:$0xff] %v617
        %648 = vst [vmem:[#allocation2 + $0xd8] sm:$0xff] %v618
        %649 = vst [vmem:[#allocation2 + $0xe0] sm:$0xff] %v619
        %650 = vst [vmem:[#allocation2 + $0xe8] sm:$0xff] %v620
        %v651 = vld [vmem:[#allocation2] sm:$0xff]
        %v652 = vld [vmem:[#allocation2 + $0x8] sm:$0xff]
        %v653 = vld [vmem:[#allocation2 + $0x10] sm:$0xff]
        %v654 = vld [vmem:[#allocation2 + $0x18] sm:$0xff]
        %v655 = vld [vmem:[#allocation2 + $0x20] sm:$0xff]
        %v656 = vld [vmem:[#allocation2 + $0x28] sm:$0xff]
        %v657 = vld [vmem:[#allocation2 + $0x30] sm:$0xff]
        %v658 = vld [vmem:[#allocation2 + $0x38] sm:$0xff]
        %v659 = vld [vmem:[#allocation2 + $0x40] sm:$0xff]
        %v660 = vld [vmem:[#allocation2 + $0x48] sm:$0xff]
        %v661 = vld [vmem:[#allocation2 + $0x50] sm:$0xff]
        %v662 = vld [vmem:[#allocation2 + $0x58] sm:$0xff]
        %v663 = vld [vmem:[#allocation2 + $0x60] sm:$0xff]
        %v664 = vld [vmem:[#allocation2 + $0x68] sm:$0xff]
        %v665 = vld [vmem:[#allocation2 + $0x70] sm:$0xff]
        %v666 = vld [vmem:[#allocation2 + $0x78] sm:$0xff]
        %v667 = vld [vmem:[#allocation2 + $0x80] sm:$0xff]
        %v668 = vld [vmem:[#allocation2 + $0x88] sm:$0xff]
        %v669 = vld [vmem:[#allocation2 + $0x90] sm:$0xff]
        %v670 = vld [vmem:[#allocation2 + $0x98] sm:$0xff]
        %v671 = vld [vmem:[#allocation2 + $0xa0] sm:$0xff]
        %v672 = vld [vmem:[#allocation2 + $0xa8] sm:$0xff]
        %v673 = vld [vmem:[#allocation2 + $0xb0] sm:$0xff]
        %v674 = vld [vmem:[#allocation2 + $0xb8] sm:$0xff]
        %v675 = vld [vmem:[#allocation9] sm:$0xf]
        %v676 = vld [vmem:[#allocation9 + $0x4] sm:$0xf]
        %v677 = vld [vmem:[#allocation9 + $0x8] sm:$0xf]
        %v678 = vld [vmem:[#allocation9 + $0xc] sm:$0xf]
        %v679 = vld [vmem:[#allocation9 + $0x10] sm:$0xf]
        %v680 = vld [vmem:[#allocation9 + $0x14] sm:$0xf]
        %v681 = vld [vmem:[#allocation9 + $0x18] sm:$0xf]
        %v682 = vld [vmem:[#allocation9 + $0x1c] sm:$0xf]
        %v683 = vld [vmem:[#allocation9 + $0x20] sm:$0xf]
        %v684 = vld [vmem:[#allocation9 + $0x24] sm:$0xf]
        %v685 = vld [vmem:[#allocation9 + $0x28] sm:$0xf]
        %v686 = vld [vmem:[#allocation9 + $0x2c] sm:$0xf]
        %v687 = vld [vmem:[#allocation9 + $0x30] sm:$0xf]
        %v688 = vld [vmem:[#allocation9 + $0x34] sm:$0xf]
        %v689 = vld [vmem:[#allocation9 + $0x38] sm:$0xf]
        %v690 = vld [vmem:[#allocation9 + $0x3c] sm:$0xf]
        %v691 = vld [vmem:[#allocation9 + $0x40] sm:$0xf]
        %v692 = vld [vmem:[#allocation9 + $0x44] sm:$0xf]
        %v693 = vld [vmem:[#allocation9 + $0x48] sm:$0xf]
        %v694 = vld [vmem:[#allocation9 + $0x4c] sm:$0xf]
        %v695 = vld [vmem:[#allocation9 + $0x50] sm:$0xf]
        %v696 = vld [vmem:[#allocation9 + $0x54] sm:$0xf]
        %v697 = vld [vmem:[#allocation9 + $0x58] sm:$0xf]
        %v698 = vld [vmem:[#allocation9 + $0x5c] sm:$0xf]
        %v699 = vld [vmem:[#allocation9 + $0x60] sm:$0xf]
        %v700 = vld [vmem:[#allocation9 + $0x64] sm:$0xf]
        %v701 = vld [vmem:[#allocation9 + $0x68] sm:$0xf]
        %v702 = vld [vmem:[#allocation9 + $0x6c] sm:$0xf]
        %v703 = vld [vmem:[#allocation9 + $0x70] sm:$0xf]
        %v704 = vld [vmem:[#allocation9 + $0x74] sm:$0xf]
        %v705 = vld [vmem:[#allocation9 + $0x78] sm:$0xf]
        %v706 = vld [vmem:[#allocation9 + $0x7c] sm:$0xf]
        %v707 = vld [vmem:[#allocation9 + $0x80] sm:$0xf]
        %v708 = vld [vmem:[#allocation9 + $0x84] sm:$0xf]
        %v709 = vld [vmem:[#allocation9 + $0x88] sm:$0xf]
        %v710 = vld [vmem:[#allocation9 + $0x8c] sm:$0xf]
        %v711 = vld [vmem:[#allocation9 + $0x90] sm:$0xf]
        %v712 = vld [vmem:[#allocation9 + $0x94] sm:$0xf]
        %v713 = vld [vmem:[#allocation9 + $0x98] sm:$0xf]
        %v714 = vld [vmem:[#allocation9 + $0x9c] sm:$0xf]
        %v715 = vld [vmem:[#allocation9 + $0xa0] sm:$0xf]
        %v716 = vld [vmem:[#allocation9 + $0xa4] sm:$0xf]
        %v717 = vld [vmem:[#allocation9 + $0xa8] sm:$0xf]
        %v718 = vld [vmem:[#allocation9 + $0xac] sm:$0xf]
        %v719 = vld [vmem:[#allocation9 + $0xb0] sm:$0xf]
        %v720 = vld [vmem:[#allocation9 + $0xb4] sm:$0xf]
        %v721 = vld [vmem:[#allocation9 + $0xb8] sm:$0xf]
        %v722 = vld [vmem:[#allocation9 + $0xbc] sm:$0xf]
        %s723 = scalar_lea.vmem [#allocation2], 24
        %v724 = vld [vmem:[%s723] sm:$0xff]
        %v725 = vld [vmem:[%s723 + $0x8] sm:$0xff]
        %v726 = vld [vmem:[%s723 + $0x10] sm:$0xff]
        %v727 = vld [vmem:[%s723 + $0x18] sm:$0xff]
        %v728 = vld [vmem:[%s723 + $0x20] sm:$0xff]
        %v729 = vld [vmem:[%s723 + $0x28] sm:$0xff]
        %v730 = vld [vmem:[%s723 + $0x30] sm:$0xff]
        %v731 = vld [vmem:[%s723 + $0x38] sm:$0xff]
        %v732 = vld [vmem:[%s723 + $0x40] sm:$0xff]
        %v733 = vld [vmem:[%s723 + $0x48] sm:$0xff]
        %v734 = vld [vmem:[%s723 + $0x50] sm:$0xff]
        %v735 = vld [vmem:[%s723 + $0x58] sm:$0xff]
        %v736 = vld [vmem:[%s723 + $0x60] sm:$0xff]
        %v737 = vld [vmem:[%s723 + $0x68] sm:$0xff]
        %v738 = vld [vmem:[%s723 + $0x70] sm:$0xff]
        %v739 = vld [vmem:[%s723 + $0x78] sm:$0xff]
        %v740 = vld [vmem:[%s723 + $0x80] sm:$0xff]
        %v741 = vld [vmem:[%s723 + $0x88] sm:$0xff]
        %v742 = vld [vmem:[%s723 + $0x90] sm:$0xff]
        %v743 = vld [vmem:[%s723 + $0x98] sm:$0xff]
        %v744 = vld [vmem:[%s723 + $0xa0] sm:$0xff]
        %v745 = vld [vmem:[%s723 + $0xa8] sm:$0xff]
        %v746 = vld [vmem:[%s723 + $0xb0] sm:$0xff]
        %v747 = vld [vmem:[%s723 + $0xb8] sm:$0xff]
        %s748 = scalar_lea.vmem [#allocation9], 192
        %v749 = vld [vmem:[%s748] sm:$0xf]
        %v750 = vld [vmem:[%s748 + $0x4] sm:$0xf]
        %v751 = vld [vmem:[%s748 + $0x8] sm:$0xf]
        %v752 = vld [vmem:[%s748 + $0xc] sm:$0xf]
        %v753 = vld [vmem:[%s748 + $0x10] sm:$0xf]
        %v754 = vld [vmem:[%s748 + $0x14] sm:$0xf]
        %v755 = vld [vmem:[%s748 + $0x18] sm:$0xf]
        %v756 = vld [vmem:[%s748 + $0x1c] sm:$0xf]
        %v757 = vld [vmem:[%s748 + $0x20] sm:$0xf]
        %v758 = vld [vmem:[%s748 + $0x24] sm:$0xf]
        %v759 = vld [vmem:[%s748 + $0x28] sm:$0xf]
        %v760 = vld [vmem:[%s748 + $0x2c] sm:$0xf]
        %v761 = vld [vmem:[%s748 + $0x30] sm:$0xf]
        %v762 = vld [vmem:[%s748 + $0x34] sm:$0xf]
        %v763 = vld [vmem:[%s748 + $0x38] sm:$0xf]
        %v764 = vld [vmem:[%s748 + $0x3c] sm:$0xf]
        %v765 = vld [vmem:[%s748 + $0x40] sm:$0xf]
        %v766 = vld [vmem:[%s748 + $0x44] sm:$0xf]
        %v767 = vld [vmem:[%s748 + $0x48] sm:$0xf]
        %v768 = vld [vmem:[%s748 + $0x4c] sm:$0xf]
        %v769 = vld [vmem:[%s748 + $0x50] sm:$0xf]
        %v770 = vld [vmem:[%s748 + $0x54] sm:$0xf]
        %v771 = vld [vmem:[%s748 + $0x58] sm:$0xf]
        %v772 = vld [vmem:[%s748 + $0x5c] sm:$0xf]
        %v773 = vld [vmem:[%s748 + $0x60] sm:$0xf]
        %v774 = vld [vmem:[%s748 + $0x64] sm:$0xf]
        %v775 = vld [vmem:[%s748 + $0x68] sm:$0xf]
        %v776 = vld [vmem:[%s748 + $0x6c] sm:$0xf]
        %v777 = vld [vmem:[%s748 + $0x70] sm:$0xf]
        %v778 = vld [vmem:[%s748 + $0x74] sm:$0xf]
        %v779 = vld [vmem:[%s748 + $0x78] sm:$0xf]
        %v780 = vld [vmem:[%s748 + $0x7c] sm:$0xf]
        %v781 = vld [vmem:[%s748 + $0x80] sm:$0xf]
        %v782 = vld [vmem:[%s748 + $0x84] sm:$0xf]
        %v783 = vld [vmem:[%s748 + $0x88] sm:$0xf]
        %v784 = vld [vmem:[%s748 + $0x8c] sm:$0xf]
        %v785 = vld [vmem:[%s748 + $0x90] sm:$0xf]
        %v786 = vld [vmem:[%s748 + $0x94] sm:$0xf]
        %v787 = vld [vmem:[%s748 + $0x98] sm:$0xf]
        %v788 = vld [vmem:[%s748 + $0x9c] sm:$0xf]
        %v789 = vld [vmem:[%s748 + $0xa0] sm:$0xf]
        %v790 = vld [vmem:[%s748 + $0xa4] sm:$0xf]
        %v791 = vld [vmem:[%s748 + $0xa8] sm:$0xf]
        %v792 = vld [vmem:[%s748 + $0xac] sm:$0xf]
        %v793 = vld [vmem:[%s748 + $0xb0] sm:$0xf]
        %v794 = vld [vmem:[%s748 + $0xb4] sm:$0xf]
        %v795 = vld [vmem:[%s748 + $0xb8] sm:$0xf]
        %v796 = vld [vmem:[%s748 + $0xbc] sm:$0xf]
        %v845 = vunpack.c.l.b16 %v749
        %v846 = vunpack.c.l.b16 %v750
        %v847 = vunpack.c.l.b16 %v751
        %v848 = vunpack.c.l.b16 %v752
        %v849 = vunpack.c.l.b16 %v753
        %v850 = vunpack.c.l.b16 %v754
        %v851 = vunpack.c.l.b16 %v755
        %v852 = vunpack.c.l.b16 %v756
        %v853 = vunpack.c.l.b16 %v757
        %v854 = vunpack.c.l.b16 %v758
        %v855 = vunpack.c.l.b16 %v759
        %v856 = vunpack.c.l.b16 %v760
        %v857 = vunpack.c.l.b16 %v761
        %v858 = vunpack.c.l.b16 %v762
        %v859 = vunpack.c.l.b16 %v763
        %v860 = vunpack.c.l.b16 %v764
        %v861 = vunpack.c.l.b16 %v765
        %v862 = vunpack.c.l.b16 %v766
        %v863 = vunpack.c.l.b16 %v767
        %v864 = vunpack.c.l.b16 %v768
        %v865 = vunpack.c.l.b16 %v769
        %v866 = vunpack.c.l.b16 %v770
        %v867 = vunpack.c.l.b16 %v771
        %v868 = vunpack.c.l.b16 %v772
        %v869 = vunpack.c.l.b16 %v773
        %v870 = vunpack.c.l.b16 %v774
        %v871 = vunpack.c.l.b16 %v775
        %v872 = vunpack.c.l.b16 %v776
        %v873 = vunpack.c.l.b16 %v777
        %v874 = vunpack.c.l.b16 %v778
        %v875 = vunpack.c.l.b16 %v779
        %v876 = vunpack.c.l.b16 %v780
        %v877 = vunpack.c.l.b16 %v781
        %v878 = vunpack.c.l.b16 %v782
        %v879 = vunpack.c.l.b16 %v783
        %v880 = vunpack.c.l.b16 %v784
        %v881 = vunpack.c.l.b16 %v785
        %v882 = vunpack.c.l.b16 %v786
        %v883 = vunpack.c.l.b16 %v787
        %v884 = vunpack.c.l.b16 %v788
        %v885 = vunpack.c.l.b16 %v789
        %v886 = vunpack.c.l.b16 %v790
        %v887 = vunpack.c.l.b16 %v791
        %v888 = vunpack.c.l.b16 %v792
        %v889 = vunpack.c.l.b16 %v793
        %v890 = vunpack.c.l.b16 %v794
        %v891 = vunpack.c.l.b16 %v795
        %v892 = vunpack.c.l.b16 %v796
        %v893 = vpack.c.b16 %v846, %v845
        %v894 = vpack.c.b16 %v848, %v847
        %v895 = vpack.c.b16 %v850, %v849
        %v896 = vpack.c.b16 %v852, %v851
        %v897 = vpack.c.b16 %v854, %v853
        %v898 = vpack.c.b16 %v856, %v855
        %v899 = vpack.c.b16 %v858, %v857
        %v900 = vpack.c.b16 %v860, %v859
        %v901 = vpack.c.b16 %v862, %v861
        %v902 = vpack.c.b16 %v864, %v863
        %v903 = vpack.c.b16 %v866, %v865
        %v904 = vpack.c.b16 %v868, %v867
        %v905 = vpack.c.b16 %v870, %v869
        %v906 = vpack.c.b16 %v872, %v871
        %v907 = vpack.c.b16 %v874, %v873
        %v908 = vpack.c.b16 %v876, %v875
        %v909 = vpack.c.b16 %v878, %v877
        %v910 = vpack.c.b16 %v880, %v879
        %v911 = vpack.c.b16 %v882, %v881
        %v912 = vpack.c.b16 %v884, %v883
        %v913 = vpack.c.b16 %v886, %v885
        %v914 = vpack.c.b16 %v888, %v887
        %v915 = vpack.c.b16 %v890, %v889
        %v916 = vpack.c.b16 %v892, %v891
        %941 = vmatprep.subr.bf16.mxu0 0
        %942 = vmatpush1.bf16.msra.mxu0 %v893
        %943 = vmatprep.subr.bf16.mxu0 0
        %944 = vmatpush1.bf16.msra.mxu0 %v894
        %945 = vmatprep.subr.bf16.mxu0 0
        %946 = vmatpush1.bf16.msra.mxu0 %v895
        %947 = vmatprep.subr.bf16.mxu0 0
        %948 = vmatpush1.bf16.msra.mxu0 %v896
        %949 = vmatprep.subr.bf16.mxu0 0
        %950 = vmatpush1.bf16.msra.mxu0 %v897
        %951 = vmatprep.subr.bf16.mxu0 0
        %952 = vmatpush1.bf16.msra.mxu0 %v898
        %953 = vmatprep.subr.bf16.mxu0 0
        %954 = vmatpush1.bf16.msra.mxu0 %v899
        %955 = vmatprep.subr.bf16.mxu0 0
        %956 = vmatpush1.bf16.msra.mxu0 %v900
        %957 = vmatprep.subr.bf16.mxu0 0
        %958 = vmatpush1.bf16.msra.mxu0 %v901
        %959 = vmatprep.subr.bf16.mxu0 0
        %960 = vmatpush1.bf16.msra.mxu0 %v902
        %961 = vmatprep.subr.bf16.mxu0 0
        %962 = vmatpush1.bf16.msra.mxu0 %v903
        %963 = vmatprep.subr.bf16.mxu0 0
        %964 = vmatpush1.bf16.msra.mxu0 %v904
        %965 = vmatprep.subr.bf16.mxu0 0
        %966 = vmatpush1.bf16.msra.mxu0 %v905
        %967 = vmatprep.subr.bf16.mxu0 0
        %968 = vmatpush1.bf16.msra.mxu0 %v906
        %969 = vmatprep.subr.bf16.mxu0 0
        %970 = vmatpush1.bf16.msra.mxu0 %v907
        %971 = vmatprep.subr.bf16.mxu0 0
        %972 = vmatpush1.bf16.msra.mxu0 %v908
        %973 = vmatprep.mubr.bf16.mxu0 %v725
        %974 = vmatmul.mubr.bf16.gmra.mrb[0].mxu0 %v724
        %v975 = vpop.f32.mrb[0].mxu0
        %v976 = vadd.f32 0.0, %v975
        %v977 = vpop.f32.mrb[0].mxu0
        %v978 = vpop.f32.mrb[0].mxu0
        %v979 = vadd.f32 0.0, %v978
        %v980 = vpop.f32.mrb[0].mxu0
        %981 = vmatprep.mubr.bf16.mxu0 %v728
        %982 = vmatmul.mubr.bf16.gmra.mrb[0].mxu0 %v727
        %v983 = vpop.f32.mrb[0].mxu0
        %v984 = vadd.f32 0.0, %v983
        %v985 = vpop.f32.mrb[0].mxu0
        %v986 = vpop.f32.mrb[0].mxu0
        %v987 = vadd.f32 0.0, %v986
        %v988 = vpop.f32.mrb[0].mxu0
        %989 = vmatprep.mubr.bf16.mxu0 %v731
        %990 = vmatmul.mubr.bf16.gmra.mrb[0].mxu0 %v730
        %v991 = vpop.f32.mrb[0].mxu0
        %v992 = vadd.f32 0.0, %v991
        %v993 = vpop.f32.mrb[0].mxu0
        %v994 = vpop.f32.mrb[0].mxu0
        %v995 = vadd.f32 0.0, %v994
        %v996 = vpop.f32.mrb[0].mxu0
        %997 = vmatprep.mubr.bf16.mxu0 %v734
        %998 = vmatmul.mubr.bf16.gmra.mrb[0].mxu0 %v733
        %v999 = vpop.f32.mrb[0].mxu0
        %v1000 = vadd.f32 0.0, %v999
        %v1001 = vpop.f32.mrb[0].mxu0
        %v1002 = vpop.f32.mrb[0].mxu0
        %v1003 = vadd.f32 0.0, %v1002
        %v1004 = vpop.f32.mrb[0].mxu0
        %1005 = vmatprep.mubr.bf16.mxu0 %v737
        %1006 = vmatmul.mubr.bf16.gmra.mrb[0].mxu0 %v736
        %v1007 = vpop.f32.mrb[0].mxu0
        %v1008 = vadd.f32 0.0, %v1007
        %v1009 = vpop.f32.mrb[0].mxu0
        %v1010 = vpop.f32.mrb[0].mxu0
        %v1011 = vadd.f32 0.0, %v1010
        %v1012 = vpop.f32.mrb[0].mxu0
        %1013 = vmatprep.mubr.bf16.mxu0 %v740
        %1014 = vmatmul.mubr.bf16.gmra.mrb[0].mxu0 %v739
        %v1015 = vpop.f32.mrb[0].mxu0
        %v1016 = vadd.f32 0.0, %v1015
        %v1017 = vpop.f32.mrb[0].mxu0
        %v1018 = vpop.f32.mrb[0].mxu0
        %v1019 = vadd.f32 0.0, %v1018
        %v1020 = vpop.f32.mrb[0].mxu0
        %1021 = vmatprep.mubr.bf16.mxu0 %v743
        %1022 = vmatmul.mubr.bf16.gmra.mrb[0].mxu0 %v742
        %v1023 = vpop.f32.mrb[0].mxu0
        %v1024 = vadd.f32 0.0, %v1023
        %v1025 = vpop.f32.mrb[0].mxu0
        %v1026 = vpop.f32.mrb[0].mxu0
        %v1027 = vadd.f32 0.0, %v1026
        %v1028 = vpop.f32.mrb[0].mxu0
        %1029 = vmatprep.mubr.bf16.mxu0 %v746
        %1030 = vmatmul.mubr.bf16.gmra.mrb[0].mxu0 %v745
        %v1031 = vpop.f32.mrb[0].mxu0
        %v1032 = vadd.f32 0.0, %v1031
        %v1033 = vpop.f32.mrb[0].mxu0
        %v1034 = vpop.f32.mrb[0].mxu0
        %v1035 = vadd.f32 0.0, %v1034
        %v1036 = vpop.f32.mrb[0].mxu0
        %1037 = vdwg.mxu0
        %1038 = vmatprep.subr.bf16.mxu0 0
        %1039 = vmatpush1.bf16.msra.mxu0 %v909
        %1040 = vmatprep.subr.bf16.mxu0 0
        %1041 = vmatpush1.bf16.msra.mxu0 %v910
        %1042 = vmatprep.subr.bf16.mxu0 0
        %1043 = vmatpush1.bf16.msra.mxu0 %v911
        %1044 = vmatprep.subr.bf16.mxu0 0
        %1045 = vmatpush1.bf16.msra.mxu0 %v912
        %1046 = vmatprep.subr.bf16.mxu0 0
        %1047 = vmatpush1.bf16.msra.mxu0 %v913
        %1048 = vmatprep.subr.bf16.mxu0 0
        %1049 = vmatpush1.bf16.msra.mxu0 %v914
        %1050 = vmatprep.subr.bf16.mxu0 0
        %1051 = vmatpush1.bf16.msra.mxu0 %v915
        %1052 = vmatprep.subr.bf16.mxu0 0
        %1053 = vmatpush1.bf16.msra.mxu0 %v916
        %1054 = vmatprep.subr.bf16.mxu0 0
        %1055 = vmatpush1.bf16.msra.mxu0 0
        %1056 = vmatprep.subr.bf16.mxu0 0
        %1057 = vmatpush1.bf16.msra.mxu0 0
        %1058 = vmatprep.subr.bf16.mxu0 0
        %1059 = vmatpush1.bf16.msra.mxu0 0
        %1060 = vmatprep.subr.bf16.mxu0 0
        %1061 = vmatpush1.bf16.msra.mxu0 0
        %1062 = vmatprep.subr.bf16.mxu0 0
        %1063 = vmatpush1.bf16.msra.mxu0 0
        %1064 = vmatprep.subr.bf16.mxu0 0
        %1065 = vmatpush1.bf16.msra.mxu0 0
        %1066 = vmatprep.subr.bf16.mxu0 0
        %1067 = vmatpush1.bf16.msra.mxu0 0
        %1068 = vmatprep.subr.bf16.mxu0 0
        %1069 = vmatpush1.bf16.msra.mxu0 0
        %1070 = vmatprep.mubr.bf16.mxu0 0
        %1071 = vmatmul.mubr.bf16.gmra.mrb[0].mxu0 %v726
        %v1072 = vpop.f32.mrb[0].mxu0
        %v1073 = vadd.f32 %v976, %v1072
        %v1074 = vpop.f32.mrb[0].mxu0
        %v1075 = vpop.f32.mrb[0].mxu0
        %v1076 = vadd.f32 %v979, %v1075
        %v1077 = vpop.f32.mrb[0].mxu0
        %1078 = vmatprep.mubr.bf16.mxu0 0
        %1079 = vmatmul.mubr.bf16.gmra.mrb[0].mxu0 %v729
        %v1080 = vpop.f32.mrb[0].mxu0
        %v1081 = vadd.f32 %v984, %v1080
        %v1082 = vpop.f32.mrb[0].mxu0
        %v1083 = vpop.f32.mrb[0].mxu0
        %v1084 = vadd.f32 %v987, %v1083
        %v1085 = vpop.f32.mrb[0].mxu0
        %1086 = vmatprep.mubr.bf16.mxu0 0
        %1087 = vmatmul.mubr.bf16.gmra.mrb[0].mxu0 %v732
        %v1088 = vpop.f32.mrb[0].mxu0
        %v1089 = vadd.f32 %v992, %v1088
        %v1090 = vpop.f32.mrb[0].mxu0
        %v1091 = vpop.f32.mrb[0].mxu0
        %v1092 = vadd.f32 %v995, %v1091
        %v1093 = vpop.f32.mrb[0].mxu0
        %1094 = vmatprep.mubr.bf16.mxu0 0
        %1095 = vmatmul.mubr.bf16.gmra.mrb[0].mxu0 %v735
        %v1096 = vpop.f32.mrb[0].mxu0
        %v1097 = vadd.f32 %v1000, %v1096
        %v1098 = vpop.f32.mrb[0].mxu0
        %v1099 = vpop.f32.mrb[0].mxu0
        %v1100 = vadd.f32 %v1003, %v1099
        %v1101 = vpop.f32.mrb[0].mxu0
        %1102 = vmatprep.mubr.bf16.mxu0 0
        %1103 = vmatmul.mubr.bf16.gmra.mrb[0].mxu0 %v738
        %v1104 = vpop.f32.mrb[0].mxu0
        %v1105 = vadd.f32 %v1008, %v1104
        %v1106 = vpop.f32.mrb[0].mxu0
        %v1107 = vpop.f32.mrb[0].mxu0
        %v1108 = vadd.f32 %v1011, %v1107
        %v1109 = vpop.f32.mrb[0].mxu0
        %1110 = vmatprep.mubr.bf16.mxu0 0
        %1111 = vmatmul.mubr.bf16.gmra.mrb[0].mxu0 %v741
        %v1112 = vpop.f32.mrb[0].mxu0
        %v1113 = vadd.f32 %v1016, %v1112
        %v1114 = vpop.f32.mrb[0].mxu0
        %v1115 = vpop.f32.mrb[0].mxu0
        %v1116 = vadd.f32 %v1019, %v1115
        %v1117 = vpop.f32.mrb[0].mxu0
        %1118 = vmatprep.mubr.bf16.mxu0 0
        %1119 = vmatmul.mubr.bf16.gmra.mrb[0].mxu0 %v744
        %v1120 = vpop.f32.mrb[0].mxu0
        %v1121 = vadd.f32 %v1024, %v1120
        %v1122 = vpop.f32.mrb[0].mxu0
        %v1123 = vpop.f32.mrb[0].mxu0
        %v1124 = vadd.f32 %v1027, %v1123
        %v1125 = vpop.f32.mrb[0].mxu0
        %1126 = vmatprep.mubr.bf16.mxu0 0
        %1127 = vmatmul.mubr.bf16.gmra.mrb[0].mxu0 %v747
        %v1128 = vpop.f32.mrb[0].mxu0
        %v1129 = vadd.f32 %v1032, %v1128
        %v1130 = vpop.f32.mrb[0].mxu0
        %v1131 = vpop.f32.mrb[0].mxu0
        %v1132 = vadd.f32 %v1035, %v1131
        %v1133 = vpop.f32.mrb[0].mxu0
        %1134 = vdwg.mxu0
        %v1183 = vunpack.c.l.b16 %v675
        %v1184 = vunpack.c.l.b16 %v676
        %v1185 = vunpack.c.l.b16 %v677
        %v1186 = vunpack.c.l.b16 %v678
        %v1187 = vunpack.c.l.b16 %v679
        %v1188 = vunpack.c.l.b16 %v680
        %v1189 = vunpack.c.l.b16 %v681
        %v1190 = vunpack.c.l.b16 %v682
        %v1191 = vunpack.c.l.b16 %v683
        %v1192 = vunpack.c.l.b16 %v684
        %v1193 = vunpack.c.l.b16 %v685
        %v1194 = vunpack.c.l.b16 %v686
        %v1195 = vunpack.c.l.b16 %v687
        %v1196 = vunpack.c.l.b16 %v688
        %v1197 = vunpack.c.l.b16 %v689
        %v1198 = vunpack.c.l.b16 %v690
        %v1199 = vunpack.c.l.b16 %v691
        %v1200 = vunpack.c.l.b16 %v692
        %v1201 = vunpack.c.l.b16 %v693
        %v1202 = vunpack.c.l.b16 %v694
        %v1203 = vunpack.c.l.b16 %v695
        %v1204 = vunpack.c.l.b16 %v696
        %v1205 = vunpack.c.l.b16 %v697
        %v1206 = vunpack.c.l.b16 %v698
        %v1207 = vunpack.c.l.b16 %v699
        %v1208 = vunpack.c.l.b16 %v700
        %v1209 = vunpack.c.l.b16 %v701
        %v1210 = vunpack.c.l.b16 %v702
        %v1211 = vunpack.c.l.b16 %v703
        %v1212 = vunpack.c.l.b16 %v704
        %v1213 = vunpack.c.l.b16 %v705
        %v1214 = vunpack.c.l.b16 %v706
        %v1215 = vunpack.c.l.b16 %v707
        %v1216 = vunpack.c.l.b16 %v708
        %v1217 = vunpack.c.l.b16 %v709
        %v1218 = vunpack.c.l.b16 %v710
        %v1219 = vunpack.c.l.b16 %v711
        %v1220 = vunpack.c.l.b16 %v712
        %v1221 = vunpack.c.l.b16 %v713
        %v1222 = vunpack.c.l.b16 %v714
        %v1223 = vunpack.c.l.b16 %v715
        %v1224 = vunpack.c.l.b16 %v716
        %v1225 = vunpack.c.l.b16 %v717
        %v1226 = vunpack.c.l.b16 %v718
        %v1227 = vunpack.c.l.b16 %v719
        %v1228 = vunpack.c.l.b16 %v720
        %v1229 = vunpack.c.l.b16 %v721
        %v1230 = vunpack.c.l.b16 %v722
        %v1231 = vpack.c.b16 %v1184, %v1183
        %v1232 = vpack.c.b16 %v1186, %v1185
        %v1233 = vpack.c.b16 %v1188, %v1187
        %v1234 = vpack.c.b16 %v1190, %v1189
        %v1235 = vpack.c.b16 %v1192, %v1191
        %v1236 = vpack.c.b16 %v1194, %v1193
        %v1237 = vpack.c.b16 %v1196, %v1195
        %v1238 = vpack.c.b16 %v1198, %v1197
        %v1239 = vpack.c.b16 %v1200, %v1199
        %v1240 = vpack.c.b16 %v1202, %v1201
        %v1241 = vpack.c.b16 %v1204, %v1203
        %v1242 = vpack.c.b16 %v1206, %v1205
        %v1243 = vpack.c.b16 %v1208, %v1207
        %v1244 = vpack.c.b16 %v1210, %v1209
        %v1245 = vpack.c.b16 %v1212, %v1211
        %v1246 = vpack.c.b16 %v1214, %v1213
        %v1247 = vpack.c.b16 %v1216, %v1215
        %v1248 = vpack.c.b16 %v1218, %v1217
        %v1249 = vpack.c.b16 %v1220, %v1219
        %v1250 = vpack.c.b16 %v1222, %v1221
        %v1251 = vpack.c.b16 %v1224, %v1223
        %v1252 = vpack.c.b16 %v1226, %v1225
        %v1253 = vpack.c.b16 %v1228, %v1227
        %v1254 = vpack.c.b16 %v1230, %v1229
        %1279 = vmatprep.subr.bf16.mxu0 0
        %1280 = vmatpush1.bf16.msra.mxu0 %v1231
        %1281 = vmatprep.subr.bf16.mxu0 0
        %1282 = vmatpush1.bf16.msra.mxu0 %v1232
        %1283 = vmatprep.subr.bf16.mxu0 0
        %1284 = vmatpush1.bf16.msra.mxu0 %v1233
        %1285 = vmatprep.subr.bf16.mxu0 0
        %1286 = vmatpush1.bf16.msra.mxu0 %v1234
        %1287 = vmatprep.subr.bf16.mxu0 0
        %1288 = vmatpush1.bf16.msra.mxu0 %v1235
        %1289 = vmatprep.subr.bf16.mxu0 0
        %1290 = vmatpush1.bf16.msra.mxu0 %v1236
        %1291 = vmatprep.subr.bf16.mxu0 0
        %1292 = vmatpush1.bf16.msra.mxu0 %v1237
        %1293 = vmatprep.subr.bf16.mxu0 0
        %1294 = vmatpush1.bf16.msra.mxu0 %v1238
        %1295 = vmatprep.subr.bf16.mxu0 0
        %1296 = vmatpush1.bf16.msra.mxu0 %v1239
        %1297 = vmatprep.subr.bf16.mxu0 0
        %1298 = vmatpush1.bf16.msra.mxu0 %v1240
        %1299 = vmatprep.subr.bf16.mxu0 0
        %1300 = vmatpush1.bf16.msra.mxu0 %v1241
        %1301 = vmatprep.subr.bf16.mxu0 0
        %1302 = vmatpush1.bf16.msra.mxu0 %v1242
        %1303 = vmatprep.subr.bf16.mxu0 0
        %1304 = vmatpush1.bf16.msra.mxu0 %v1243
        %1305 = vmatprep.subr.bf16.mxu0 0
        %1306 = vmatpush1.bf16.msra.mxu0 %v1244
        %1307 = vmatprep.subr.bf16.mxu0 0
        %1308 = vmatpush1.bf16.msra.mxu0 %v1245
        %1309 = vmatprep.subr.bf16.mxu0 0
        %1310 = vmatpush1.bf16.msra.mxu0 %v1246
        %1311 = vmatprep.mubr.bf16.mxu0 %v652
        %1312 = vmatmul.mubr.bf16.gmra.mrb[0].mxu0 %v651
        %v1313 = vpop.f32.mrb[0].mxu0
        %v1314 = vadd.f32 %v1073, %v1313
        %v1315 = vpop.f32.mrb[0].mxu0
        %v1316 = vpop.f32.mrb[0].mxu0
        %v1317 = vadd.f32 %v1076, %v1316
        %v1318 = vpop.f32.mrb[0].mxu0
        %1319 = vmatprep.mubr.bf16.mxu0 %v655
        %1320 = vmatmul.mubr.bf16.gmra.mrb[0].mxu0 %v654
        %v1321 = vpop.f32.mrb[0].mxu0
        %v1322 = vadd.f32 %v1081, %v1321
        %v1323 = vpop.f32.mrb[0].mxu0
        %v1324 = vpop.f32.mrb[0].mxu0
        %v1325 = vadd.f32 %v1084, %v1324
        %v1326 = vpop.f32.mrb[0].mxu0
        %1327 = vmatprep.mubr.bf16.mxu0 %v658
        %1328 = vmatmul.mubr.bf16.gmra.mrb[0].mxu0 %v657
        %v1329 = vpop.f32.mrb[0].mxu0
        %v1330 = vadd.f32 %v1089, %v1329
        %v1331 = vpop.f32.mrb[0].mxu0
        %v1332 = vpop.f32.mrb[0].mxu0
        %v1333 = vadd.f32 %v1092, %v1332
        %v1334 = vpop.f32.mrb[0].mxu0
        %1335 = vmatprep.mubr.bf16.mxu0 %v661
        %1336 = vmatmul.mubr.bf16.gmra.mrb[0].mxu0 %v660
        %v1337 = vpop.f32.mrb[0].mxu0
        %v1338 = vadd.f32 %v1097, %v1337
        %v1339 = vpop.f32.mrb[0].mxu0
        %v1340 = vpop.f32.mrb[0].mxu0
        %v1341 = vadd.f32 %v1100, %v1340
        %v1342 = vpop.f32.mrb[0].mxu0
        %1343 = vmatprep.mubr.bf16.mxu0 %v664
        %1344 = vmatmul.mubr.bf16.gmra.mrb[0].mxu0 %v663
        %v1345 = vpop.f32.mrb[0].mxu0
        %v1346 = vadd.f32 %v1105, %v1345
        %v1347 = vpop.f32.mrb[0].mxu0
        %v1348 = vpop.f32.mrb[0].mxu0
        %v1349 = vadd.f32 %v1108, %v1348
        %v1350 = vpop.f32.mrb[0].mxu0
        %1351 = vmatprep.mubr.bf16.mxu0 %v667
        %1352 = vmatmul.mubr.bf16.gmra.mrb[0].mxu0 %v666
        %v1353 = vpop.f32.mrb[0].mxu0
        %v1354 = vadd.f32 %v1113, %v1353
        %v1355 = vpop.f32.mrb[0].mxu0
        %v1356 = vpop.f32.mrb[0].mxu0
        %v1357 = vadd.f32 %v1116, %v1356
        %v1358 = vpop.f32.mrb[0].mxu0
        %1359 = vmatprep.mubr.bf16.mxu0 %v670
        %1360 = vmatmul.mubr.bf16.gmra.mrb[0].mxu0 %v669
        %v1361 = vpop.f32.mrb[0].mxu0
        %v1362 = vadd.f32 %v1121, %v1361
        %v1363 = vpop.f32.mrb[0].mxu0
        %v1364 = vpop.f32.mrb[0].mxu0
        %v1365 = vadd.f32 %v1124, %v1364
        %v1366 = vpop.f32.mrb[0].mxu0
        %1367 = vmatprep.mubr.bf16.mxu0 %v673
        %1368 = vmatmul.mubr.bf16.gmra.mrb[0].mxu0 %v672
        %v1369 = vpop.f32.mrb[0].mxu0
        %v1370 = vadd.f32 %v1129, %v1369
        %v1371 = vpop.f32.mrb[0].mxu0
        %v1372 = vpop.f32.mrb[0].mxu0
        %v1373 = vadd.f32 %v1132, %v1372
        %v1374 = vpop.f32.mrb[0].mxu0
        %1375 = vdwg.mxu0
        %1376 = vmatprep.subr.bf16.mxu0 0
        %1377 = vmatpush1.bf16.msra.mxu0 %v1247
        %1378 = vmatprep.subr.bf16.mxu0 0
        %1379 = vmatpush1.bf16.msra.mxu0 %v1248
        %1380 = vmatprep.subr.bf16.mxu0 0
        %1381 = vmatpush1.bf16.msra.mxu0 %v1249
        %1382 = vmatprep.subr.bf16.mxu0 0
        %1383 = vmatpush1.bf16.msra.mxu0 %v1250
        %1384 = vmatprep.subr.bf16.mxu0 0
        %1385 = vmatpush1.bf16.msra.mxu0 %v1251
        %1386 = vmatprep.subr.bf16.mxu0 0
        %1387 = vmatpush1.bf16.msra.mxu0 %v1252
        %1388 = vmatprep.subr.bf16.mxu0 0
        %1389 = vmatpush1.bf16.msra.mxu0 %v1253
        %1390 = vmatprep.subr.bf16.mxu0 0
        %1391 = vmatpush1.bf16.msra.mxu0 %v1254
        %1392 = vmatprep.subr.bf16.mxu0 0
        %1393 = vmatpush1.bf16.msra.mxu0 0
        %1394 = vmatprep.subr.bf16.mxu0 0
        %1395 = vmatpush1.bf16.msra.mxu0 0
        %1396 = vmatprep.subr.bf16.mxu0 0
        %1397 = vmatpush1.bf16.msra.mxu0 0
        %1398 = vmatprep.subr.bf16.mxu0 0
        %1399 = vmatpush1.bf16.msra.mxu0 0
        %1400 = vmatprep.subr.bf16.mxu0 0
        %1401 = vmatpush1.bf16.msra.mxu0 0
        %1402 = vmatprep.subr.bf16.mxu0 0
        %1403 = vmatpush1.bf16.msra.mxu0 0
        %1404 = vmatprep.subr.bf16.mxu0 0
        %1405 = vmatpush1.bf16.msra.mxu0 0
        %1406 = vmatprep.subr.bf16.mxu0 0
        %1407 = vmatpush1.bf16.msra.mxu0 0
        %1408 = vmatprep.mubr.bf16.mxu0 0
        %1409 = vmatmul.mubr.bf16.gmra.mrb[0].mxu0 %v653
        %v1410 = vpop.f32.mrb[0].mxu0
        %v1411 = vadd.f32 %v1314, %v1410
        %v1412 = vpop.f32.mrb[0].mxu0
        %v1413 = vpop.f32.mrb[0].mxu0
        %v1414 = vadd.f32 %v1317, %v1413
        %v1415 = vpop.f32.mrb[0].mxu0
        %1416 = vmatprep.mubr.bf16.mxu0 0
        %1417 = vmatmul.mubr.bf16.gmra.mrb[0].mxu0 %v656
        %v1418 = vpop.f32.mrb[0].mxu0
        %v1419 = vadd.f32 %v1322, %v1418
        %v1420 = vpop.f32.mrb[0].mxu0
        %v1421 = vpop.f32.mrb[0].mxu0
        %v1422 = vadd.f32 %v1325, %v1421
        %v1423 = vpop.f32.mrb[0].mxu0
        %1424 = vmatprep.mubr.bf16.mxu0 0
        %1425 = vmatmul.mubr.bf16.gmra.mrb[0].mxu0 %v659
        %v1426 = vpop.f32.mrb[0].mxu0
        %v1427 = vadd.f32 %v1330, %v1426
        %v1428 = vpop.f32.mrb[0].mxu0
        %v1429 = vpop.f32.mrb[0].mxu0
        %v1430 = vadd.f32 %v1333, %v1429
        %v1431 = vpop.f32.mrb[0].mxu0
        %1432 = vmatprep.mubr.bf16.mxu0 0
        %1433 = vmatmul.mubr.bf16.gmra.mrb[0].mxu0 %v662
        %v1434 = vpop.f32.mrb[0].mxu0
        %v1435 = vadd.f32 %v1338, %v1434
        %v1436 = vpop.f32.mrb[0].mxu0
        %v1437 = vpop.f32.mrb[0].mxu0
        %v1438 = vadd.f32 %v1341, %v1437
        %v1439 = vpop.f32.mrb[0].mxu0
        %1440 = vmatprep.mubr.bf16.mxu0 0
        %1441 = vmatmul.mubr.bf16.gmra.mrb[0].mxu0 %v665
        %v1442 = vpop.f32.mrb[0].mxu0
        %v1443 = vadd.f32 %v1346, %v1442
        %v1444 = vpop.f32.mrb[0].mxu0
        %v1445 = vpop.f32.mrb[0].mxu0
        %v1446 = vadd.f32 %v1349, %v1445
        %v1447 = vpop.f32.mrb[0].mxu0
        %1448 = vmatprep.mubr.bf16.mxu0 0
        %1449 = vmatmul.mubr.bf16.gmra.mrb[0].mxu0 %v668
        %v1450 = vpop.f32.mrb[0].mxu0
        %v1451 = vadd.f32 %v1354, %v1450
        %v1452 = vpop.f32.mrb[0].mxu0
        %v1453 = vpop.f32.mrb[0].mxu0
        %v1454 = vadd.f32 %v1357, %v1453
        %v1455 = vpop.f32.mrb[0].mxu0
        %1456 = vmatprep.mubr.bf16.mxu0 0
        %1457 = vmatmul.mubr.bf16.gmra.mrb[0].mxu0 %v671
        %v1458 = vpop.f32.mrb[0].mxu0
        %v1459 = vadd.f32 %v1362, %v1458
        %v1460 = vpop.f32.mrb[0].mxu0
        %v1461 = vpop.f32.mrb[0].mxu0
        %v1462 = vadd.f32 %v1365, %v1461
        %v1463 = vpop.f32.mrb[0].mxu0
        %1464 = vmatprep.mubr.bf16.mxu0 0
        %1465 = vmatmul.mubr.bf16.gmra.mrb[0].mxu0 %v674
        %v1466 = vpop.f32.mrb[0].mxu0
        %v1467 = vadd.f32 %v1370, %v1466
        %v1468 = vpop.f32.mrb[0].mxu0
        %v1469 = vpop.f32.mrb[0].mxu0
        %v1470 = vadd.f32 %v1373, %v1469
        %v1471 = vpop.f32.mrb[0].mxu0
        %1472 = vdwg.mxu0
        %s1473 = scalar_lea.vmem [#allocation2], 48
        %v1474 = vld [vmem:[%s1473] sm:$0xff]
        %v1475 = vld [vmem:[%s1473 + $0x8] sm:$0xff]
        %v1476 = vld [vmem:[%s1473 + $0x10] sm:$0xff]
        %v1477 = vld [vmem:[%s1473 + $0x18] sm:$0xff]
        %v1478 = vld [vmem:[%s1473 + $0x20] sm:$0xff]
        %v1479 = vld [vmem:[%s1473 + $0x28] sm:$0xff]
        %v1480 = vld [vmem:[%s1473 + $0x30] sm:$0xff]
        %v1481 = vld [vmem:[%s1473 + $0x38] sm:$0xff]
        %v1482 = vld [vmem:[%s1473 + $0x40] sm:$0xff]
        %v1483 = vld [vmem:[%s1473 + $0x48] sm:$0xff]
        %v1484 = vld [vmem:[%s1473 + $0x50] sm:$0xff]
        %v1485 = vld [vmem:[%s1473 + $0x58] sm:$0xff]
        %v1486 = vld [vmem:[%s1473 + $0x60] sm:$0xff]
        %v1487 = vld [vmem:[%s1473 + $0x68] sm:$0xff]
        %v1488 = vld [vmem:[%s1473 + $0x70] sm:$0xff]
        %v1489 = vld [vmem:[%s1473 + $0x78] sm:$0xff]
        %v1490 = vld [vmem:[%s1473 + $0x80] sm:$0xff]
        %v1491 = vld [vmem:[%s1473 + $0x88] sm:$0xff]
        %v1492 = vld [vmem:[%s1473 + $0x90] sm:$0xff]
        %v1493 = vld [vmem:[%s1473 + $0x98] sm:$0xff]
        %v1494 = vld [vmem:[%s1473 + $0xa0] sm:$0xff]
        %v1495 = vld [vmem:[%s1473 + $0xa8] sm:$0xff]
        %v1496 = vld [vmem:[%s1473 + $0xb0] sm:$0xff]
        %v1497 = vld [vmem:[%s1473 + $0xb8] sm:$0xff]
        %s1498 = scalar_lea.vmem [#allocation9], 384
        %v1499 = vld [vmem:[%s1498] sm:$0xf]
        %v1500 = vld [vmem:[%s1498 + $0x4] sm:$0xf]
        %v1501 = vld [vmem:[%s1498 + $0x8] sm:$0xf]
        %v1502 = vld [vmem:[%s1498 + $0xc] sm:$0xf]
        %v1503 = vld [vmem:[%s1498 + $0x10] sm:$0xf]
        %v1504 = vld [vmem:[%s1498 + $0x14] sm:$0xf]
        %v1505 = vld [vmem:[%s1498 + $0x18] sm:$0xf]
        %v1506 = vld [vmem:[%s1498 + $0x1c] sm:$0xf]
        %v1507 = vld [vmem:[%s1498 + $0x20] sm:$0xf]
        %v1508 = vld [vmem:[%s1498 + $0x24] sm:$0xf]
        %v1509 = vld [vmem:[%s1498 + $0x28] sm:$0xf]
        %v1510 = vld [vmem:[%s1498 + $0x2c] sm:$0xf]
        %v1511 = vld [vmem:[%s1498 + $0x30] sm:$0xf]
        %v1512 = vld [vmem:[%s1498 + $0x34] sm:$0xf]
        %v1513 = vld [vmem:[%s1498 + $0x38] sm:$0xf]
        %v1514 = vld [vmem:[%s1498 + $0x3c] sm:$0xf]
        %v1515 = vld [vmem:[%s1498 + $0x40] sm:$0xf]
        %v1516 = vld [vmem:[%s1498 + $0x44] sm:$0xf]
        %v1517 = vld [vmem:[%s1498 + $0x48] sm:$0xf]
        %v1518 = vld [vmem:[%s1498 + $0x4c] sm:$0xf]
        %v1519 = vld [vmem:[%s1498 + $0x50] sm:$0xf]
        %v1520 = vld [vmem:[%s1498 + $0x54] sm:$0xf]
        %v1521 = vld [vmem:[%s1498 + $0x58] sm:$0xf]
        %v1522 = vld [vmem:[%s1498 + $0x5c] sm:$0xf]
        %v1523 = vld [vmem:[%s1498 + $0x60] sm:$0xf]
        %v1524 = vld [vmem:[%s1498 + $0x64] sm:$0xf]
        %v1525 = vld [vmem:[%s1498 + $0x68] sm:$0xf]
        %v1526 = vld [vmem:[%s1498 + $0x6c] sm:$0xf]
        %v1527 = vld [vmem:[%s1498 + $0x70] sm:$0xf]
        %v1528 = vld [vmem:[%s1498 + $0x74] sm:$0xf]
        %v1529 = vld [vmem:[%s1498 + $0x78] sm:$0xf]
        %v1530 = vld [vmem:[%s1498 + $0x7c] sm:$0xf]
        %v1531 = vld [vmem:[%s1498 + $0x80] sm:$0xf]
        %v1532 = vld [vmem:[%s1498 + $0x84] sm:$0xf]
        %v1533 = vld [vmem:[%s1498 + $0x88] sm:$0xf]
        %v1534 = vld [vmem:[%s1498 + $0x8c] sm:$0xf]
        %v1535 = vld [vmem:[%s1498 + $0x90] sm:$0xf]
        %v1536 = vld [vmem:[%s1498 + $0x94] sm:$0xf]
        %v1537 = vld [vmem:[%s1498 + $0x98] sm:$0xf]
        %v1538 = vld [vmem:[%s1498 + $0x9c] sm:$0xf]
        %v1539 = vld [vmem:[%s1498 + $0xa0] sm:$0xf]
        %v1540 = vld [vmem:[%s1498 + $0xa4] sm:$0xf]
        %v1541 = vld [vmem:[%s1498 + $0xa8] sm:$0xf]
        %v1542 = vld [vmem:[%s1498 + $0xac] sm:$0xf]
        %v1543 = vld [vmem:[%s1498 + $0xb0] sm:$0xf]
        %v1544 = vld [vmem:[%s1498 + $0xb4] sm:$0xf]
        %v1545 = vld [vmem:[%s1498 + $0xb8] sm:$0xf]
        %v1546 = vld [vmem:[%s1498 + $0xbc] sm:$0xf]
        %v1595 = vunpack.c.l.b16 %v1499
        %v1596 = vunpack.c.l.b16 %v1500
        %v1597 = vunpack.c.l.b16 %v1501
        %v1598 = vunpack.c.l.b16 %v1502
        %v1599 = vunpack.c.l.b16 %v1503
        %v1600 = vunpack.c.l.b16 %v1504
        %v1601 = vunpack.c.l.b16 %v1505
        %v1602 = vunpack.c.l.b16 %v1506
        %v1603 = vunpack.c.l.b16 %v1507
        %v1604 = vunpack.c.l.b16 %v1508
        %v1605 = vunpack.c.l.b16 %v1509
        %v1606 = vunpack.c.l.b16 %v1510
        %v1607 = vunpack.c.l.b16 %v1511
        %v1608 = vunpack.c.l.b16 %v1512
        %v1609 = vunpack.c.l.b16 %v1513
        %v1610 = vunpack.c.l.b16 %v1514
        %v1611 = vunpack.c.l.b16 %v1515
        %v1612 = vunpack.c.l.b16 %v1516
        %v1613 = vunpack.c.l.b16 %v1517
        %v1614 = vunpack.c.l.b16 %v1518
        %v1615 = vunpack.c.l.b16 %v1519
        %v1616 = vunpack.c.l.b16 %v1520
        %v1617 = vunpack.c.l.b16 %v1521
        %v1618 = vunpack.c.l.b16 %v1522
        %v1619 = vunpack.c.l.b16 %v1523
        %v1620 = vunpack.c.l.b16 %v1524
        %v1621 = vunpack.c.l.b16 %v1525
        %v1622 = vunpack.c.l.b16 %v1526
        %v1623 = vunpack.c.l.b16 %v1527
        %v1624 = vunpack.c.l.b16 %v1528
        %v1625 = vunpack.c.l.b16 %v1529
        %v1626 = vunpack.c.l.b16 %v1530
        %v1627 = vunpack.c.l.b16 %v1531
        %v1628 = vunpack.c.l.b16 %v1532
        %v1629 = vunpack.c.l.b16 %v1533
        %v1630 = vunpack.c.l.b16 %v1534
        %v1631 = vunpack.c.l.b16 %v1535
        %v1632 = vunpack.c.l.b16 %v1536
        %v1633 = vunpack.c.l.b16 %v1537
        %v1634 = vunpack.c.l.b16 %v1538
        %v1635 = vunpack.c.l.b16 %v1539
        %v1636 = vunpack.c.l.b16 %v1540
        %v1637 = vunpack.c.l.b16 %v1541
        %v1638 = vunpack.c.l.b16 %v1542
        %v1639 = vunpack.c.l.b16 %v1543
        %v1640 = vunpack.c.l.b16 %v1544
        %v1641 = vunpack.c.l.b16 %v1545
        %v1642 = vunpack.c.l.b16 %v1546
        %v1643 = vpack.c.b16 %v1596, %v1595
        %v1644 = vpack.c.b16 %v1598, %v1597
        %v1645 = vpack.c.b16 %v1600, %v1599
        %v1646 = vpack.c.b16 %v1602, %v1601
        %v1647 = vpack.c.b16 %v1604, %v1603
        %v1648 = vpack.c.b16 %v1606, %v1605
        %v1649 = vpack.c.b16 %v1608, %v1607
        %v1650 = vpack.c.b16 %v1610, %v1609
        %v1651 = vpack.c.b16 %v1612, %v1611
        %v1652 = vpack.c.b16 %v1614, %v1613
        %v1653 = vpack.c.b16 %v1616, %v1615
        %v1654 = vpack.c.b16 %v1618, %v1617
        %v1655 = vpack.c.b16 %v1620, %v1619
        %v1656 = vpack.c.b16 %v1622, %v1621
        %v1657 = vpack.c.b16 %v1624, %v1623
        %v1658 = vpack.c.b16 %v1626, %v1625
        %v1659 = vpack.c.b16 %v1628, %v1627
        %v1660 = vpack.c.b16 %v1630, %v1629
        %v1661 = vpack.c.b16 %v1632, %v1631
        %v1662 = vpack.c.b16 %v1634, %v1633
        %v1663 = vpack.c.b16 %v1636, %v1635
        %v1664 = vpack.c.b16 %v1638, %v1637
        %v1665 = vpack.c.b16 %v1640, %v1639
        %v1666 = vpack.c.b16 %v1642, %v1641
        %1691 = vmatprep.subr.bf16.mxu0 0
        %1692 = vmatpush1.bf16.msra.mxu0 %v1643
        %1693 = vmatprep.subr.bf16.mxu0 0
        %1694 = vmatpush1.bf16.msra.mxu0 %v1644
        %1695 = vmatprep.subr.bf16.mxu0 0
        %1696 = vmatpush1.bf16.msra.mxu0 %v1645
        %1697 = vmatprep.subr.bf16.mxu0 0
        %1698 = vmatpush1.bf16.msra.mxu0 %v1646
        %1699 = vmatprep.subr.bf16.mxu0 0
        %1700 = vmatpush1.bf16.msra.mxu0 %v1647
        %1701 = vmatprep.subr.bf16.mxu0 0
        %1702 = vmatpush1.bf16.msra.mxu0 %v1648
        %1703 = vmatprep.subr.bf16.mxu0 0
        %1704 = vmatpush1.bf16.msra.mxu0 %v1649
        %1705 = vmatprep.subr.bf16.mxu0 0
        %1706 = vmatpush1.bf16.msra.mxu0 %v1650
        %1707 = vmatprep.subr.bf16.mxu0 0
        %1708 = vmatpush1.bf16.msra.mxu0 %v1651
        %1709 = vmatprep.subr.bf16.mxu0 0
        %1710 = vmatpush1.bf16.msra.mxu0 %v1652
        %1711 = vmatprep.subr.bf16.mxu0 0
        %1712 = vmatpush1.bf16.msra.mxu0 %v1653
        %1713 = vmatprep.subr.bf16.mxu0 0
        %1714 = vmatpush1.bf16.msra.mxu0 %v1654
        %1715 = vmatprep.subr.bf16.mxu0 0
        %1716 = vmatpush1.bf16.msra.mxu0 %v1655
        %1717 = vmatprep.subr.bf16.mxu0 0
        %1718 = vmatpush1.bf16.msra.mxu0 %v1656
        %1719 = vmatprep.subr.bf16.mxu0 0
        %1720 = vmatpush1.bf16.msra.mxu0 %v1657
        %1721 = vmatprep.subr.bf16.mxu0 0
        %1722 = vmatpush1.bf16.msra.mxu0 %v1658
        %1723 = vmatprep.mubr.bf16.mxu0 %v1475
        %1724 = vmatmul.mubr.bf16.gmra.mrb[0].mxu0 %v1474
        %v1725 = vpop.f32.mrb[0].mxu0
        %v1726 = vadd.f32 0.0, %v1725
        %v1727 = vpop.f32.mrb[0].mxu0
        %v1728 = vpop.f32.mrb[0].mxu0
        %v1729 = vadd.f32 0.0, %v1728
        %v1730 = vpop.f32.mrb[0].mxu0
        %1731 = vmatprep.mubr.bf16.mxu0 %v1478
        %1732 = vmatmul.mubr.bf16.gmra.mrb[0].mxu0 %v1477
        %v1733 = vpop.f32.mrb[0].mxu0
        %v1734 = vadd.f32 0.0, %v1733
        %v1735 = vpop.f32.mrb[0].mxu0
        %v1736 = vpop.f32.mrb[0].mxu0
        %v1737 = vadd.f32 0.0, %v1736
        %v1738 = vpop.f32.mrb[0].mxu0
        %1739 = vmatprep.mubr.bf16.mxu0 %v1481
        %1740 = vmatmul.mubr.bf16.gmra.mrb[0].mxu0 %v1480
        %v1741 = vpop.f32.mrb[0].mxu0
        %v1742 = vadd.f32 0.0, %v1741
        %v1743 = vpop.f32.mrb[0].mxu0
        %v1744 = vpop.f32.mrb[0].mxu0
        %v1745 = vadd.f32 0.0, %v1744
        %v1746 = vpop.f32.mrb[0].mxu0
        %1747 = vmatprep.mubr.bf16.mxu0 %v1484
        %1748 = vmatmul.mubr.bf16.gmra.mrb[0].mxu0 %v1483
        %v1749 = vpop.f32.mrb[0].mxu0
        %v1750 = vadd.f32 0.0, %v1749
        %v1751 = vpop.f32.mrb[0].mxu0
        %v1752 = vpop.f32.mrb[0].mxu0
        %v1753 = vadd.f32 0.0, %v1752
        %v1754 = vpop.f32.mrb[0].mxu0
        %1755 = vmatprep.mubr.bf16.mxu0 %v1487
        %1756 = vmatmul.mubr.bf16.gmra.mrb[0].mxu0 %v1486
        %v1757 = vpop.f32.mrb[0].mxu0
        %v1758 = vadd.f32 0.0, %v1757
        %v1759 = vpop.f32.mrb[0].mxu0
        %v1760 = vpop.f32.mrb[0].mxu0
        %v1761 = vadd.f32 0.0, %v1760
        %v1762 = vpop.f32.mrb[0].mxu0
        %1763 = vmatprep.mubr.bf16.mxu0 %v1490
        %1764 = vmatmul.mubr.bf16.gmra.mrb[0].mxu0 %v1489
        %v1765 = vpop.f32.mrb[0].mxu0
        %v1766 = vadd.f32 0.0, %v1765
        %v1767 = vpop.f32.mrb[0].mxu0
        %v1768 = vpop.f32.mrb[0].mxu0
        %v1769 = vadd.f32 0.0, %v1768
        %v1770 = vpop.f32.mrb[0].mxu0
        %1771 = vmatprep.mubr.bf16.mxu0 %v1493
        %1772 = vmatmul.mubr.bf16.gmra.mrb[0].mxu0 %v1492
        %v1773 = vpop.f32.mrb[0].mxu0
        %v1774 = vadd.f32 0.0, %v1773
        %v1775 = vpop.f32.mrb[0].mxu0
        %v1776 = vpop.f32.mrb[0].mxu0
        %v1777 = vadd.f32 0.0, %v1776
        %v1778 = vpop.f32.mrb[0].mxu0
        %1779 = vmatprep.mubr.bf16.mxu0 %v1496
        %1780 = vmatmul.mubr.bf16.gmra.mrb[0].mxu0 %v1495
        %v1781 = vpop.f32.mrb[0].mxu0
        %v1782 = vadd.f32 0.0, %v1781
        %v1783 = vpop.f32.mrb[0].mxu0
        %v1784 = vpop.f32.mrb[0].mxu0
        %v1785 = vadd.f32 0.0, %v1784
        %v1786 = vpop.f32.mrb[0].mxu0
        %1787 = vdwg.mxu0
        %1788 = vmatprep.subr.bf16.mxu0 0
        %1789 = vmatpush1.bf16.msra.mxu0 %v1659
        %1790 = vmatprep.subr.bf16.mxu0 0
        %1791 = vmatpush1.bf16.msra.mxu0 %v1660
        %1792 = vmatprep.subr.bf16.mxu0 0
        %1793 = vmatpush1.bf16.msra.mxu0 %v1661
        %1794 = vmatprep.subr.bf16.mxu0 0
        %1795 = vmatpush1.bf16.msra.mxu0 %v1662
        %1796 = vmatprep.subr.bf16.mxu0 0
        %1797 = vmatpush1.bf16.msra.mxu0 %v1663
        %1798 = vmatprep.subr.bf16.mxu0 0
        %1799 = vmatpush1.bf16.msra.mxu0 %v1664
        %1800 = vmatprep.subr.bf16.mxu0 0
        %1801 = vmatpush1.bf16.msra.mxu0 %v1665
        %1802 = vmatprep.subr.bf16.mxu0 0
        %1803 = vmatpush1.bf16.msra.mxu0 %v1666
        %1804 = vmatprep.subr.bf16.mxu0 0
        %1805 = vmatpush1.bf16.msra.mxu0 0
        %1806 = vmatprep.subr.bf16.mxu0 0
        %1807 = vmatpush1.bf16.msra.mxu0 0
        %1808 = vmatprep.subr.bf16.mxu0 0
        %1809 = vmatpush1.bf16.msra.mxu0 0
        %1810 = vmatprep.subr.bf16.mxu0 0
        %1811 = vmatpush1.bf16.msra.mxu0 0
        %1812 = vmatprep.subr.bf16.mxu0 0
        %1813 = vmatpush1.bf16.msra.mxu0 0
        %1814 = vmatprep.subr.bf16.mxu0 0
        %1815 = vmatpush1.bf16.msra.mxu0 0
        %1816 = vmatprep.subr.bf16.mxu0 0
        %1817 = vmatpush1.bf16.msra.mxu0 0
        %1818 = vmatprep.subr.bf16.mxu0 0
        %1819 = vmatpush1.bf16.msra.mxu0 0
        %1820 = vmatprep.mubr.bf16.mxu0 0
        %1821 = vmatmul.mubr.bf16.gmra.mrb[0].mxu0 %v1476
        %v1822 = vpop.f32.mrb[0].mxu0
        %v1823 = vadd.f32 %v1726, %v1822
        %v1824 = vpop.f32.mrb[0].mxu0
        %v1825 = vpop.f32.mrb[0].mxu0
        %v1826 = vadd.f32 %v1729, %v1825
        %v1827 = vpop.f32.mrb[0].mxu0
        %1828 = vmatprep.mubr.bf16.mxu0 0
        %1829 = vmatmul.mubr.bf16.gmra.mrb[0].mxu0 %v1479
        %v1830 = vpop.f32.mrb[0].mxu0
        %v1831 = vadd.f32 %v1734, %v1830
        %v1832 = vpop.f32.mrb[0].mxu0
        %v1833 = vpop.f32.mrb[0].mxu0
        %v1834 = vadd.f32 %v1737, %v1833
        %v1835 = vpop.f32.mrb[0].mxu0
        %1836 = vmatprep.mubr.bf16.mxu0 0
        %1837 = vmatmul.mubr.bf16.gmra.mrb[0].mxu0 %v1482
        %v1838 = vpop.f32.mrb[0].mxu0
        %v1839 = vadd.f32 %v1742, %v1838
        %v1840 = vpop.f32.mrb[0].mxu0
        %v1841 = vpop.f32.mrb[0].mxu0
        %v1842 = vadd.f32 %v1745, %v1841
        %v1843 = vpop.f32.mrb[0].mxu0
        %1844 = vmatprep.mubr.bf16.mxu0 0
        %1845 = vmatmul.mubr.bf16.gmra.mrb[0].mxu0 %v1485
        %v1846 = vpop.f32.mrb[0].mxu0
        %v1847 = vadd.f32 %v1750, %v1846
        %v1848 = vpop.f32.mrb[0].mxu0
        %v1849 = vpop.f32.mrb[0].mxu0
        %v1850 = vadd.f32 %v1753, %v1849
        %v1851 = vpop.f32.mrb[0].mxu0
        %1852 = vmatprep.mubr.bf16.mxu0 0
        %1853 = vmatmul.mubr.bf16.gmra.mrb[0].mxu0 %v1488
        %v1854 = vpop.f32.mrb[0].mxu0
        %v1855 = vadd.f32 %v1758, %v1854
        %v1856 = vpop.f32.mrb[0].mxu0
        %v1857 = vpop.f32.mrb[0].mxu0
        %v1858 = vadd.f32 %v1761, %v1857
        %v1859 = vpop.f32.mrb[0].mxu0
        %1860 = vmatprep.mubr.bf16.mxu0 0
        %1861 = vmatmul.mubr.bf16.gmra.mrb[0].mxu0 %v1491
        %v1862 = vpop.f32.mrb[0].mxu0
        %v1863 = vadd.f32 %v1766, %v1862
        %v1864 = vpop.f32.mrb[0].mxu0
        %v1865 = vpop.f32.mrb[0].mxu0
        %v1866 = vadd.f32 %v1769, %v1865
        %v1867 = vpop.f32.mrb[0].mxu0
        %1868 = vmatprep.mubr.bf16.mxu0 0
        %1869 = vmatmul.mubr.bf16.gmra.mrb[0].mxu0 %v1494
        %v1870 = vpop.f32.mrb[0].mxu0
        %v1871 = vadd.f32 %v1774, %v1870
        %v1872 = vpop.f32.mrb[0].mxu0
        %v1873 = vpop.f32.mrb[0].mxu0
        %v1874 = vadd.f32 %v1777, %v1873
        %v1875 = vpop.f32.mrb[0].mxu0
        %1876 = vmatprep.mubr.bf16.mxu0 0
        %1877 = vmatmul.mubr.bf16.gmra.mrb[0].mxu0 %v1497
        %v1878 = vpop.f32.mrb[0].mxu0
        %v1879 = vadd.f32 %v1782, %v1878
        %v1880 = vpop.f32.mrb[0].mxu0
        %v1881 = vpop.f32.mrb[0].mxu0
        %v1882 = vadd.f32 %v1785, %v1881
        %v1883 = vpop.f32.mrb[0].mxu0
        %1884 = vdwg.mxu0
        %v1885 = vadd.f32 %v1411, %v1823
        %v1886 = vadd.f32 %v1414, %v1826
        %v1887 = vadd.f32 %v1419, %v1831
        %v1888 = vadd.f32 %v1422, %v1834
        %v1889 = vadd.f32 %v1427, %v1839
        %v1890 = vadd.f32 %v1430, %v1842
        %v1891 = vadd.f32 %v1435, %v1847
        %v1892 = vadd.f32 %v1438, %v1850
        %v1893 = vadd.f32 %v1443, %v1855
        %v1894 = vadd.f32 %v1446, %v1858
        %v1895 = vadd.f32 %v1451, %v1863
        %v1896 = vadd.f32 %v1454, %v1866
        %v1897 = vadd.f32 %v1459, %v1871
        %v1898 = vadd.f32 %v1462, %v1874
        %v1899 = vadd.f32 %v1467, %v1879
        %v1900 = vadd.f32 %v1470, %v1882
        %v1901 = vpack.c.bf16 %v1886, %v1885
        %v1902 = vpack.c.bf16 %v1888, %v1887
        %v1903 = vpack.c.bf16 %v1890, %v1889
        %v1904 = vpack.c.bf16 %v1892, %v1891
        %v1905 = vpack.c.bf16 %v1894, %v1893
        %v1906 = vpack.c.bf16 %v1896, %v1895
        %v1907 = vpack.c.bf16 %v1898, %v1897
        %v1908 = vpack.c.bf16 %v1900, %v1899
        %v1917 = vunpack.c.l.b16 %v1901
        %v1918 = vunpack.c.h.b16 %v1901
        %v1919 = vunpack.c.l.b16 %v1902
        %v1920 = vunpack.c.h.b16 %v1902
        %v1921 = vunpack.c.l.b16 %v1903
        %v1922 = vunpack.c.h.b16 %v1903
        %v1923 = vunpack.c.l.b16 %v1904
        %v1924 = vunpack.c.h.b16 %v1904
        %v1925 = vunpack.c.l.b16 %v1905
        %v1926 = vunpack.c.h.b16 %v1905
        %v1927 = vunpack.c.l.b16 %v1906
        %v1928 = vunpack.c.h.b16 %v1906
        %v1929 = vunpack.c.l.b16 %v1907
        %v1930 = vunpack.c.h.b16 %v1907
        %v1931 = vunpack.c.l.b16 %v1908
        %v1932 = vunpack.c.h.b16 %v1908
        %v1933 = vpack.c.b16 %v1917, %v1917
        %v1934 = vpack.c.b16 %v1918, %v1918
        %v1935 = vpack.c.b16 %v1919, %v1919
        %v1936 = vpack.c.b16 %v1920, %v1920
        %v1937 = vpack.c.b16 %v1921, %v1921
        %v1938 = vpack.c.b16 %v1922, %v1922
        %v1939 = vpack.c.b16 %v1923, %v1923
        %v1940 = vpack.c.b16 %v1924, %v1924
        %v1941 = vpack.c.b16 %v1925, %v1925
        %v1942 = vpack.c.b16 %v1926, %v1926
        %v1943 = vpack.c.b16 %v1927, %v1927
        %v1944 = vpack.c.b16 %v1928, %v1928
        %v1945 = vpack.c.b16 %v1929, %v1929
        %v1946 = vpack.c.b16 %v1930, %v1930
        %v1947 = vpack.c.b16 %v1931, %v1931
        %v1948 = vpack.c.b16 %v1932, %v1932
        %1965 = vst [vmem:[%s302] sm:$0xf] %v1933
        %1966 = vst [vmem:[%s302 + $0x4] sm:$0xf] %v1934
        %1967 = vst [vmem:[%s302 + $0x8] sm:$0xf] %v1935
        %1968 = vst [vmem:[%s302 + $0xc] sm:$0xf] %v1936
        %1969 = vst [vmem:[%s302 + $0x10] sm:$0xf] %v1937
        %1970 = vst [vmem:[%s302 + $0x14] sm:$0xf] %v1938
        %1971 = vst [vmem:[%s302 + $0x18] sm:$0xf] %v1939
        %1972 = vst [vmem:[%s302 + $0x1c] sm:$0xf] %v1940
        %1973 = vst [vmem:[%s302 + $0x20] sm:$0xf] %v1941
        %1974 = vst [vmem:[%s302 + $0x24] sm:$0xf] %v1942
        %1975 = vst [vmem:[%s302 + $0x28] sm:$0xf] %v1943
        %1976 = vst [vmem:[%s302 + $0x2c] sm:$0xf] %v1944
        %1977 = vst [vmem:[%s302 + $0x30] sm:$0xf] %v1945
        %1978 = vst [vmem:[%s302 + $0x34] sm:$0xf] %v1946
        %1979 = vst [vmem:[%s302 + $0x38] sm:$0xf] %v1947
        %1980 = vst [vmem:[%s302 + $0x3c] sm:$0xf] %v1948
        %v1981 = vunpack.c.l.bf16 %v1901
        %v1982 = vunpack.c.h.bf16 %v1901
        %v1983 = vunpack.c.l.bf16 %v1902
        %v1984 = vunpack.c.h.bf16 %v1902
        %v1985 = vunpack.c.l.bf16 %v1903
        %v1986 = vunpack.c.h.bf16 %v1903
        %v1987 = vunpack.c.l.bf16 %v1904
        %v1988 = vunpack.c.h.bf16 %v1904
        %v1989 = vunpack.c.l.bf16 %v1905
        %v1990 = vunpack.c.h.bf16 %v1905
        %v1991 = vunpack.c.l.bf16 %v1906
        %v1992 = vunpack.c.h.bf16 %v1906
        %v1993 = vunpack.c.l.bf16 %v1907
        %v1994 = vunpack.c.h.bf16 %v1907
        %v1995 = vunpack.c.l.bf16 %v1908
        %v1996 = vunpack.c.h.bf16 %v1908
        %v1997 = vadd.f32 %v1981, %v1982
        %v1998 = vadd.f32 %v1997, %v1983
        %v1999 = vadd.f32 %v1998, %v1984
        %v2000 = vadd.f32 %v1999, %v1985
        %v2001 = vadd.f32 %v2000, %v1986
        %v2002 = vadd.f32 %v2001, %v1987
        %v2003 = vadd.f32 %v2002, %v1988
        %v2004 = vadd.f32 %v2003, %v1989
        %v2005 = vadd.f32 %v2004, %v1990
        %v2006 = vadd.f32 %v2005, %v1991
        %v2007 = vadd.f32 %v2006, %v1992
        %v2008 = vadd.f32 %v2007, %v1993
        %v2009 = vadd.f32 %v2008, %v1994
        %v2010 = vadd.f32 %v2009, %v1995
        %v2011 = vadd.f32 %v2010, %v1996
        %v2012 = vrot.slane %v2011, 4
        %v2013 = vadd.f32 %v2011, %v2012
        %v2014 = vrot.slane %v2013, 2
        %v2015 = vadd.f32 %v2013, %v2014
        %v2016 = vrot.slane %v2015, 1
        %v2017 = vadd.f32 %v2015, %v2016
        %v2018 = vmul.f32 %v1981, %v1981
        %v2019 = vmul.f32 %v1982, %v1982
        %v2020 = vmul.f32 %v1983, %v1983
        %v2021 = vmul.f32 %v1984, %v1984
        %v2022 = vmul.f32 %v1985, %v1985
        %v2023 = vmul.f32 %v1986, %v1986
        %v2024 = vmul.f32 %v1987, %v1987
        %v2025 = vmul.f32 %v1988, %v1988
        %v2026 = vmul.f32 %v1989, %v1989
        %v2027 = vmul.f32 %v1990, %v1990
        %v2028 = vmul.f32 %v1991, %v1991
        %v2029 = vmul.f32 %v1992, %v1992
        %v2030 = vmul.f32 %v1993, %v1993
        %v2031 = vmul.f32 %v1994, %v1994
        %v2032 = vmul.f32 %v1995, %v1995
        %v2033 = vmul.f32 %v1996, %v1996
        %v2034 = vadd.f32 %v2018, %v2019
        %v2035 = vadd.f32 %v2034, %v2020
        %v2036 = vadd.f32 %v2035, %v2021
        %v2037 = vadd.f32 %v2036, %v2022
        %v2038 = vadd.f32 %v2037, %v2023
        %v2039 = vadd.f32 %v2038, %v2024
        %v2040 = vadd.f32 %v2039, %v2025
        %v2041 = vadd.f32 %v2040, %v2026
        %v2042 = vadd.f32 %v2041, %v2027
        %v2043 = vadd.f32 %v2042, %v2028
        %v2044 = vadd.f32 %v2043, %v2029
        %v2045 = vadd.f32 %v2044, %v2030
        %v2046 = vadd.f32 %v2045, %v2031
        %v2047 = vadd.f32 %v2046, %v2032
        %v2048 = vadd.f32 %v2047, %v2033
        %v2049 = vrot.slane %v2048, 4
        %v2050 = vadd.f32 %v2048, %v2049
        %v2051 = vrot.slane %v2050, 2
        %v2052 = vadd.f32 %v2050, %v2051
        %v2053 = vrot.slane %v2052, 1
        %v2054 = vadd.f32 %v2052, %v2053
        %vm2055 = vcmask 1040384
        %v2056 = vsel %vm2055, %v2017, %v2054
        %2057 = vst [vmem:[%s309] sm:$0x3] %v2056
        %s2058 = sand.u32 %s139, 1
        %s2059 = scalar_lea.sflag [#allocation5], %s2058
        %s2060 = sand.u32 %s139, 1
        %s2061 = smul.addr %s2060, 64
        %s2062 = scalar_lea.vmem [#allocation11], %s2061
        %s2063 = sand.u32 %s167, 1
        %s2064 = scalar_lea.sflag [#allocation13], %s2063
        %s2065 = sand.u32 %s167, 1
        %s2066 = smul.addr %s2065, 2
        %s2067 = scalar_lea.vmem [#allocation12], %s2066
        // Predicated region
        $region53: #{resblock_forward.4} parent=35 // pred_check
          %p2068 = pneg %p149
        $region54: #{resblock_forward.4} parent=35 // pred_check_branch
          %2070 = sbr.rel (%p2068) target = $region56
        $region55: #{resblock_forward.4} parent=35 // pred_region
          %s2071 = smul.u32 8, %s33
          %s2073 = ssub.s32 1024, 1024
          %2074 = vsyncadd %s2059, %s2073
          %s2075 = smul.addr %s2071, 2
          %s2076 = smul.addr %s32, 32
          %s2077 = sadd.s32 %s2075, %s2076
          %s2078 = smul.addr %s2077, 64
          %s2079 = scalar_lea.hbm %s4, %s2078
          %s2080 = sshll.u32 %s2062, 4
          %s2081 = int_to_ptr.vmem [resolvable:$true] %s2080
          %2086 = dma.vmem_to_hbm [thread:$0]  %s2081, 1024, %s2079, %s2059, 64, 64, 4
        $region56: #{resblock_forward.4} parent=35 // pred_fallthru
          _
        // Predicated region
        $region57: #{resblock_forward.4} parent=35 // pred_check
          %p2087 = pneg %p177
        $region58: #{resblock_forward.4} parent=35 // pred_check_branch
          %2089 = sbr.rel (%p2087) target = $region60
        $region59: #{resblock_forward.4} parent=35 // pred_region
          %s2091 = ssub.s32 32, 32
          %2092 = vsyncadd %s2064, %s2091
          %s2093 = smul.addr %s32, 2
          %s2094 = sadd.s32 %s33, %s2093
          %s2095 = smul.addr %s2094, 32
          %s2096 = scalar_lea.hbm %s5, %s2095
          %s2098 = sshll.u32 %s2067, 4
          %s2099 = int_to_ptr.vmem [resolvable:$true] %s2098
          %2101 = dma.vmem_to_hbm [thread:$0]  %s2099, 32, %s2096, %s2064
        $region60: #{resblock_forward.4} parent=35 // pred_fallthru
          _
      $region36: #{resblock_forward.4} parent=5 // pred_fallthru
        _
      %p2102 = scmp.le.s32.totalorder 2, %s23
      // Predicated region
      $region61: #{resblock_forward.4} parent=5 // pred_check
        %p2103 = pneg %p2102
      $region62: #{resblock_forward.4} parent=5 // pred_check_branch
        %2105 = sbr.rel (%p2103) target = $region64
      $region63: #{resblock_forward.4} parent=5 // pred_region
        %s2106 = ssub.s32 %s23, 2
        // Predicated region
        $region65: #{resblock_forward.4} parent=63 // pred_check
          %p2107 = pneg %p155
        $region66: #{resblock_forward.4} parent=63 // pred_check_branch
          %2109 = sbr.rel (%p2107) target = $region68
        $region67: #{resblock_forward.4} parent=63 // pred_region
          %s2110 = sand.u32 %s140, 1
          %s2111 = scalar_lea.sflag [#allocation5], %s2110
          %s2112 = sand.u32 %s140, 1
          %s2113 = smul.addr %s2112, 64
          %s2114 = scalar_lea.vmem [#allocation11], %s2113
          %2115 = dma.done %s2111, 1024
        $region68: #{resblock_forward.4} parent=63 // pred_fallthru
          _
        // Predicated region
        $region69: #{resblock_forward.4} parent=63 // pred_check
          %p2116 = pneg %p183
        $region70: #{resblock_forward.4} parent=63 // pred_check_branch
          %2118 = sbr.rel (%p2116) target = $region72
        $region71: #{resblock_forward.4} parent=63 // pred_region
          %s2119 = sand.u32 %s168, 1
          %s2120 = scalar_lea.sflag [#allocation13], %s2119
          %s2121 = sand.u32 %s168, 1
          %s2122 = smul.addr %s2121, 2
          %s2123 = scalar_lea.vmem [#allocation12], %s2122
          %2124 = dma.done %s2120, 32
        $region72: #{resblock_forward.4} parent=63 // pred_fallthru
          _
      $region64: #{resblock_forward.4} parent=5 // pred_fallthru
        _
    $region6: #{resblock_forward.4} parent=1 // loop_footer
      %s27 = sadd.s32 1, %s23
    $region7: #{resblock_forward.4} parent=1 // loop_footer_branch
      %22 = sbr.rel target = $region3
    $region8: #{resblock_forward.4} parent=1 // loop_exit
      _
    %2125 = vsyncpa [#allocation4], 1
    %s2126 = scalar_lea.sflag [#allocation4], 1
    %2127 = vsyncpa %s2126, 1
    %2128 = vsyncpa [#allocation7], 1
    %2129 = vsyncpa [#allocation10], 1
    %2130 = vsyncpa [#allocation5], 1
    %s2131 = scalar_lea.sflag [#allocation5], 1
    %2132 = vsyncpa %s2131, 1
    %2133 = vsyncpa [#allocation13], 1
    %s2134 = scalar_lea.sflag [#allocation13], 1
    %2135 = vsyncpa %s2134, 1

// kernel: resblock_forward.3
$region0: #{resblock_forward.3}
  #allocation0 [shape = 'u32[]', space=smem, size = 0x4, offset = 0x4, fixed_abs, tag = 'smem constant byte address 0x4 - core index']
  #allocation1 [shape = 'u32[144,128]{1,0:T(1,128)}', space=vmem, size = 0x12000, scoped, tag = 'internal scratch']
  #allocation2 [shape = 'bf16[10,16,384]{2,1,0:T(16,128)(2,1)}', space=vmem, size = 0x1e000, scoped, tag = 'scratch operand']
  %s0 = inlined_call_operand.hbm [shape: f32[2,16,16,128], index: 0, kind: input, shape index: {}]
  %s1 = inlined_call_operand.hbm [shape: bf16[3,384,128], index: 1, kind: input, shape index: {}]
  %s2 = inlined_call_operand.hbm [shape: bf16[2,16,16,128], index: 2, kind: output, shape index: {0}]
  %s3 = inlined_call_operand.hbm [shape: f32[2,2,2,128], index: 3, kind: output, shape index: {1}]
  %4 = xla_tuple %s2, %s3
  %s5 = sld [smem:[#allocation0]]
  $region57: #{resblock_forward.3} parent=0
    _
  %s7 = ssub.s32 1, %s5
  %s8 = scalar_select 0, %s7, %s5
  $region1: #{resblock_forward.3} parent=0
    #allocation3 [shape = 'u8[262144]{0}', space=vmem, size = 0x40000, scoped, tag = 'input window, operand 0']
    #allocation4 [shape = 's32[2]{0}', space=sflag, size = 0x8, scoped, tag = 'scoped memory for resblock_forward.3']
    #allocation5 [shape = 's32[2]{0}', space=sflag, size = 0x8, scoped, tag = 'scoped memory for resblock_forward.3']
    #allocation6 [shape = 'u8[294912]{0}', space=vmem, size = 0x48000, scoped, tag = 'input window, operand 1, single buffered']
    #allocation7 [shape = 's32[1]{0}', space=sflag, size = 0x4, scoped, tag = 'scoped memory for resblock_forward.3']
    #allocation8 [shape = 'u8[65536]{0}', space=vmem, size = 0x10000, scoped, tag = 'output window, operand 0']
    #allocation9 [shape = 'u8[2048]{0}', space=vmem, size = 0x800, scoped, tag = 'output window, operand 1']
    #allocation10 [shape = 's32[2]{0}', space=sflag, size = 0x8, scoped, tag = 'scoped memory for resblock_forward.3']
    %9 = vsyncpa [#allocation4], 0
    %s10 = scalar_lea.sflag [#allocation4], 1
    %11 = vsyncpa %s10, 0
    %12 = vsyncpa [#allocation7], 0
    %13 = vsyncpa [#allocation5], 0
    %s14 = scalar_lea.sflag [#allocation5], 1
    %15 = vsyncpa %s14, 0
    %16 = vsyncpa [#allocation10], 0
    %s17 = scalar_lea.sflag [#allocation10], 1
    %18 = vsyncpa %s17, 0
    loop: start=0, step=1, limit=6
    $region2: #{resblock_forward.3} parent=1 // loop_pre_header
      _
    $region3: #{resblock_forward.3} parent=1 // loop_header
      %s20 = sphi 0, %s24
      %p21 = scmp.ge.s32.totalorder %s20, 6
      %s27 = sphi 0, %s39
      %s28 = sphi 0, %s35
      %s29 = sphi 0, %s27
      %s30 = sphi 0, %s28
      %s31 = sphi 0, %s29
      %s32 = sphi 0, %s30
      %s42 = sphi 0, %s44
      %s45 = sphi 0, %s42
      %s46 = sphi 0, %s45
      %s62 = sphi 0, %s46
      %s66 = sphi 0, %s66
      %s68 = sphi 0, %s66
      %s69 = sphi 0, %s68
      %s83 = sphi 0, %s69
      %s91 = sphi 0, %s93
      %s94 = sphi 0, %s91
      %s95 = sphi 0, %s94
      %s111 = sphi 0, %s95
      %s119 = sphi 0, %s121
      %s122 = sphi 0, %s119
      %s123 = sphi 0, %s122
      %s139 = sphi 0, %s123
    $region4: #{resblock_forward.3} parent=1 // loop_header_branch
      %23 = sbr.rel (%p21) target = $region8
    $region5: #{resblock_forward.3} parent=1 // loop_body
      %s25 = ssub.s32 %s20, 1
      %s26 = ssub.s32 %s20, 2
      %s33 = sadd.s32 1, %s28
      %p34 = scmp.ge.s32.totalorder %s33, 2
      %s35 = scalar_select %p34, 0, %s33
      %s36 = sadd.s32 1, %s27
      %s37 = scalar_select %p34, %s36, %s27
      %p38 = scmp.ge.s32.totalorder %s37, 2
      %s39 = scalar_select %p38, 0, %s37
      %s40 = ssub.s32 %s27, %s39
      %p41 = scmp.eq.s32.totalorder %s40, 0
      %s43 = sadd.s32 %s42, 1
      %s44 = scalar_select %p41, %s42, %s43
      %p47 = pneg %p41
      %p48 = scmp.eq.s32.totalorder %s20, 3
      %p49 = por %p47, %p48
      %p50 = scmp.ne.s32.totalorder %s42, %s45
      %p51 = scmp.eq.s32.totalorder %s20, 0
      %p52 = por %p50, %p51
      %p53 = scmp.ne.s32.totalorder %s42, %s45
      %p54 = scmp.eq.s32.totalorder %s25, 3
      %p55 = por %p53, %p54
      %p56 = scmp.ne.s32.totalorder %s45, %s46
      %p57 = scmp.eq.s32.totalorder %s25, 0
      %p58 = por %p56, %p57
      %p59 = scmp.ne.s32.totalorder %s45, %s46
      %p60 = scmp.eq.s32.totalorder %s26, 3
      %p61 = por %p59, %p60
      %p63 = scmp.ne.s32.totalorder %s46, %s62
      %p64 = scmp.eq.s32.totalorder %s26, 0
      %p65 = por %p63, %p64
      %s67 = sadd.s32 %s66, 1
      %p70 = scmp.eq.s32.totalorder %s20, 3
      %p71 = scmp.ne.s32.totalorder %s66, %s68
      %p72 = scmp.eq.s32.totalorder %s20, 0
      %p73 = por %p71, %p72
      %p74 = scmp.ne.s32.totalorder %s66, %s68
      %p75 = scmp.eq.s32.totalorder %s25, 3
      %p76 = por %p74, %p75
      %p77 = scmp.ne.s32.totalorder %s68, %s69
      %p78 = scmp.eq.s32.totalorder %s25, 0
      %p79 = por %p77, %p78
      %p80 = scmp.ne.s32.totalorder %s68, %s69
      %p81 = scmp.eq.s32.totalorder %s26, 3
      %p82 = por %p80, %p81
      %p84 = scmp.ne.s32.totalorder %s69, %s83
      %p85 = scmp.eq.s32.totalorder %s26, 0
      %p86 = por %p84, %p85
      %s87 = ssub.s32 %s27, %s39
      %s88 = ssub.s32 %s28, %s35
      %s89 = sor.u32 %s87, %s88
      %p90 = scmp.eq.s32.totalorder %s89, 0
      %s92 = sadd.s32 %s91, 1
      %s93 = scalar_select %p90, %s91, %s92
      %p96 = pneg %p90
      %p97 = scmp.eq.s32.totalorder %s20, 3
      %p98 = por %p96, %p97
      %p99 = scmp.ne.s32.totalorder %s91, %s94
      %p100 = scmp.eq.s32.totalorder %s20, 0
      %p101 = por %p99, %p100
      %p102 = scmp.ne.s32.totalorder %s91, %s94
      %p103 = scmp.eq.s32.totalorder %s25, 3
      %p104 = por %p102, %p103
      %p105 = scmp.ne.s32.totalorder %s94, %s95
      %p106 = scmp.eq.s32.totalorder %s25, 0
      %p107 = por %p105, %p106
      %p108 = scmp.ne.s32.totalorder %s94, %s95
      %p109 = scmp.eq.s32.totalorder %s26, 3
      %p110 = por %p108, %p109
      %p112 = scmp.ne.s32.totalorder %s95, %s111
      %p113 = scmp.eq.s32.totalorder %s26, 0
      %p114 = por %p112, %p113
      %s115 = ssub.s32 %s27, %s39
      %s116 = ssub.s32 %s28, %s35
      %s117 = sor.u32 %s115, %s116
      %p118 = scmp.eq.s32.totalorder %s117, 0
      %s120 = sadd.s32 %s119, 1
      %s121 = scalar_select %p118, %s119, %s120
      %p124 = pneg %p118
      %p125 = scmp.eq.s32.totalorder %s20, 3
      %p126 = por %p124, %p125
      %p127 = scmp.ne.s32.totalorder %s119, %s122
      %p128 = scmp.eq.s32.totalorder %s20, 0
      %p129 = por %p127, %p128
      %p130 = scmp.ne.s32.totalorder %s119, %s122
      %p131 = scmp.eq.s32.totalorder %s25, 3
      %p132 = por %p130, %p131
      %p133 = scmp.ne.s32.totalorder %s122, %s123
      %p134 = scmp.eq.s32.totalorder %s25, 0
      %p135 = por %p133, %p134
      %p136 = scmp.ne.s32.totalorder %s122, %s123
      %p137 = scmp.eq.s32.totalorder %s26, 3
      %p138 = por %p136, %p137
      %p140 = scmp.ne.s32.totalorder %s123, %s139
      %p141 = scmp.eq.s32.totalorder %s26, 0
      %p142 = por %p140, %p141
      %p143 = scmp.le.s32.totalorder 1, %s20
      %p144 = scmp.lt.s32.totalorder %s20, 5
      %p145 = pnand %p143, %p144
      %p146 = pneg %p145
      // Predicated region
      $region9: #{resblock_forward.3} parent=5 // pred_check
        _
      $region10: #{resblock_forward.3} parent=5 // pred_check_branch
        %148 = sbr.rel (%p145) target = $region12
      $region11: #{resblock_forward.3} parent=5 // pred_region
        %s149 = ssub.s32 %s20, 1
        // Predicated region
        $region13: #{resblock_forward.3} parent=11 // pred_check
          %p150 = pneg %p79
        $region14: #{resblock_forward.3} parent=11 // pred_check_branch
          %152 = sbr.rel (%p150) target = $region16
        $region15: #{resblock_forward.3} parent=11 // pred_region
          %s154 = ssub.s32 9216, 9216
          %155 = vsyncadd [#allocation7], %s154
          %s156 = sshll.u32 [#allocation6], 4
          %s157 = int_to_ptr.vmem [resolvable:$true] %s156
          %162 = dma.hbm_to_vmem [thread:$0]  %s1, 9216, %s157, [#allocation7], 64, 64, 4
        $region16: #{resblock_forward.3} parent=11 // pred_fallthru
          _
      $region12: #{resblock_forward.3} parent=5 // pred_fallthru
        _
      %p163 = scmp.lt.s32.totalorder %s20, 4
      // Predicated region
      $region17: #{resblock_forward.3} parent=5 // pred_check
        %p164 = pneg %p163
      $region18: #{resblock_forward.3} parent=5 // pred_check_branch
        %166 = sbr.rel (%p164) target = $region20
      $region19: #{resblock_forward.3} parent=5 // pred_region
        // Predicated region
        $region21: #{resblock_forward.3} parent=19 // pred_check
          %p167 = pneg %p52
        $region22: #{resblock_forward.3} parent=19 // pred_check_branch
          %169 = sbr.rel (%p167) target = $region24
        $region23: #{resblock_forward.3} parent=19 // pred_region
          %s170 = sand.u32 %s42, 1
          %s171 = scalar_lea.sflag [#allocation4], %s170
          %s172 = sand.u32 %s42, 1
          %s173 = smul.addr %s172, 256
          %s174 = scalar_lea.vmem [#allocation3], %s173
          %s176 = ssub.s32 4096, 4096
          %177 = vsyncadd %s171, %s176
          %s178 = smul.addr %s27, 32
          %s179 = smul.addr %s178, 128
          %s180 = scalar_lea.hbm %s0, %s179
          %s181 = sshll.u32 %s174, 4
          %s182 = int_to_ptr.vmem [resolvable:$true] %s181
          %187 = dma.hbm_to_vmem [thread:$0]  %s180, 4096, %s182, %s171, 128, 128, 8
        $region24: #{resblock_forward.3} parent=19 // pred_fallthru
          _
      $region20: #{resblock_forward.3} parent=5 // pred_fallthru
        _
      %p188 = scmp.le.s32.totalorder 1, %s20
      %p189 = scmp.lt.s32.totalorder %s20, 5
      %p190 = pnand %p188, %p189
      %p191 = pneg %p190
      // Predicated region
      $region25: #{resblock_forward.3} parent=5 // pred_check
        _
      $region26: #{resblock_forward.3} parent=5 // pred_check_branch
        %193 = sbr.rel (%p190) target = $region28
      $region27: #{resblock_forward.3} parent=5 // pred_region
        %s194 = ssub.s32 %s20, 1
        %s195 = sand.u32 %s45, 1
        %s196 = scalar_lea.sflag [#allocation4], %s195
        %s197 = sand.u32 %s45, 1
        %s198 = smul.addr %s197, 256
        %s199 = scalar_lea.vmem [#allocation3], %s198
        // Predicated region
        $region29: #{resblock_forward.3} parent=27 // pred_check
          %p200 = pneg %p58
        $region30: #{resblock_forward.3} parent=27 // pred_check_branch
          %202 = sbr.rel (%p200) target = $region32
        $region31: #{resblock_forward.3} parent=27 // pred_region
          %203 = dma.done %s196, 4096
        $region32: #{resblock_forward.3} parent=27 // pred_fallthru
          _
        // Predicated region
        $region33: #{resblock_forward.3} parent=27 // pred_check
          %p204 = pneg %p79
        $region34: #{resblock_forward.3} parent=27 // pred_check_branch
          %206 = sbr.rel (%p204) target = $region36
        $region35: #{resblock_forward.3} parent=27 // pred_region
          %207 = dma.done [#allocation7], 9216
        $region36: #{resblock_forward.3} parent=27 // pred_fallthru
          _
        %s208 = sand.u32 %s45, 1
        %s209 = scalar_lea.sflag [#allocation4], %s208
        %s210 = sand.u32 %s45, 1
        %s211 = smul.addr %s210, 256
        %s212 = scalar_lea.vmem [#allocation3], %s211
        %p213 = pneg %p58
        %p214 = pneg %p55
        %p215 = pneg %p79
        %p216 = pneg %p76
        %p217 = pneg %p107
        %p218 = pneg %p104
        %s219 = sand.u32 %s94, 1
        %s220 = scalar_lea.sflag [#allocation5], %s219
        %s221 = sand.u32 %s94, 1
        %s222 = smul.addr %s221, 64
        %s223 = scalar_lea.vmem [#allocation8], %s222
        %p224 = pneg %p135
        %p225 = pneg %p132
        %s226 = sand.u32 %s122, 1
        %s227 = scalar_lea.sflag [#allocation10], %s226
        %s228 = sand.u32 %s122, 1
        %s229 = smul.addr %s228, 2
        %s230 = scalar_lea.vmem [#allocation9], %s229
        %s231 = smul.u32 8, %s30
        %s233 = smul.u32 %s30, 8
        %p234 = scmp.gt.s32.totalorder %s233, 0
        %s235 = ssub.s32 %s233, 1
        %p236 = scmp.gt.s32.totalorder %s235, 0
        %s237 = scalar_select %p236, %s235, 0
        %s238 = smul.u32 %s237, 16
        %s239 = scalar_lea.vmem %s199, %s238 [#allocation3]
        %v240 = vld [vmem:[%s239] sm:$0xff]
        %v241 = vld [vmem:[%s239 + $0x8] sm:$0xff]
        %s242 = scalar_select %p234, 1, 0
        %v243 = vstv %s242
        %vm244 = vcmp.eq.s32.totalorder %v243, 1
        %v245 = vsel %vm244, %v240, 0.0
        %v246 = vsel %vm244, %v241, 0.0
        %s247 = sadd.s32 %s233, 8
        %p248 = scmp.lt.s32.totalorder %s247, 16
        %p249 = scmp.lt.s32.totalorder %s247, 15
        %s250 = scalar_select %p249, %s247, 15
        %s251 = smul.u32 %s250, 16
        %s252 = scalar_lea.vmem %s199, %s251 [#allocation3]
        %v253 = vld [vmem:[%s252] sm:$0xff]
        %v254 = vld [vmem:[%s252 + $0x8] sm:$0xff]
        %s255 = scalar_select %p248, 1, 0
        %v256 = vstv %s255
        %vm257 = vcmp.eq.s32.totalorder %v256, 1
        %v258 = vsel %vm257, %v253, 0.0
        %v259 = vsel %vm257, %v254, 0.0
        %s260 = smul.u32 %s233, 16
        %s261 = scalar_lea.vmem %s199, %s260 [#allocation3]
        %v262 = vld [vmem:[%s261] sm:$0xff]
        %v263 = vld [vmem:[%s261 + $0x8] sm:$0xff]
        %v264 = vld [vmem:[%s261 + $0x10] sm:$0xff]
        %v265 = vld [vmem:[%s261 + $0x18] sm:$0xff]
        %v266 = vld [vmem:[%s261 + $0x20] sm:$0xff]
        %v267 = vld [vmem:[%s261 + $0x28] sm:$0xff]
        %v268 = vld [vmem:[%s261 + $0x30] sm:$0xff]
        %v269 = vld [vmem:[%s261 + $0x38] sm:$0xff]
        %v270 = vld [vmem:[%s261 + $0x40] sm:$0xff]
        %v271 = vld [vmem:[%s261 + $0x48] sm:$0xff]
        %v272 = vld [vmem:[%s261 + $0x50] sm:$0xff]
        %v273 = vld [vmem:[%s261 + $0x58] sm:$0xff]
        %v274 = vld [vmem:[%s261 + $0x60] sm:$0xff]
        %v275 = vld [vmem:[%s261 + $0x68] sm:$0xff]
        %v276 = vld [vmem:[%s261 + $0x70] sm:$0xff]
        %v277 = vld [vmem:[%s261 + $0x78] sm:$0xff]
        %v278 = vlaneseq
        %v279 = vshrl.u32 %v278, 7
        %v280 = vadd.s32 %v279, 8
        %vm281 = vcmp.ge.s32.totalorder %v279, 1
        %vm282 = vcmp.ge.s32.totalorder %v280, 1
        %vm283 = vcmp.le.s32.totalorder %v279, 14
        %vm284 = vcmp.le.s32.totalorder %v280, 14
        %v285 = vrot.slane %v245, 7
        %v286 = vrot.slane %v262, 7
        %v287 = vrot.slane %v264, 7
        %v288 = vrot.slane %v266, 7
        %v289 = vrot.slane %v268, 7
        %v290 = vrot.slane %v270, 7
        %v291 = vrot.slane %v272, 7
        %v292 = vrot.slane %v274, 7
        %v293 = vrot.slane %v276, 7
        %v294 = vrot.slane %v258, 7
        %v295 = vrot.slane %v246, 7
        %v296 = vrot.slane %v263, 7
        %v297 = vrot.slane %v265, 7
        %v298 = vrot.slane %v267, 7
        %v299 = vrot.slane %v269, 7
        %v300 = vrot.slane %v271, 7
        %v301 = vrot.slane %v273, 7
        %v302 = vrot.slane %v275, 7
        %v303 = vrot.slane %v277, 7
        %v304 = vrot.slane %v259, 7
        %vm305 = vcmp.lt.s32.totalorder %v279, 1
        %v306 = vsel %vm305, %v285, %v295
        %v307 = vsel %vm305, %v286, %v296
        %v308 = vsel %vm305, %v287, %v297
        %v309 = vsel %vm305, %v288, %v298
        %v310 = vsel %vm305, %v289, %v299
        %v311 = vsel %vm305, %v290, %v300
        %v312 = vsel %vm305, %v291, %v301
        %v313 = vsel %vm305, %v292, %v302
        %v314 = vsel %vm305, %v293, %v303
        %v315 = vsel %vm305, %v294, %v304
        %v316 = vsel %vm305, %v295, %v285
        %v317 = vsel %vm305, %v296, %v286
        %v318 = vsel %vm305, %v297, %v287
        %v319 = vsel %vm305, %v298, %v288
        %v320 = vsel %vm305, %v299, %v289
        %v321 = vsel %vm305, %v300, %v290
        %v322 = vsel %vm305, %v301, %v291
        %v323 = vsel %vm305, %v302, %v292
        %v324 = vsel %vm305, %v303, %v293
        %v325 = vsel %vm305, %v304, %v294
        %v326 = vsel %vm281, 1, 0
        %v327 = vsel %vm282, 1, 0
        %vm328 = vcmp.eq.s32.totalorder %v326, 1
        %vm329 = vcmp.eq.s32.totalorder %v327, 1
        %v330 = vsel %vm328, %v316, 0.0
        %v331 = vsel %vm329, %v306, 0.0
        %v332 = vsel %vm328, %v317, 0.0
        %v333 = vsel %vm329, %v307, 0.0
        %v334 = vsel %vm328, %v318, 0.0
        %v335 = vsel %vm329, %v308, 0.0
        %v336 = vsel %vm328, %v319, 0.0
        %v337 = vsel %vm329, %v309, 0.0
        %v338 = vsel %vm328, %v320, 0.0
        %v339 = vsel %vm329, %v310, 0.0
        %v340 = vsel %vm328, %v321, 0.0
        %v341 = vsel %vm329, %v311, 0.0
        %v342 = vsel %vm328, %v322, 0.0
        %v343 = vsel %vm329, %v312, 0.0
        %v344 = vsel %vm328, %v323, 0.0
        %v345 = vsel %vm329, %v313, 0.0
        %v346 = vsel %vm328, %v324, 0.0
        %v347 = vsel %vm329, %v314, 0.0
        %v348 = vsel %vm328, %v325, 0.0
        %v349 = vsel %vm329, %v315, 0.0
        %v350 = vrot.slane %v245, 1
        %v351 = vrot.slane %v262, 1
        %v352 = vrot.slane %v264, 1
        %v353 = vrot.slane %v266, 1
        %v354 = vrot.slane %v268, 1
        %v355 = vrot.slane %v270, 1
        %v356 = vrot.slane %v272, 1
        %v357 = vrot.slane %v274, 1
        %v358 = vrot.slane %v276, 1
        %v359 = vrot.slane %v258, 1
        %v360 = vrot.slane %v246, 1
        %v361 = vrot.slane %v263, 1
        %v362 = vrot.slane %v265, 1
        %v363 = vrot.slane %v267, 1
        %v364 = vrot.slane %v269, 1
        %v365 = vrot.slane %v271, 1
        %v366 = vrot.slane %v273, 1
        %v367 = vrot.slane %v275, 1
        %v368 = vrot.slane %v277, 1
        %v369 = vrot.slane %v259, 1
        %vm370 = vcmp.lt.s32.totalorder %v279, 7
        %v371 = vsel %vm370, %v350, %v360
        %v372 = vsel %vm370, %v351, %v361
        %v373 = vsel %vm370, %v352, %v362
        %v374 = vsel %vm370, %v353, %v363
        %v375 = vsel %vm370, %v354, %v364
        %v376 = vsel %vm370, %v355, %v365
        %v377 = vsel %vm370, %v356, %v366
        %v378 = vsel %vm370, %v357, %v367
        %v379 = vsel %vm370, %v358, %v368
        %v380 = vsel %vm370, %v359, %v369
        %v381 = vsel %vm370, %v360, %v350
        %v382 = vsel %vm370, %v361, %v351
        %v383 = vsel %vm370, %v362, %v352
        %v384 = vsel %vm370, %v363, %v353
        %v385 = vsel %vm370, %v364, %v354
        %v386 = vsel %vm370, %v365, %v355
        %v387 = vsel %vm370, %v366, %v356
        %v388 = vsel %vm370, %v367, %v357
        %v389 = vsel %vm370, %v368, %v358
        %v390 = vsel %vm370, %v369, %v359
        %v391 = vsel %vm283, 1, 0
        %v392 = vsel %vm284, 1, 0
        %vm393 = vcmp.eq.s32.totalorder %v391, 1
        %vm394 = vcmp.eq.s32.totalorder %v392, 1
        %v395 = vsel %vm393, %v371, 0.0
        %v396 = vsel %vm394, %v381, 0.0
        %v397 = vsel %vm393, %v372, 0.0
        %v398 = vsel %vm394, %v382, 0.0
        %v399 = vsel %vm393, %v373, 0.0
        %v400 = vsel %vm394, %v383, 0.0
        %v401 = vsel %vm393, %v374, 0.0
        %v402 = vsel %vm394, %v384, 0.0
        %v403 = vsel %vm393, %v375, 0.0
        %v404 = vsel %vm394, %v385, 0.0
        %v405 = vsel %vm393, %v376, 0.0
        %v406 = vsel %vm394, %v386, 0.0
        %v407 = vsel %vm393, %v377, 0.0
        %v408 = vsel %vm394, %v387, 0.0
        %v409 = vsel %vm393, %v378, 0.0
        %v410 = vsel %vm394, %v388, 0.0
        %v411 = vsel %vm393, %v379, 0.0
        %v412 = vsel %vm394, %v389, 0.0
        %v413 = vsel %vm393, %v380, 0.0
        %v414 = vsel %vm394, %v390, 0.0
        %v415 = vpack.c.bf16 %v331, %v330
        %v416 = vpack.c.bf16 %v246, %v245
        %v417 = vpack.c.bf16 %v396, %v395
        %v418 = vpack.c.bf16 %v333, %v332
        %v419 = vpack.c.bf16 %v263, %v262
        %v420 = vpack.c.bf16 %v398, %v397
        %v421 = vpack.c.bf16 %v335, %v334
        %v422 = vpack.c.bf16 %v265, %v264
        %v423 = vpack.c.bf16 %v400, %v399
        %v424 = vpack.c.bf16 %v337, %v336
        %v425 = vpack.c.bf16 %v267, %v266
        %v426 = vpack.c.bf16 %v402, %v401
        %v427 = vpack.c.bf16 %v339, %v338
        %v428 = vpack.c.bf16 %v269, %v268
        %v429 = vpack.c.bf16 %v404, %v403
        %v430 = vpack.c.bf16 %v341, %v340
        %v431 = vpack.c.bf16 %v271, %v270
        %v432 = vpack.c.bf16 %v406, %v405
        %v433 = vpack.c.bf16 %v343, %v342
        %v434 = vpack.c.bf16 %v273, %v272
        %v435 = vpack.c.bf16 %v408, %v407
        %v436 = vpack.c.bf16 %v345, %v344
        %v437 = vpack.c.bf16 %v275, %v274
        %v438 = vpack.c.bf16 %v410, %v409
        %v439 = vpack.c.bf16 %v347, %v346
        %v440 = vpack.c.bf16 %v277, %v276
        %v441 = vpack.c.bf16 %v412, %v411
        %v442 = vpack.c.bf16 %v349, %v348
        %v443 = vpack.c.bf16 %v259, %v258
        %v444 = vpack.c.bf16 %v414, %v413
        %445 = vst [vmem:[#allocation2] sm:$0xff] %v415
        %446 = vst [vmem:[#allocation2 + $0x8] sm:$0xff] %v416
        %447 = vst [vmem:[#allocation2 + $0x10] sm:$0xff] %v417
        %448 = vst [vmem:[#allocation2 + $0x18] sm:$0xff] %v418
        %449 = vst [vmem:[#allocation2 + $0x20] sm:$0xff] %v419
        %450 = vst [vmem:[#allocation2 + $0x28] sm:$0xff] %v420
        %451 = vst [vmem:[#allocation2 + $0x30] sm:$0xff] %v421
        %452 = vst [vmem:[#allocation2 + $0x38] sm:$0xff] %v422
        %453 = vst [vmem:[#allocation2 + $0x40] sm:$0xff] %v423
        %454 = vst [vmem:[#allocation2 + $0x48] sm:$0xff] %v424
        %455 = vst [vmem:[#allocation2 + $0x50] sm:$0xff] %v425
        %456 = vst [vmem:[#allocation2 + $0x58] sm:$0xff] %v426
        %457 = vst [vmem:[#allocation2 + $0x60] sm:$0xff] %v427
        %458 = vst [vmem:[#allocation2 + $0x68] sm:$0xff] %v428
        %459 = vst [vmem:[#allocation2 + $0x70] sm:$0xff] %v429
        %460 = vst [vmem:[#allocation2 + $0x78] sm:$0xff] %v430
        %461 = vst [vmem:[#allocation2 + $0x80] sm:$0xff] %v431
        %462 = vst [vmem:[#allocation2 + $0x88] sm:$0xff] %v432
        %463 = vst [vmem:[#allocation2 + $0x90] sm:$0xff] %v433
        %464 = vst [vmem:[#allocation2 + $0x98] sm:$0xff] %v434
        %465 = vst [vmem:[#allocation2 + $0xa0] sm:$0xff] %v435
        %466 = vst [vmem:[#allocation2 + $0xa8] sm:$0xff] %v436
        %467 = vst [vmem:[#allocation2 + $0xb0] sm:$0xff] %v437
        %468 = vst [vmem:[#allocation2 + $0xb8] sm:$0xff] %v438
        %469 = vst [vmem:[#allocation2 + $0xc0] sm:$0xff] %v439
        %470 = vst [vmem:[#allocation2 + $0xc8] sm:$0xff] %v440
        %471 = vst [vmem:[#allocation2 + $0xd0] sm:$0xff] %v441
        %472 = vst [vmem:[#allocation2 + $0xd8] sm:$0xff] %v442
        %473 = vst [vmem:[#allocation2 + $0xe0] sm:$0xff] %v443
        %474 = vst [vmem:[#allocation2 + $0xe8] sm:$0xff] %v444
        %v475 = vld [vmem:[#allocation2] sm:$0xff]
        %v476 = vld [vmem:[#allocation2 + $0x8] sm:$0xff]
        %v477 = vld [vmem:[#allocation2 + $0x10] sm:$0xff]
        %v478 = vld [vmem:[#allocation2 + $0x18] sm:$0xff]
        %v479 = vld [vmem:[#allocation2 + $0x20] sm:$0xff]
        %v480 = vld [vmem:[#allocation2 + $0x28] sm:$0xff]
        %v481 = vld [vmem:[#allocation2 + $0x30] sm:$0xff]
        %v482 = vld [vmem:[#allocation2 + $0x38] sm:$0xff]
        %v483 = vld [vmem:[#allocation2 + $0x40] sm:$0xff]
        %v484 = vld [vmem:[#allocation2 + $0x48] sm:$0xff]
        %v485 = vld [vmem:[#allocation2 + $0x50] sm:$0xff]
        %v486 = vld [vmem:[#allocation2 + $0x58] sm:$0xff]
        %v487 = vld [vmem:[#allocation2 + $0x60] sm:$0xff]
        %v488 = vld [vmem:[#allocation2 + $0x68] sm:$0xff]
        %v489 = vld [vmem:[#allocation2 + $0x70] sm:$0xff]
        %v490 = vld [vmem:[#allocation2 + $0x78] sm:$0xff]
        %v491 = vld [vmem:[#allocation2 + $0x80] sm:$0xff]
        %v492 = vld [vmem:[#allocation2 + $0x88] sm:$0xff]
        %v493 = vld [vmem:[#allocation2 + $0x90] sm:$0xff]
        %v494 = vld [vmem:[#allocation2 + $0x98] sm:$0xff]
        %v495 = vld [vmem:[#allocation2 + $0xa0] sm:$0xff]
        %v496 = vld [vmem:[#allocation2 + $0xa8] sm:$0xff]
        %v497 = vld [vmem:[#allocation2 + $0xb0] sm:$0xff]
        %v498 = vld [vmem:[#allocation2 + $0xb8] sm:$0xff]
        %v499 = vld [vmem:[#allocation6] sm:$0xf]
        %v500 = vld [vmem:[#allocation6 + $0x4] sm:$0xf]
        %v501 = vld [vmem:[#allocation6 + $0x8] sm:$0xf]
        %v502 = vld [vmem:[#allocation6 + $0xc] sm:$0xf]
        %v503 = vld [vmem:[#allocation6 + $0x10] sm:$0xf]
        %v504 = vld [vmem:[#allocation6 + $0x14] sm:$0xf]
        %v505 = vld [vmem:[#allocation6 + $0x18] sm:$0xf]
        %v506 = vld [vmem:[#allocation6 + $0x1c] sm:$0xf]
        %v507 = vld [vmem:[#allocation6 + $0x20] sm:$0xf]
        %v508 = vld [vmem:[#allocation6 + $0x24] sm:$0xf]
        %v509 = vld [vmem:[#allocation6 + $0x28] sm:$0xf]
        %v510 = vld [vmem:[#allocation6 + $0x2c] sm:$0xf]
        %v511 = vld [vmem:[#allocation6 + $0x30] sm:$0xf]
        %v512 = vld [vmem:[#allocation6 + $0x34] sm:$0xf]
        %v513 = vld [vmem:[#allocation6 + $0x38] sm:$0xf]
        %v514 = vld [vmem:[#allocation6 + $0x3c] sm:$0xf]
        %v515 = vld [vmem:[#allocation6 + $0x40] sm:$0xf]
        %v516 = vld [vmem:[#allocation6 + $0x44] sm:$0xf]
        %v517 = vld [vmem:[#allocation6 + $0x48] sm:$0xf]
        %v518 = vld [vmem:[#allocation6 + $0x4c] sm:$0xf]
        %v519 = vld [vmem:[#allocation6 + $0x50] sm:$0xf]
        %v520 = vld [vmem:[#allocation6 + $0x54] sm:$0xf]
        %v521 = vld [vmem:[#allocation6 + $0x58] sm:$0xf]
        %v522 = vld [vmem:[#allocation6 + $0x5c] sm:$0xf]
        %v523 = vld [vmem:[#allocation6 + $0x60] sm:$0xf]
        %v524 = vld [vmem:[#allocation6 + $0x64] sm:$0xf]
        %v525 = vld [vmem:[#allocation6 + $0x68] sm:$0xf]
        %v526 = vld [vmem:[#allocation6 + $0x6c] sm:$0xf]
        %v527 = vld [vmem:[#allocation6 + $0x70] sm:$0xf]
        %v528 = vld [vmem:[#allocation6 + $0x74] sm:$0xf]
        %v529 = vld [vmem:[#allocation6 + $0x78] sm:$0xf]
        %v530 = vld [vmem:[#allocation6 + $0x7c] sm:$0xf]
        %v531 = vld [vmem:[#allocation6 + $0x80] sm:$0xf]
        %v532 = vld [vmem:[#allocation6 + $0x84] sm:$0xf]
        %v533 = vld [vmem:[#allocation6 + $0x88] sm:$0xf]
        %v534 = vld [vmem:[#allocation6 + $0x8c] sm:$0xf]
        %v535 = vld [vmem:[#allocation6 + $0x90] sm:$0xf]
        %v536 = vld [vmem:[#allocation6 + $0x94] sm:$0xf]
        %v537 = vld [vmem:[#allocation6 + $0x98] sm:$0xf]
        %v538 = vld [vmem:[#allocation6 + $0x9c] sm:$0xf]
        %v539 = vld [vmem:[#allocation6 + $0xa0] sm:$0xf]
        %v540 = vld [vmem:[#allocation6 + $0xa4] sm:$0xf]
        %v541 = vld [vmem:[#allocation6 + $0xa8] sm:$0xf]
        %v542 = vld [vmem:[#allocation6 + $0xac] sm:$0xf]
        %v543 = vld [vmem:[#allocation6 + $0xb0] sm:$0xf]
        %v544 = vld [vmem:[#allocation6 + $0xb4] sm:$0xf]
        %v545 = vld [vmem:[#allocation6 + $0xb8] sm:$0xf]
        %v546 = vld [vmem:[#allocation6 + $0xbc] sm:$0xf]
        %s547 = scalar_lea.vmem [#allocation2], 24
        %v548 = vld [vmem:[%s547] sm:$0xff]
        %v549 = vld [vmem:[%s547 + $0x8] sm:$0xff]
        %v550 = vld [vmem:[%s547 + $0x10] sm:$0xff]
        %v551 = vld [vmem:[%s547 + $0x18] sm:$0xff]
        %v552 = vld [vmem:[%s547 + $0x20] sm:$0xff]
        %v553 = vld [vmem:[%s547 + $0x28] sm:$0xff]
        %v554 = vld [vmem:[%s547 + $0x30] sm:$0xff]
        %v555 = vld [vmem:[%s547 + $0x38] sm:$0xff]
        %v556 = vld [vmem:[%s547 + $0x40] sm:$0xff]
        %v557 = vld [vmem:[%s547 + $0x48] sm:$0xff]
        %v558 = vld [vmem:[%s547 + $0x50] sm:$0xff]
        %v559 = vld [vmem:[%s547 + $0x58] sm:$0xff]
        %v560 = vld [vmem:[%s547 + $0x60] sm:$0xff]
        %v561 = vld [vmem:[%s547 + $0x68] sm:$0xff]
        %v562 = vld [vmem:[%s547 + $0x70] sm:$0xff]
        %v563 = vld [vmem:[%s547 + $0x78] sm:$0xff]
        %v564 = vld [vmem:[%s547 + $0x80] sm:$0xff]
        %v565 = vld [vmem:[%s547 + $0x88] sm:$0xff]
        %v566 = vld [vmem:[%s547 + $0x90] sm:$0xff]
        %v567 = vld [vmem:[%s547 + $0x98] sm:$0xff]
        %v568 = vld [vmem:[%s547 + $0xa0] sm:$0xff]
        %v569 = vld [vmem:[%s547 + $0xa8] sm:$0xff]
        %v570 = vld [vmem:[%s547 + $0xb0] sm:$0xff]
        %v571 = vld [vmem:[%s547 + $0xb8] sm:$0xff]
        %s572 = scalar_lea.vmem [#allocation6], 192
        %v573 = vld [vmem:[%s572] sm:$0xf]
        %v574 = vld [vmem:[%s572 + $0x4] sm:$0xf]
        %v575 = vld [vmem:[%s572 + $0x8] sm:$0xf]
        %v576 = vld [vmem:[%s572 + $0xc] sm:$0xf]
        %v577 = vld [vmem:[%s572 + $0x10] sm:$0xf]
        %v578 = vld [vmem:[%s572 + $0x14] sm:$0xf]
        %v579 = vld [vmem:[%s572 + $0x18] sm:$0xf]
        %v580 = vld [vmem:[%s572 + $0x1c] sm:$0xf]
        %v581 = vld [vmem:[%s572 + $0x20] sm:$0xf]
        %v582 = vld [vmem:[%s572 + $0x24] sm:$0xf]
        %v583 = vld [vmem:[%s572 + $0x28] sm:$0xf]
        %v584 = vld [vmem:[%s572 + $0x2c] sm:$0xf]
        %v585 = vld [vmem:[%s572 + $0x30] sm:$0xf]
        %v586 = vld [vmem:[%s572 + $0x34] sm:$0xf]
        %v587 = vld [vmem:[%s572 + $0x38] sm:$0xf]
        %v588 = vld [vmem:[%s572 + $0x3c] sm:$0xf]
        %v589 = vld [vmem:[%s572 + $0x40] sm:$0xf]
        %v590 = vld [vmem:[%s572 + $0x44] sm:$0xf]
        %v591 = vld [vmem:[%s572 + $0x48] sm:$0xf]
        %v592 = vld [vmem:[%s572 + $0x4c] sm:$0xf]
        %v593 = vld [vmem:[%s572 + $0x50] sm:$0xf]
        %v594 = vld [vmem:[%s572 + $0x54] sm:$0xf]
        %v595 = vld [vmem:[%s572 + $0x58] sm:$0xf]
        %v596 = vld [vmem:[%s572 + $0x5c] sm:$0xf]
        %v597 = vld [vmem:[%s572 + $0x60] sm:$0xf]
        %v598 = vld [vmem:[%s572 + $0x64] sm:$0xf]
        %v599 = vld [vmem:[%s572 + $0x68] sm:$0xf]
        %v600 = vld [vmem:[%s572 + $0x6c] sm:$0xf]
        %v601 = vld [vmem:[%s572 + $0x70] sm:$0xf]
        %v602 = vld [vmem:[%s572 + $0x74] sm:$0xf]
        %v603 = vld [vmem:[%s572 + $0x78] sm:$0xf]
        %v604 = vld [vmem:[%s572 + $0x7c] sm:$0xf]
        %v605 = vld [vmem:[%s572 + $0x80] sm:$0xf]
        %v606 = vld [vmem:[%s572 + $0x84] sm:$0xf]
        %v607 = vld [vmem:[%s572 + $0x88] sm:$0xf]
        %v608 = vld [vmem:[%s572 + $0x8c] sm:$0xf]
        %v609 = vld [vmem:[%s572 + $0x90] sm:$0xf]
        %v610 = vld [vmem:[%s572 + $0x94] sm:$0xf]
        %v611 = vld [vmem:[%s572 + $0x98] sm:$0xf]
        %v612 = vld [vmem:[%s572 + $0x9c] sm:$0xf]
        %v613 = vld [vmem:[%s572 + $0xa0] sm:$0xf]
        %v614 = vld [vmem:[%s572 + $0xa4] sm:$0xf]
        %v615 = vld [vmem:[%s572 + $0xa8] sm:$0xf]
        %v616 = vld [vmem:[%s572 + $0xac] sm:$0xf]
        %v617 = vld [vmem:[%s572 + $0xb0] sm:$0xf]
        %v618 = vld [vmem:[%s572 + $0xb4] sm:$0xf]
        %v619 = vld [vmem:[%s572 + $0xb8] sm:$0xf]
        %v620 = vld [vmem:[%s572 + $0xbc] sm:$0xf]
        %v669 = vunpack.c.l.b16 %v573
        %v670 = vunpack.c.l.b16 %v574
        %v671 = vunpack.c.l.b16 %v575
        %v672 = vunpack.c.l.b16 %v576
        %v673 = vunpack.c.l.b16 %v577
        %v674 = vunpack.c.l.b16 %v578
        %v675 = vunpack.c.l.b16 %v579
        %v676 = vunpack.c.l.b16 %v580
        %v677 = vunpack.c.l.b16 %v581
        %v678 = vunpack.c.l.b16 %v582
        %v679 = vunpack.c.l.b16 %v583
        %v680 = vunpack.c.l.b16 %v584
        %v681 = vunpack.c.l.b16 %v585
        %v682 = vunpack.c.l.b16 %v586
        %v683 = vunpack.c.l.b16 %v587
        %v684 = vunpack.c.l.b16 %v588
        %v685 = vunpack.c.l.b16 %v589
        %v686 = vunpack.c.l.b16 %v590
        %v687 = vunpack.c.l.b16 %v591
        %v688 = vunpack.c.l.b16 %v592
        %v689 = vunpack.c.l.b16 %v593
        %v690 = vunpack.c.l.b16 %v594
        %v691 = vunpack.c.l.b16 %v595
        %v692 = vunpack.c.l.b16 %v596
        %v693 = vunpack.c.l.b16 %v597
        %v694 = vunpack.c.l.b16 %v598
        %v695 = vunpack.c.l.b16 %v599
        %v696 = vunpack.c.l.b16 %v600
        %v697 = vunpack.c.l.b16 %v601
        %v698 = vunpack.c.l.b16 %v602
        %v699 = vunpack.c.l.b16 %v603
        %v700 = vunpack.c.l.b16 %v604
        %v701 = vunpack.c.l.b16 %v605
        %v702 = vunpack.c.l.b16 %v606
        %v703 = vunpack.c.l.b16 %v607
        %v704 = vunpack.c.l.b16 %v608
        %v705 = vunpack.c.l.b16 %v609
        %v706 = vunpack.c.l.b16 %v610
        %v707 = vunpack.c.l.b16 %v611
        %v708 = vunpack.c.l.b16 %v612
        %v709 = vunpack.c.l.b16 %v613
        %v710 = vunpack.c.l.b16 %v614
        %v711 = vunpack.c.l.b16 %v615
        %v712 = vunpack.c.l.b16 %v616
        %v713 = vunpack.c.l.b16 %v617
        %v714 = vunpack.c.l.b16 %v618
        %v715 = vunpack.c.l.b16 %v619
        %v716 = vunpack.c.l.b16 %v620
        %v717 = vpack.c.b16 %v670, %v669
        %v718 = vpack.c.b16 %v672, %v671
        %v719 = vpack.c.b16 %v674, %v673
        %v720 = vpack.c.b16 %v676, %v675
        %v721 = vpack.c.b16 %v678, %v677
        %v722 = vpack.c.b16 %v680, %v679
        %v723 = vpack.c.b16 %v682, %v681
        %v724 = vpack.c.b16 %v684, %v683
        %v725 = vpack.c.b16 %v686, %v685
        %v726 = vpack.c.b16 %v688, %v687
        %v727 = vpack.c.b16 %v690, %v689
        %v728 = vpack.c.b16 %v692, %v691
        %v729 = vpack.c.b16 %v694, %v693
        %v730 = vpack.c.b16 %v696, %v695
        %v731 = vpack.c.b16 %v698, %v697
        %v732 = vpack.c.b16 %v700, %v699
        %v733 = vpack.c.b16 %v702, %v701
        %v734 = vpack.c.b16 %v704, %v703
        %v735 = vpack.c.b16 %v706, %v705
        %v736 = vpack.c.b16 %v708, %v707
        %v737 = vpack.c.b16 %v710, %v709
        %v738 = vpack.c.b16 %v712, %v711
        %v739 = vpack.c.b16 %v714, %v713
        %v740 = vpack.c.b16 %v716, %v715
        %765 = vmatprep.subr.bf16.mxu0 0
        %766 = vmatpush1.bf16.msra.mxu0 %v717
        %767 = vmatprep.subr.bf16.mxu0 0
        %768 = vmatpush1.bf16.msra.mxu0 %v718
        %769 = vmatprep.subr.bf16.mxu0 0
        %770 = vmatpush1.bf16.msra.mxu0 %v719
        %771 = vmatprep.subr.bf16.mxu0 0
        %772 = vmatpush1.bf16.msra.mxu0 %v720
        %773 = vmatprep.subr.bf16.mxu0 0
        %774 = vmatpush1.bf16.msra.mxu0 %v721
        %775 = vmatprep.subr.bf16.mxu0 0
        %776 = vmatpush1.bf16.msra.mxu0 %v722
        %777 = vmatprep.subr.bf16.mxu0 0
        %778 = vmatpush1.bf16.msra.mxu0 %v723
        %779 = vmatprep.subr.bf16.mxu0 0
        %780 = vmatpush1.bf16.msra.mxu0 %v724
        %781 = vmatprep.subr.bf16.mxu0 0
        %782 = vmatpush1.bf16.msra.mxu0 %v725
        %783 = vmatprep.subr.bf16.mxu0 0
        %784 = vmatpush1.bf16.msra.mxu0 %v726
        %785 = vmatprep.subr.bf16.mxu0 0
        %786 = vmatpush1.bf16.msra.mxu0 %v727
        %787 = vmatprep.subr.bf16.mxu0 0
        %788 = vmatpush1.bf16.msra.mxu0 %v728
        %789 = vmatprep.subr.bf16.mxu0 0
        %790 = vmatpush1.bf16.msra.mxu0 %v729
        %791 = vmatprep.subr.bf16.mxu0 0
        %792 = vmatpush1.bf16.msra.mxu0 %v730
        %793 = vmatprep.subr.bf16.mxu0 0
        %794 = vmatpush1.bf16.msra.mxu0 %v731
        %795 = vmatprep.subr.bf16.mxu0 0
        %796 = vmatpush1.bf16.msra.mxu0 %v732
        %797 = vmatprep.mubr.bf16.mxu0 %v549
        %798 = vmatmul.mubr.bf16.gmra.mrb[0].mxu0 %v548
        %v799 = vpop.f32.mrb[0].mxu0
        %v800 = vadd.f32 0.0, %v799
        %v801 = vpop.f32.mrb[0].mxu0
        %v802 = vpop.f32.mrb[0].mxu0
        %v803 = vadd.f32 0.0, %v802
        %v804 = vpop.f32.mrb[0].mxu0
        %805 = vmatprep.mubr.bf16.mxu0 %v552
        %806 = vmatmul.mubr.bf16.gmra.mrb[0].mxu0 %v551
        %v807 = vpop.f32.mrb[0].mxu0
        %v808 = vadd.f32 0.0, %v807
        %v809 = vpop.f32.mrb[0].mxu0
        %v810 = vpop.f32.mrb[0].mxu0
        %v811 = vadd.f32 0.0, %v810
        %v812 = vpop.f32.mrb[0].mxu0
        %813 = vmatprep.mubr.bf16.mxu0 %v555
        %814 = vmatmul.mubr.bf16.gmra.mrb[0].mxu0 %v554
        %v815 = vpop.f32.mrb[0].mxu0
        %v816 = vadd.f32 0.0, %v815
        %v817 = vpop.f32.mrb[0].mxu0
        %v818 = vpop.f32.mrb[0].mxu0
        %v819 = vadd.f32 0.0, %v818
        %v820 = vpop.f32.mrb[0].mxu0
        %821 = vmatprep.mubr.bf16.mxu0 %v558
        %822 = vmatmul.mubr.bf16.gmra.mrb[0].mxu0 %v557
        %v823 = vpop.f32.mrb[0].mxu0
        %v824 = vadd.f32 0.0, %v823
        %v825 = vpop.f32.mrb[0].mxu0
        %v826 = vpop.f32.mrb[0].mxu0
        %v827 = vadd.f32 0.0, %v826
        %v828 = vpop.f32.mrb[0].mxu0
        %829 = vmatprep.mubr.bf16.mxu0 %v561
        %830 = vmatmul.mubr.bf16.gmra.mrb[0].mxu0 %v560
        %v831 = vpop.f32.mrb[0].mxu0
        %v832 = vadd.f32 0.0, %v831
        %v833 = vpop.f32.mrb[0].mxu0
        %v834 = vpop.f32.mrb[0].mxu0
        %v835 = vadd.f32 0.0, %v834
        %v836 = vpop.f32.mrb[0].mxu0
        %837 = vmatprep.mubr.bf16.mxu0 %v564
        %838 = vmatmul.mubr.bf16.gmra.mrb[0].mxu0 %v563
        %v839 = vpop.f32.mrb[0].mxu0
        %v840 = vadd.f32 0.0, %v839
        %v841 = vpop.f32.mrb[0].mxu0
        %v842 = vpop.f32.mrb[0].mxu0
        %v843 = vadd.f32 0.0, %v842
        %v844 = vpop.f32.mrb[0].mxu0
        %845 = vmatprep.mubr.bf16.mxu0 %v567
        %846 = vmatmul.mubr.bf16.gmra.mrb[0].mxu0 %v566
        %v847 = vpop.f32.mrb[0].mxu0
        %v848 = vadd.f32 0.0, %v847
        %v849 = vpop.f32.mrb[0].mxu0
        %v850 = vpop.f32.mrb[0].mxu0
        %v851 = vadd.f32 0.0, %v850
        %v852 = vpop.f32.mrb[0].mxu0
        %853 = vmatprep.mubr.bf16.mxu0 %v570
        %854 = vmatmul.mubr.bf16.gmra.mrb[0].mxu0 %v569
        %v855 = vpop.f32.mrb[0].mxu0
        %v856 = vadd.f32 0.0, %v855
        %v857 = vpop.f32.mrb[0].mxu0
        %v858 = vpop.f32.mrb[0].mxu0
        %v859 = vadd.f32 0.0, %v858
        %v860 = vpop.f32.mrb[0].mxu0
        %861 = vdwg.mxu0
        %862 = vmatprep.subr.bf16.mxu0 0
        %863 = vmatpush1.bf16.msra.mxu0 %v733
        %864 = vmatprep.subr.bf16.mxu0 0
        %865 = vmatpush1.bf16.msra.mxu0 %v734
        %866 = vmatprep.subr.bf16.mxu0 0
        %867 = vmatpush1.bf16.msra.mxu0 %v735
        %868 = vmatprep.subr.bf16.mxu0 0
        %869 = vmatpush1.bf16.msra.mxu0 %v736
        %870 = vmatprep.subr.bf16.mxu0 0
        %871 = vmatpush1.bf16.msra.mxu0 %v737
        %872 = vmatprep.subr.bf16.mxu0 0
        %873 = vmatpush1.bf16.msra.mxu0 %v738
        %874 = vmatprep.subr.bf16.mxu0 0
        %875 = vmatpush1.bf16.msra.mxu0 %v739
        %876 = vmatprep.subr.bf16.mxu0 0
        %877 = vmatpush1.bf16.msra.mxu0 %v740
        %878 = vmatprep.subr.bf16.mxu0 0
        %879 = vmatpush1.bf16.msra.mxu0 0
        %880 = vmatprep.subr.bf16.mxu0 0
        %881 = vmatpush1.bf16.msra.mxu0 0
        %882 = vmatprep.subr.bf16.mxu0 0
        %883 = vmatpush1.bf16.msra.mxu0 0
        %884 = vmatprep.subr.bf16.mxu0 0
        %885 = vmatpush1.bf16.msra.mxu0 0
        %886 = vmatprep.subr.bf16.mxu0 0
        %887 = vmatpush1.bf16.msra.mxu0 0
        %888 = vmatprep.subr.bf16.mxu0 0
        %889 = vmatpush1.bf16.msra.mxu0 0
        %890 = vmatprep.subr.bf16.mxu0 0
        %891 = vmatpush1.bf16.msra.mxu0 0
        %892 = vmatprep.subr.bf16.mxu0 0
        %893 = vmatpush1.bf16.msra.mxu0 0
        %894 = vmatprep.mubr.bf16.mxu0 0
        %895 = vmatmul.mubr.bf16.gmra.mrb[0].mxu0 %v550
        %v896 = vpop.f32.mrb[0].mxu0
        %v897 = vadd.f32 %v800, %v896
        %v898 = vpop.f32.mrb[0].mxu0
        %v899 = vpop.f32.mrb[0].mxu0
        %v900 = vadd.f32 %v803, %v899
        %v901 = vpop.f32.mrb[0].mxu0
        %902 = vmatprep.mubr.bf16.mxu0 0
        %903 = vmatmul.mubr.bf16.gmra.mrb[0].mxu0 %v553
        %v904 = vpop.f32.mrb[0].mxu0
        %v905 = vadd.f32 %v808, %v904
        %v906 = vpop.f32.mrb[0].mxu0
        %v907 = vpop.f32.mrb[0].mxu0
        %v908 = vadd.f32 %v811, %v907
        %v909 = vpop.f32.mrb[0].mxu0
        %910 = vmatprep.mubr.bf16.mxu0 0
        %911 = vmatmul.mubr.bf16.gmra.mrb[0].mxu0 %v556
        %v912 = vpop.f32.mrb[0].mxu0
        %v913 = vadd.f32 %v816, %v912
        %v914 = vpop.f32.mrb[0].mxu0
        %v915 = vpop.f32.mrb[0].mxu0
        %v916 = vadd.f32 %v819, %v915
        %v917 = vpop.f32.mrb[0].mxu0
        %918 = vmatprep.mubr.bf16.mxu0 0
        %919 = vmatmul.mubr.bf16.gmra.mrb[0].mxu0 %v559
        %v920 = vpop.f32.mrb[0].mxu0
        %v921 = vadd.f32 %v824, %v920
        %v922 = vpop.f32.mrb[0].mxu0
        %v923 = vpop.f32.mrb[0].mxu0
        %v924 = vadd.f32 %v827, %v923
        %v925 = vpop.f32.mrb[0].mxu0
        %926 = vmatprep.mubr.bf16.mxu0 0
        %927 = vmatmul.mubr.bf16.gmra.mrb[0].mxu0 %v562
        %v928 = vpop.f32.mrb[0].mxu0
        %v929 = vadd.f32 %v832, %v928
        %v930 = vpop.f32.mrb[0].mxu0
        %v931 = vpop.f32.mrb[0].mxu0
        %v932 = vadd.f32 %v835, %v931
        %v933 = vpop.f32.mrb[0].mxu0
        %934 = vmatprep.mubr.bf16.mxu0 0
        %935 = vmatmul.mubr.bf16.gmra.mrb[0].mxu0 %v565
        %v936 = vpop.f32.mrb[0].mxu0
        %v937 = vadd.f32 %v840, %v936
        %v938 = vpop.f32.mrb[0].mxu0
        %v939 = vpop.f32.mrb[0].mxu0
        %v940 = vadd.f32 %v843, %v939
        %v941 = vpop.f32.mrb[0].mxu0
        %942 = vmatprep.mubr.bf16.mxu0 0
        %943 = vmatmul.mubr.bf16.gmra.mrb[0].mxu0 %v568
        %v944 = vpop.f32.mrb[0].mxu0
        %v945 = vadd.f32 %v848, %v944
        %v946 = vpop.f32.mrb[0].mxu0
        %v947 = vpop.f32.mrb[0].mxu0
        %v948 = vadd.f32 %v851, %v947
        %v949 = vpop.f32.mrb[0].mxu0
        %950 = vmatprep.mubr.bf16.mxu0 0
        %951 = vmatmul.mubr.bf16.gmra.mrb[0].mxu0 %v571
        %v952 = vpop.f32.mrb[0].mxu0
        %v953 = vadd.f32 %v856, %v952
        %v954 = vpop.f32.mrb[0].mxu0
        %v955 = vpop.f32.mrb[0].mxu0
        %v956 = vadd.f32 %v859, %v955
        %v957 = vpop.f32.mrb[0].mxu0
        %958 = vdwg.mxu0
        %v1007 = vunpack.c.l.b16 %v499
        %v1008 = vunpack.c.l.b16 %v500
        %v1009 = vunpack.c.l.b16 %v501
        %v1010 = vunpack.c.l.b16 %v502
        %v1011 = vunpack.c.l.b16 %v503
        %v1012 = vunpack.c.l.b16 %v504
        %v1013 = vunpack.c.l.b16 %v505
        %v1014 = vunpack.c.l.b16 %v506
        %v1015 = vunpack.c.l.b16 %v507
        %v1016 = vunpack.c.l.b16 %v508
        %v1017 = vunpack.c.l.b16 %v509
        %v1018 = vunpack.c.l.b16 %v510
        %v1019 = vunpack.c.l.b16 %v511
        %v1020 = vunpack.c.l.b16 %v512
        %v1021 = vunpack.c.l.b16 %v513
        %v1022 = vunpack.c.l.b16 %v514
        %v1023 = vunpack.c.l.b16 %v515
        %v1024 = vunpack.c.l.b16 %v516
        %v1025 = vunpack.c.l.b16 %v517
        %v1026 = vunpack.c.l.b16 %v518
        %v1027 = vunpack.c.l.b16 %v519
        %v1028 = vunpack.c.l.b16 %v520
        %v1029 = vunpack.c.l.b16 %v521
        %v1030 = vunpack.c.l.b16 %v522
        %v1031 = vunpack.c.l.b16 %v523
        %v1032 = vunpack.c.l.b16 %v524
        %v1033 = vunpack.c.l.b16 %v525
        %v1034 = vunpack.c.l.b16 %v526
        %v1035 = vunpack.c.l.b16 %v527
        %v1036 = vunpack.c.l.b16 %v528
        %v1037 = vunpack.c.l.b16 %v529
        %v1038 = vunpack.c.l.b16 %v530
        %v1039 = vunpack.c.l.b16 %v531
        %v1040 = vunpack.c.l.b16 %v532
        %v1041 = vunpack.c.l.b16 %v533
        %v1042 = vunpack.c.l.b16 %v534
        %v1043 = vunpack.c.l.b16 %v535
        %v1044 = vunpack.c.l.b16 %v536
        %v1045 = vunpack.c.l.b16 %v537
        %v1046 = vunpack.c.l.b16 %v538
        %v1047 = vunpack.c.l.b16 %v539
        %v1048 = vunpack.c.l.b16 %v540
        %v1049 = vunpack.c.l.b16 %v541
        %v1050 = vunpack.c.l.b16 %v542
        %v1051 = vunpack.c.l.b16 %v543
        %v1052 = vunpack.c.l.b16 %v544
        %v1053 = vunpack.c.l.b16 %v545
        %v1054 = vunpack.c.l.b16 %v546
        %v1055 = vpack.c.b16 %v1008, %v1007
        %v1056 = vpack.c.b16 %v1010, %v1009
        %v1057 = vpack.c.b16 %v1012, %v1011
        %v1058 = vpack.c.b16 %v1014, %v1013
        %v1059 = vpack.c.b16 %v1016, %v1015
        %v1060 = vpack.c.b16 %v1018, %v1017
        %v1061 = vpack.c.b16 %v1020, %v1019
        %v1062 = vpack.c.b16 %v1022, %v1021
        %v1063 = vpack.c.b16 %v1024, %v1023
        %v1064 = vpack.c.b16 %v1026, %v1025
        %v1065 = vpack.c.b16 %v1028, %v1027
        %v1066 = vpack.c.b16 %v1030, %v1029
        %v1067 = vpack.c.b16 %v1032, %v1031
        %v1068 = vpack.c.b16 %v1034, %v1033
        %v1069 = vpack.c.b16 %v1036, %v1035
        %v1070 = vpack.c.b16 %v1038, %v1037
        %v1071 = vpack.c.b16 %v1040, %v1039
        %v1072 = vpack.c.b16 %v1042, %v1041
        %v1073 = vpack.c.b16 %v1044, %v1043
        %v1074 = vpack.c.b16 %v1046, %v1045
        %v1075 = vpack.c.b16 %v1048, %v1047
        %v1076 = vpack.c.b16 %v1050, %v1049
        %v1077 = vpack.c.b16 %v1052, %v1051
        %v1078 = vpack.c.b16 %v1054, %v1053
        %1103 = vmatprep.subr.bf16.mxu0 0
        %1104 = vmatpush1.bf16.msra.mxu0 %v1055
        %1105 = vmatprep.subr.bf16.mxu0 0
        %1106 = vmatpush1.bf16.msra.mxu0 %v1056
        %1107 = vmatprep.subr.bf16.mxu0 0
        %1108 = vmatpush1.bf16.msra.mxu0 %v1057
        %1109 = vmatprep.subr.bf16.mxu0 0
        %1110 = vmatpush1.bf16.msra.mxu0 %v1058
        %1111 = vmatprep.subr.bf16.mxu0 0
        %1112 = vmatpush1.bf16.msra.mxu0 %v1059
        %1113 = vmatprep.subr.bf16.mxu0 0
        %1114 = vmatpush1.bf16.msra.mxu0 %v1060
        %1115 = vmatprep.subr.bf16.mxu0 0
        %1116 = vmatpush1.bf16.msra.mxu0 %v1061
        %1117 = vmatprep.subr.bf16.mxu0 0
        %1118 = vmatpush1.bf16.msra.mxu0 %v1062
        %1119 = vmatprep.subr.bf16.mxu0 0
        %1120 = vmatpush1.bf16.msra.mxu0 %v1063
        %1121 = vmatprep.subr.bf16.mxu0 0
        %1122 = vmatpush1.bf16.msra.mxu0 %v1064
        %1123 = vmatprep.subr.bf16.mxu0 0
        %1124 = vmatpush1.bf16.msra.mxu0 %v1065
        %1125 = vmatprep.subr.bf16.mxu0 0
        %1126 = vmatpush1.bf16.msra.mxu0 %v1066
        %1127 = vmatprep.subr.bf16.mxu0 0
        %1128 = vmatpush1.bf16.msra.mxu0 %v1067
        %1129 = vmatprep.subr.bf16.mxu0 0
        %1130 = vmatpush1.bf16.msra.mxu0 %v1068
        %1131 = vmatprep.subr.bf16.mxu0 0
        %1132 = vmatpush1.bf16.msra.mxu0 %v1069
        %1133 = vmatprep.subr.bf16.mxu0 0
        %1134 = vmatpush1.bf16.msra.mxu0 %v1070
        %1135 = vmatprep.mubr.bf16.mxu0 %v476
        %1136 = vmatmul.mubr.bf16.gmra.mrb[0].mxu0 %v475
        %v1137 = vpop.f32.mrb[0].mxu0
        %v1138 = vadd.f32 %v897, %v1137
        %v1139 = vpop.f32.mrb[0].mxu0
        %v1140 = vpop.f32.mrb[0].mxu0
        %v1141 = vadd.f32 %v900, %v1140
        %v1142 = vpop.f32.mrb[0].mxu0
        %1143 = vmatprep.mubr.bf16.mxu0 %v479
        %1144 = vmatmul.mubr.bf16.gmra.mrb[0].mxu0 %v478
        %v1145 = vpop.f32.mrb[0].mxu0
        %v1146 = vadd.f32 %v905, %v1145
        %v1147 = vpop.f32.mrb[0].mxu0
        %v1148 = vpop.f32.mrb[0].mxu0
        %v1149 = vadd.f32 %v908, %v1148
        %v1150 = vpop.f32.mrb[0].mxu0
        %1151 = vmatprep.mubr.bf16.mxu0 %v482
        %1152 = vmatmul.mubr.bf16.gmra.mrb[0].mxu0 %v481
        %v1153 = vpop.f32.mrb[0].mxu0
        %v1154 = vadd.f32 %v913, %v1153
        %v1155 = vpop.f32.mrb[0].mxu0
        %v1156 = vpop.f32.mrb[0].mxu0
        %v1157 = vadd.f32 %v916, %v1156
        %v1158 = vpop.f32.mrb[0].mxu0
        %1159 = vmatprep.mubr.bf16.mxu0 %v485
        %1160 = vmatmul.mubr.bf16.gmra.mrb[0].mxu0 %v484
        %v1161 = vpop.f32.mrb[0].mxu0
        %v1162 = vadd.f32 %v921, %v1161
        %v1163 = vpop.f32.mrb[0].mxu0
        %v1164 = vpop.f32.mrb[0].mxu0
        %v1165 = vadd.f32 %v924, %v1164
        %v1166 = vpop.f32.mrb[0].mxu0
        %1167 = vmatprep.mubr.bf16.mxu0 %v488
        %1168 = vmatmul.mubr.bf16.gmra.mrb[0].mxu0 %v487
        %v1169 = vpop.f32.mrb[0].mxu0
        %v1170 = vadd.f32 %v929, %v1169
        %v1171 = vpop.f32.mrb[0].mxu0
        %v1172 = vpop.f32.mrb[0].mxu0
        %v1173 = vadd.f32 %v932, %v1172
        %v1174 = vpop.f32.mrb[0].mxu0
        %1175 = vmatprep.mubr.bf16.mxu0 %v491
        %1176 = vmatmul.mubr.bf16.gmra.mrb[0].mxu0 %v490
        %v1177 = vpop.f32.mrb[0].mxu0
        %v1178 = vadd.f32 %v937, %v1177
        %v1179 = vpop.f32.mrb[0].mxu0
        %v1180 = vpop.f32.mrb[0].mxu0
        %v1181 = vadd.f32 %v940, %v1180
        %v1182 = vpop.f32.mrb[0].mxu0
        %1183 = vmatprep.mubr.bf16.mxu0 %v494
        %1184 = vmatmul.mubr.bf16.gmra.mrb[0].mxu0 %v493
        %v1185 = vpop.f32.mrb[0].mxu0
        %v1186 = vadd.f32 %v945, %v1185
        %v1187 = vpop.f32.mrb[0].mxu0
        %v1188 = vpop.f32.mrb[0].mxu0
        %v1189 = vadd.f32 %v948, %v1188
        %v1190 = vpop.f32.mrb[0].mxu0
        %1191 = vmatprep.mubr.bf16.mxu0 %v497
        %1192 = vmatmul.mubr.bf16.gmra.mrb[0].mxu0 %v496
        %v1193 = vpop.f32.mrb[0].mxu0
        %v1194 = vadd.f32 %v953, %v1193
        %v1195 = vpop.f32.mrb[0].mxu0
        %v1196 = vpop.f32.mrb[0].mxu0
        %v1197 = vadd.f32 %v956, %v1196
        %v1198 = vpop.f32.mrb[0].mxu0
        %1199 = vdwg.mxu0
        %1200 = vmatprep.subr.bf16.mxu0 0
        %1201 = vmatpush1.bf16.msra.mxu0 %v1071
        %1202 = vmatprep.subr.bf16.mxu0 0
        %1203 = vmatpush1.bf16.msra.mxu0 %v1072
        %1204 = vmatprep.subr.bf16.mxu0 0
        %1205 = vmatpush1.bf16.msra.mxu0 %v1073
        %1206 = vmatprep.subr.bf16.mxu0 0
        %1207 = vmatpush1.bf16.msra.mxu0 %v1074
        %1208 = vmatprep.subr.bf16.mxu0 0
        %1209 = vmatpush1.bf16.msra.mxu0 %v1075
        %1210 = vmatprep.subr.bf16.mxu0 0
        %1211 = vmatpush1.bf16.msra.mxu0 %v1076
        %1212 = vmatprep.subr.bf16.mxu0 0
        %1213 = vmatpush1.bf16.msra.mxu0 %v1077
        %1214 = vmatprep.subr.bf16.mxu0 0
        %1215 = vmatpush1.bf16.msra.mxu0 %v1078
        %1216 = vmatprep.subr.bf16.mxu0 0
        %1217 = vmatpush1.bf16.msra.mxu0 0
        %1218 = vmatprep.subr.bf16.mxu0 0
        %1219 = vmatpush1.bf16.msra.mxu0 0
        %1220 = vmatprep.subr.bf16.mxu0 0
        %1221 = vmatpush1.bf16.msra.mxu0 0
        %1222 = vmatprep.subr.bf16.mxu0 0
        %1223 = vmatpush1.bf16.msra.mxu0 0
        %1224 = vmatprep.subr.bf16.mxu0 0
        %1225 = vmatpush1.bf16.msra.mxu0 0
        %1226 = vmatprep.subr.bf16.mxu0 0
        %1227 = vmatpush1.bf16.msra.mxu0 0
        %1228 = vmatprep.subr.bf16.mxu0 0
        %1229 = vmatpush1.bf16.msra.mxu0 0
        %1230 = vmatprep.subr.bf16.mxu0 0
        %1231 = vmatpush1.bf16.msra.mxu0 0
        %1232 = vmatprep.mubr.bf16.mxu0 0
        %1233 = vmatmul.mubr.bf16.gmra.mrb[0].mxu0 %v477
        %v1234 = vpop.f32.mrb[0].mxu0
        %v1235 = vadd.f32 %v1138, %v1234
        %v1236 = vpop.f32.mrb[0].mxu0
        %v1237 = vpop.f32.mrb[0].mxu0
        %v1238 = vadd.f32 %v1141, %v1237
        %v1239 = vpop.f32.mrb[0].mxu0
        %1240 = vmatprep.mubr.bf16.mxu0 0
        %1241 = vmatmul.mubr.bf16.gmra.mrb[0].mxu0 %v480
        %v1242 = vpop.f32.mrb[0].mxu0
        %v1243 = vadd.f32 %v1146, %v1242
        %v1244 = vpop.f32.mrb[0].mxu0
        %v1245 = vpop.f32.mrb[0].mxu0
        %v1246 = vadd.f32 %v1149, %v1245
        %v1247 = vpop.f32.mrb[0].mxu0
        %1248 = vmatprep.mubr.bf16.mxu0 0
        %1249 = vmatmul.mubr.bf16.gmra.mrb[0].mxu0 %v483
        %v1250 = vpop.f32.mrb[0].mxu0
        %v1251 = vadd.f32 %v1154, %v1250
        %v1252 = vpop.f32.mrb[0].mxu0
        %v1253 = vpop.f32.mrb[0].mxu0
        %v1254 = vadd.f32 %v1157, %v1253
        %v1255 = vpop.f32.mrb[0].mxu0
        %1256 = vmatprep.mubr.bf16.mxu0 0
        %1257 = vmatmul.mubr.bf16.gmra.mrb[0].mxu0 %v486
        %v1258 = vpop.f32.mrb[0].mxu0
        %v1259 = vadd.f32 %v1162, %v1258
        %v1260 = vpop.f32.mrb[0].mxu0
        %v1261 = vpop.f32.mrb[0].mxu0
        %v1262 = vadd.f32 %v1165, %v1261
        %v1263 = vpop.f32.mrb[0].mxu0
        %1264 = vmatprep.mubr.bf16.mxu0 0
        %1265 = vmatmul.mubr.bf16.gmra.mrb[0].mxu0 %v489
        %v1266 = vpop.f32.mrb[0].mxu0
        %v1267 = vadd.f32 %v1170, %v1266
        %v1268 = vpop.f32.mrb[0].mxu0
        %v1269 = vpop.f32.mrb[0].mxu0
        %v1270 = vadd.f32 %v1173, %v1269
        %v1271 = vpop.f32.mrb[0].mxu0
        %1272 = vmatprep.mubr.bf16.mxu0 0
        %1273 = vmatmul.mubr.bf16.gmra.mrb[0].mxu0 %v492
        %v1274 = vpop.f32.mrb[0].mxu0
        %v1275 = vadd.f32 %v1178, %v1274
        %v1276 = vpop.f32.mrb[0].mxu0
        %v1277 = vpop.f32.mrb[0].mxu0
        %v1278 = vadd.f32 %v1181, %v1277
        %v1279 = vpop.f32.mrb[0].mxu0
        %1280 = vmatprep.mubr.bf16.mxu0 0
        %1281 = vmatmul.mubr.bf16.gmra.mrb[0].mxu0 %v495
        %v1282 = vpop.f32.mrb[0].mxu0
        %v1283 = vadd.f32 %v1186, %v1282
        %v1284 = vpop.f32.mrb[0].mxu0
        %v1285 = vpop.f32.mrb[0].mxu0
        %v1286 = vadd.f32 %v1189, %v1285
        %v1287 = vpop.f32.mrb[0].mxu0
        %1288 = vmatprep.mubr.bf16.mxu0 0
        %1289 = vmatmul.mubr.bf16.gmra.mrb[0].mxu0 %v498
        %v1290 = vpop.f32.mrb[0].mxu0
        %v1291 = vadd.f32 %v1194, %v1290
        %v1292 = vpop.f32.mrb[0].mxu0
        %v1293 = vpop.f32.mrb[0].mxu0
        %v1294 = vadd.f32 %v1197, %v1293
        %v1295 = vpop.f32.mrb[0].mxu0
        %1296 = vdwg.mxu0
        %s1297 = scalar_lea.vmem [#allocation2], 48
        %v1298 = vld [vmem:[%s1297] sm:$0xff]
        %v1299 = vld [vmem:[%s1297 + $0x8] sm:$0xff]
        %v1300 = vld [vmem:[%s1297 + $0x10] sm:$0xff]
        %v1301 = vld [vmem:[%s1297 + $0x18] sm:$0xff]
        %v1302 = vld [vmem:[%s1297 + $0x20] sm:$0xff]
        %v1303 = vld [vmem:[%s1297 + $0x28] sm:$0xff]
        %v1304 = vld [vmem:[%s1297 + $0x30] sm:$0xff]
        %v1305 = vld [vmem:[%s1297 + $0x38] sm:$0xff]
        %v1306 = vld [vmem:[%s1297 + $0x40] sm:$0xff]
        %v1307 = vld [vmem:[%s1297 + $0x48] sm:$0xff]
        %v1308 = vld [vmem:[%s1297 + $0x50] sm:$0xff]
        %v1309 = vld [vmem:[%s1297 + $0x58] sm:$0xff]
        %v1310 = vld [vmem:[%s1297 + $0x60] sm:$0xff]
        %v1311 = vld [vmem:[%s1297 + $0x68] sm:$0xff]
        %v1312 = vld [vmem:[%s1297 + $0x70] sm:$0xff]
        %v1313 = vld [vmem:[%s1297 + $0x78] sm:$0xff]
        %v1314 = vld [vmem:[%s1297 + $0x80] sm:$0xff]
        %v1315 = vld [vmem:[%s1297 + $0x88] sm:$0xff]
        %v1316 = vld [vmem:[%s1297 + $0x90] sm:$0xff]
        %v1317 = vld [vmem:[%s1297 + $0x98] sm:$0xff]
        %v1318 = vld [vmem:[%s1297 + $0xa0] sm:$0xff]
        %v1319 = vld [vmem:[%s1297 + $0xa8] sm:$0xff]
        %v1320 = vld [vmem:[%s1297 + $0xb0] sm:$0xff]
        %v1321 = vld [vmem:[%s1297 + $0xb8] sm:$0xff]
        %s1322 = scalar_lea.vmem [#allocation6], 384
        %v1323 = vld [vmem:[%s1322] sm:$0xf]
        %v1324 = vld [vmem:[%s1322 + $0x4] sm:$0xf]
        %v1325 = vld [vmem:[%s1322 + $0x8] sm:$0xf]
        %v1326 = vld [vmem:[%s1322 + $0xc] sm:$0xf]
        %v1327 = vld [vmem:[%s1322 + $0x10] sm:$0xf]
        %v1328 = vld [vmem:[%s1322 + $0x14] sm:$0xf]
        %v1329 = vld [vmem:[%s1322 + $0x18] sm:$0xf]
        %v1330 = vld [vmem:[%s1322 + $0x1c] sm:$0xf]
        %v1331 = vld [vmem:[%s1322 + $0x20] sm:$0xf]
        %v1332 = vld [vmem:[%s1322 + $0x24] sm:$0xf]
        %v1333 = vld [vmem:[%s1322 + $0x28] sm:$0xf]
        %v1334 = vld [vmem:[%s1322 + $0x2c] sm:$0xf]
        %v1335 = vld [vmem:[%s1322 + $0x30] sm:$0xf]
        %v1336 = vld [vmem:[%s1322 + $0x34] sm:$0xf]
        %v1337 = vld [vmem:[%s1322 + $0x38] sm:$0xf]
        %v1338 = vld [vmem:[%s1322 + $0x3c] sm:$0xf]
        %v1339 = vld [vmem:[%s1322 + $0x40] sm:$0xf]
        %v1340 = vld [vmem:[%s1322 + $0x44] sm:$0xf]
        %v1341 = vld [vmem:[%s1322 + $0x48] sm:$0xf]
        %v1342 = vld [vmem:[%s1322 + $0x4c] sm:$0xf]
        %v1343 = vld [vmem:[%s1322 + $0x50] sm:$0xf]
        %v1344 = vld [vmem:[%s1322 + $0x54] sm:$0xf]
        %v1345 = vld [vmem:[%s1322 + $0x58] sm:$0xf]
        %v1346 = vld [vmem:[%s1322 + $0x5c] sm:$0xf]
        %v1347 = vld [vmem:[%s1322 + $0x60] sm:$0xf]
        %v1348 = vld [vmem:[%s1322 + $0x64] sm:$0xf]
        %v1349 = vld [vmem:[%s1322 + $0x68] sm:$0xf]
        %v1350 = vld [vmem:[%s1322 + $0x6c] sm:$0xf]
        %v1351 = vld [vmem:[%s1322 + $0x70] sm:$0xf]
        %v1352 = vld [vmem:[%s1322 + $0x74] sm:$0xf]
        %v1353 = vld [vmem:[%s1322 + $0x78] sm:$0xf]
        %v1354 = vld [vmem:[%s1322 + $0x7c] sm:$0xf]
        %v1355 = vld [vmem:[%s1322 + $0x80] sm:$0xf]
        %v1356 = vld [vmem:[%s1322 + $0x84] sm:$0xf]
        %v1357 = vld [vmem:[%s1322 + $0x88] sm:$0xf]
        %v1358 = vld [vmem:[%s1322 + $0x8c] sm:$0xf]
        %v1359 = vld [vmem:[%s1322 + $0x90] sm:$0xf]
        %v1360 = vld [vmem:[%s1322 + $0x94] sm:$0xf]
        %v1361 = vld [vmem:[%s1322 + $0x98] sm:$0xf]
        %v1362 = vld [vmem:[%s1322 + $0x9c] sm:$0xf]
        %v1363 = vld [vmem:[%s1322 + $0xa0] sm:$0xf]
        %v1364 = vld [vmem:[%s1322 + $0xa4] sm:$0xf]
        %v1365 = vld [vmem:[%s1322 + $0xa8] sm:$0xf]
        %v1366 = vld [vmem:[%s1322 + $0xac] sm:$0xf]
        %v1367 = vld [vmem:[%s1322 + $0xb0] sm:$0xf]
        %v1368 = vld [vmem:[%s1322 + $0xb4] sm:$0xf]
        %v1369 = vld [vmem:[%s1322 + $0xb8] sm:$0xf]
        %v1370 = vld [vmem:[%s1322 + $0xbc] sm:$0xf]
        %v1419 = vunpack.c.l.b16 %v1323
        %v1420 = vunpack.c.l.b16 %v1324
        %v1421 = vunpack.c.l.b16 %v1325
        %v1422 = vunpack.c.l.b16 %v1326
        %v1423 = vunpack.c.l.b16 %v1327
        %v1424 = vunpack.c.l.b16 %v1328
        %v1425 = vunpack.c.l.b16 %v1329
        %v1426 = vunpack.c.l.b16 %v1330
        %v1427 = vunpack.c.l.b16 %v1331
        %v1428 = vunpack.c.l.b16 %v1332
        %v1429 = vunpack.c.l.b16 %v1333
        %v1430 = vunpack.c.l.b16 %v1334
        %v1431 = vunpack.c.l.b16 %v1335
        %v1432 = vunpack.c.l.b16 %v1336
        %v1433 = vunpack.c.l.b16 %v1337
        %v1434 = vunpack.c.l.b16 %v1338
        %v1435 = vunpack.c.l.b16 %v1339
        %v1436 = vunpack.c.l.b16 %v1340
        %v1437 = vunpack.c.l.b16 %v1341
        %v1438 = vunpack.c.l.b16 %v1342
        %v1439 = vunpack.c.l.b16 %v1343
        %v1440 = vunpack.c.l.b16 %v1344
        %v1441 = vunpack.c.l.b16 %v1345
        %v1442 = vunpack.c.l.b16 %v1346
        %v1443 = vunpack.c.l.b16 %v1347
        %v1444 = vunpack.c.l.b16 %v1348
        %v1445 = vunpack.c.l.b16 %v1349
        %v1446 = vunpack.c.l.b16 %v1350
        %v1447 = vunpack.c.l.b16 %v1351
        %v1448 = vunpack.c.l.b16 %v1352
        %v1449 = vunpack.c.l.b16 %v1353
        %v1450 = vunpack.c.l.b16 %v1354
        %v1451 = vunpack.c.l.b16 %v1355
        %v1452 = vunpack.c.l.b16 %v1356
        %v1453 = vunpack.c.l.b16 %v1357
        %v1454 = vunpack.c.l.b16 %v1358
        %v1455 = vunpack.c.l.b16 %v1359
        %v1456 = vunpack.c.l.b16 %v1360
        %v1457 = vunpack.c.l.b16 %v1361
        %v1458 = vunpack.c.l.b16 %v1362
        %v1459 = vunpack.c.l.b16 %v1363
        %v1460 = vunpack.c.l.b16 %v1364
        %v1461 = vunpack.c.l.b16 %v1365
        %v1462 = vunpack.c.l.b16 %v1366
        %v1463 = vunpack.c.l.b16 %v1367
        %v1464 = vunpack.c.l.b16 %v1368
        %v1465 = vunpack.c.l.b16 %v1369
        %v1466 = vunpack.c.l.b16 %v1370
        %v1467 = vpack.c.b16 %v1420, %v1419
        %v1468 = vpack.c.b16 %v1422, %v1421
        %v1469 = vpack.c.b16 %v1424, %v1423
        %v1470 = vpack.c.b16 %v1426, %v1425
        %v1471 = vpack.c.b16 %v1428, %v1427
        %v1472 = vpack.c.b16 %v1430, %v1429
        %v1473 = vpack.c.b16 %v1432, %v1431
        %v1474 = vpack.c.b16 %v1434, %v1433
        %v1475 = vpack.c.b16 %v1436, %v1435
        %v1476 = vpack.c.b16 %v1438, %v1437
        %v1477 = vpack.c.b16 %v1440, %v1439
        %v1478 = vpack.c.b16 %v1442, %v1441
        %v1479 = vpack.c.b16 %v1444, %v1443
        %v1480 = vpack.c.b16 %v1446, %v1445
        %v1481 = vpack.c.b16 %v1448, %v1447
        %v1482 = vpack.c.b16 %v1450, %v1449
        %v1483 = vpack.c.b16 %v1452, %v1451
        %v1484 = vpack.c.b16 %v1454, %v1453
        %v1485 = vpack.c.b16 %v1456, %v1455
        %v1486 = vpack.c.b16 %v1458, %v1457
        %v1487 = vpack.c.b16 %v1460, %v1459
        %v1488 = vpack.c.b16 %v1462, %v1461
        %v1489 = vpack.c.b16 %v1464, %v1463
        %v1490 = vpack.c.b16 %v1466, %v1465
        %1515 = vmatprep.subr.bf16.mxu0 0
        %1516 = vmatpush1.bf16.msra.mxu0 %v1467
        %1517 = vmatprep.subr.bf16.mxu0 0
        %1518 = vmatpush1.bf16.msra.mxu0 %v1468
        %1519 = vmatprep.subr.bf16.mxu0 0
        %1520 = vmatpush1.bf16.msra.mxu0 %v1469
        %1521 = vmatprep.subr.bf16.mxu0 0
        %1522 = vmatpush1.bf16.msra.mxu0 %v1470
        %1523 = vmatprep.subr.bf16.mxu0 0
        %1524 = vmatpush1.bf16.msra.mxu0 %v1471
        %1525 = vmatprep.subr.bf16.mxu0 0
        %1526 = vmatpush1.bf16.msra.mxu0 %v1472
        %1527 = vmatprep.subr.bf16.mxu0 0
        %1528 = vmatpush1.bf16.msra.mxu0 %v1473
        %1529 = vmatprep.subr.bf16.mxu0 0
        %1530 = vmatpush1.bf16.msra.mxu0 %v1474
        %1531 = vmatprep.subr.bf16.mxu0 0
        %1532 = vmatpush1.bf16.msra.mxu0 %v1475
        %1533 = vmatprep.subr.bf16.mxu0 0
        %1534 = vmatpush1.bf16.msra.mxu0 %v1476
        %1535 = vmatprep.subr.bf16.mxu0 0
        %1536 = vmatpush1.bf16.msra.mxu0 %v1477
        %1537 = vmatprep.subr.bf16.mxu0 0
        %1538 = vmatpush1.bf16.msra.mxu0 %v1478
        %1539 = vmatprep.subr.bf16.mxu0 0
        %1540 = vmatpush1.bf16.msra.mxu0 %v1479
        %1541 = vmatprep.subr.bf16.mxu0 0
        %1542 = vmatpush1.bf16.msra.mxu0 %v1480
        %1543 = vmatprep.subr.bf16.mxu0 0
        %1544 = vmatpush1.bf16.msra.mxu0 %v1481
        %1545 = vmatprep.subr.bf16.mxu0 0
        %1546 = vmatpush1.bf16.msra.mxu0 %v1482
        %1547 = vmatprep.mubr.bf16.mxu0 %v1299
        %1548 = vmatmul.mubr.bf16.gmra.mrb[0].mxu0 %v1298
        %v1549 = vpop.f32.mrb[0].mxu0
        %v1550 = vadd.f32 0.0, %v1549
        %v1551 = vpop.f32.mrb[0].mxu0
        %v1552 = vpop.f32.mrb[0].mxu0
        %v1553 = vadd.f32 0.0, %v1552
        %v1554 = vpop.f32.mrb[0].mxu0
        %1555 = vmatprep.mubr.bf16.mxu0 %v1302
        %1556 = vmatmul.mubr.bf16.gmra.mrb[0].mxu0 %v1301
        %v1557 = vpop.f32.mrb[0].mxu0
        %v1558 = vadd.f32 0.0, %v1557
        %v1559 = vpop.f32.mrb[0].mxu0
        %v1560 = vpop.f32.mrb[0].mxu0
        %v1561 = vadd.f32 0.0, %v1560
        %v1562 = vpop.f32.mrb[0].mxu0
        %1563 = vmatprep.mubr.bf16.mxu0 %v1305
        %1564 = vmatmul.mubr.bf16.gmra.mrb[0].mxu0 %v1304
        %v1565 = vpop.f32.mrb[0].mxu0
        %v1566 = vadd.f32 0.0, %v1565
        %v1567 = vpop.f32.mrb[0].mxu0
        %v1568 = vpop.f32.mrb[0].mxu0
        %v1569 = vadd.f32 0.0, %v1568
        %v1570 = vpop.f32.mrb[0].mxu0
        %1571 = vmatprep.mubr.bf16.mxu0 %v1308
        %1572 = vmatmul.mubr.bf16.gmra.mrb[0].mxu0 %v1307
        %v1573 = vpop.f32.mrb[0].mxu0
        %v1574 = vadd.f32 0.0, %v1573
        %v1575 = vpop.f32.mrb[0].mxu0
        %v1576 = vpop.f32.mrb[0].mxu0
        %v1577 = vadd.f32 0.0, %v1576
        %v1578 = vpop.f32.mrb[0].mxu0
        %1579 = vmatprep.mubr.bf16.mxu0 %v1311
        %1580 = vmatmul.mubr.bf16.gmra.mrb[0].mxu0 %v1310
        %v1581 = vpop.f32.mrb[0].mxu0
        %v1582 = vadd.f32 0.0, %v1581
        %v1583 = vpop.f32.mrb[0].mxu0
        %v1584 = vpop.f32.mrb[0].mxu0
        %v1585 = vadd.f32 0.0, %v1584
        %v1586 = vpop.f32.mrb[0].mxu0
        %1587 = vmatprep.mubr.bf16.mxu0 %v1314
        %1588 = vmatmul.mubr.bf16.gmra.mrb[0].mxu0 %v1313
        %v1589 = vpop.f32.mrb[0].mxu0
        %v1590 = vadd.f32 0.0, %v1589
        %v1591 = vpop.f32.mrb[0].mxu0
        %v1592 = vpop.f32.mrb[0].mxu0
        %v1593 = vadd.f32 0.0, %v1592
        %v1594 = vpop.f32.mrb[0].mxu0
        %1595 = vmatprep.mubr.bf16.mxu0 %v1317
        %1596 = vmatmul.mubr.bf16.gmra.mrb[0].mxu0 %v1316
        %v1597 = vpop.f32.mrb[0].mxu0
        %v1598 = vadd.f32 0.0, %v1597
        %v1599 = vpop.f32.mrb[0].mxu0
        %v1600 = vpop.f32.mrb[0].mxu0
        %v1601 = vadd.f32 0.0, %v1600
        %v1602 = vpop.f32.mrb[0].mxu0
        %1603 = vmatprep.mubr.bf16.mxu0 %v1320
        %1604 = vmatmul.mubr.bf16.gmra.mrb[0].mxu0 %v1319
        %v1605 = vpop.f32.mrb[0].mxu0
        %v1606 = vadd.f32 0.0, %v1605
        %v1607 = vpop.f32.mrb[0].mxu0
        %v1608 = vpop.f32.mrb[0].mxu0
        %v1609 = vadd.f32 0.0, %v1608
        %v1610 = vpop.f32.mrb[0].mxu0
        %1611 = vdwg.mxu0
        %1612 = vmatprep.subr.bf16.mxu0 0
        %1613 = vmatpush1.bf16.msra.mxu0 %v1483
        %1614 = vmatprep.subr.bf16.mxu0 0
        %1615 = vmatpush1.bf16.msra.mxu0 %v1484
        %1616 = vmatprep.subr.bf16.mxu0 0
        %1617 = vmatpush1.bf16.msra.mxu0 %v1485
        %1618 = vmatprep.subr.bf16.mxu0 0
        %1619 = vmatpush1.bf16.msra.mxu0 %v1486
        %1620 = vmatprep.subr.bf16.mxu0 0
        %1621 = vmatpush1.bf16.msra.mxu0 %v1487
        %1622 = vmatprep.subr.bf16.mxu0 0
        %1623 = vmatpush1.bf16.msra.mxu0 %v1488
        %1624 = vmatprep.subr.bf16.mxu0 0
        %1625 = vmatpush1.bf16.msra.mxu0 %v1489
        %1626 = vmatprep.subr.bf16.mxu0 0
        %1627 = vmatpush1.bf16.msra.mxu0 %v1490
        %1628 = vmatprep.subr.bf16.mxu0 0
        %1629 = vmatpush1.bf16.msra.mxu0 0
        %1630 = vmatprep.subr.bf16.mxu0 0
        %1631 = vmatpush1.bf16.msra.mxu0 0
        %1632 = vmatprep.subr.bf16.mxu0 0
        %1633 = vmatpush1.bf16.msra.mxu0 0
        %1634 = vmatprep.subr.bf16.mxu0 0
        %1635 = vmatpush1.bf16.msra.mxu0 0
        %1636 = vmatprep.subr.bf16.mxu0 0
        %1637 = vmatpush1.bf16.msra.mxu0 0
        %1638 = vmatprep.subr.bf16.mxu0 0
        %1639 = vmatpush1.bf16.msra.mxu0 0
        %1640 = vmatprep.subr.bf16.mxu0 0
        %1641 = vmatpush1.bf16.msra.mxu0 0
        %1642 = vmatprep.subr.bf16.mxu0 0
        %1643 = vmatpush1.bf16.msra.mxu0 0
        %1644 = vmatprep.mubr.bf16.mxu0 0
        %1645 = vmatmul.mubr.bf16.gmra.mrb[0].mxu0 %v1300
        %v1646 = vpop.f32.mrb[0].mxu0
        %v1647 = vadd.f32 %v1550, %v1646
        %v1648 = vpop.f32.mrb[0].mxu0
        %v1649 = vpop.f32.mrb[0].mxu0
        %v1650 = vadd.f32 %v1553, %v1649
        %v1651 = vpop.f32.mrb[0].mxu0
        %1652 = vmatprep.mubr.bf16.mxu0 0
        %1653 = vmatmul.mubr.bf16.gmra.mrb[0].mxu0 %v1303
        %v1654 = vpop.f32.mrb[0].mxu0
        %v1655 = vadd.f32 %v1558, %v1654
        %v1656 = vpop.f32.mrb[0].mxu0
        %v1657 = vpop.f32.mrb[0].mxu0
        %v1658 = vadd.f32 %v1561, %v1657
        %v1659 = vpop.f32.mrb[0].mxu0
        %1660 = vmatprep.mubr.bf16.mxu0 0
        %1661 = vmatmul.mubr.bf16.gmra.mrb[0].mxu0 %v1306
        %v1662 = vpop.f32.mrb[0].mxu0
        %v1663 = vadd.f32 %v1566, %v1662
        %v1664 = vpop.f32.mrb[0].mxu0
        %v1665 = vpop.f32.mrb[0].mxu0
        %v1666 = vadd.f32 %v1569, %v1665
        %v1667 = vpop.f32.mrb[0].mxu0
        %1668 = vmatprep.mubr.bf16.mxu0 0
        %1669 = vmatmul.mubr.bf16.gmra.mrb[0].mxu0 %v1309
        %v1670 = vpop.f32.mrb[0].mxu0
        %v1671 = vadd.f32 %v1574, %v1670
        %v1672 = vpop.f32.mrb[0].mxu0
        %v1673 = vpop.f32.mrb[0].mxu0
        %v1674 = vadd.f32 %v1577, %v1673
        %v1675 = vpop.f32.mrb[0].mxu0
        %1676 = vmatprep.mubr.bf16.mxu0 0
        %1677 = vmatmul.mubr.bf16.gmra.mrb[0].mxu0 %v1312
        %v1678 = vpop.f32.mrb[0].mxu0
        %v1679 = vadd.f32 %v1582, %v1678
        %v1680 = vpop.f32.mrb[0].mxu0
        %v1681 = vpop.f32.mrb[0].mxu0
        %v1682 = vadd.f32 %v1585, %v1681
        %v1683 = vpop.f32.mrb[0].mxu0
        %1684 = vmatprep.mubr.bf16.mxu0 0
        %1685 = vmatmul.mubr.bf16.gmra.mrb[0].mxu0 %v1315
        %v1686 = vpop.f32.mrb[0].mxu0
        %v1687 = vadd.f32 %v1590, %v1686
        %v1688 = vpop.f32.mrb[0].mxu0
        %v1689 = vpop.f32.mrb[0].mxu0
        %v1690 = vadd.f32 %v1593, %v1689
        %v1691 = vpop.f32.mrb[0].mxu0
        %1692 = vmatprep.mubr.bf16.mxu0 0
        %1693 = vmatmul.mubr.bf16.gmra.mrb[0].mxu0 %v1318
        %v1694 = vpop.f32.mrb[0].mxu0
        %v1695 = vadd.f32 %v1598, %v1694
        %v1696 = vpop.f32.mrb[0].mxu0
        %v1697 = vpop.f32.mrb[0].mxu0
        %v1698 = vadd.f32 %v1601, %v1697
        %v1699 = vpop.f32.mrb[0].mxu0
        %1700 = vmatprep.mubr.bf16.mxu0 0
        %1701 = vmatmul.mubr.bf16.gmra.mrb[0].mxu0 %v1321
        %v1702 = vpop.f32.mrb[0].mxu0
        %v1703 = vadd.f32 %v1606, %v1702
        %v1704 = vpop.f32.mrb[0].mxu0
        %v1705 = vpop.f32.mrb[0].mxu0
        %v1706 = vadd.f32 %v1609, %v1705
        %v1707 = vpop.f32.mrb[0].mxu0
        %1708 = vdwg.mxu0
        %v1709 = vadd.f32 %v1235, %v1647
        %v1710 = vadd.f32 %v1238, %v1650
        %v1711 = vadd.f32 %v1243, %v1655
        %v1712 = vadd.f32 %v1246, %v1658
        %v1713 = vadd.f32 %v1251, %v1663
        %v1714 = vadd.f32 %v1254, %v1666
        %v1715 = vadd.f32 %v1259, %v1671
        %v1716 = vadd.f32 %v1262, %v1674
        %v1717 = vadd.f32 %v1267, %v1679
        %v1718 = vadd.f32 %v1270, %v1682
        %v1719 = vadd.f32 %v1275, %v1687
        %v1720 = vadd.f32 %v1278, %v1690
        %v1721 = vadd.f32 %v1283, %v1695
        %v1722 = vadd.f32 %v1286, %v1698
        %v1723 = vadd.f32 %v1291, %v1703
        %v1724 = vadd.f32 %v1294, %v1706
        %v1725 = vpack.c.bf16 %v1710, %v1709
        %v1726 = vpack.c.bf16 %v1712, %v1711
        %v1727 = vpack.c.bf16 %v1714, %v1713
        %v1728 = vpack.c.bf16 %v1716, %v1715
        %v1729 = vpack.c.bf16 %v1718, %v1717
        %v1730 = vpack.c.bf16 %v1720, %v1719
        %v1731 = vpack.c.bf16 %v1722, %v1721
        %v1732 = vpack.c.bf16 %v1724, %v1723
        %v1741 = vunpack.c.l.b16 %v1725
        %v1742 = vunpack.c.h.b16 %v1725
        %v1743 = vunpack.c.l.b16 %v1726
        %v1744 = vunpack.c.h.b16 %v1726
        %v1745 = vunpack.c.l.b16 %v1727
        %v1746 = vunpack.c.h.b16 %v1727
        %v1747 = vunpack.c.l.b16 %v1728
        %v1748 = vunpack.c.h.b16 %v1728
        %v1749 = vunpack.c.l.b16 %v1729
        %v1750 = vunpack.c.h.b16 %v1729
        %v1751 = vunpack.c.l.b16 %v1730
        %v1752 = vunpack.c.h.b16 %v1730
        %v1753 = vunpack.c.l.b16 %v1731
        %v1754 = vunpack.c.h.b16 %v1731
        %v1755 = vunpack.c.l.b16 %v1732
        %v1756 = vunpack.c.h.b16 %v1732
        %v1757 = vpack.c.b16 %v1741, %v1741
        %v1758 = vpack.c.b16 %v1742, %v1742
        %v1759 = vpack.c.b16 %v1743, %v1743
        %v1760 = vpack.c.b16 %v1744, %v1744
        %v1761 = vpack.c.b16 %v1745, %v1745
        %v1762 = vpack.c.b16 %v1746, %v1746
        %v1763 = vpack.c.b16 %v1747, %v1747
        %v1764 = vpack.c.b16 %v1748, %v1748
        %v1765 = vpack.c.b16 %v1749, %v1749
        %v1766 = vpack.c.b16 %v1750, %v1750
        %v1767 = vpack.c.b16 %v1751, %v1751
        %v1768 = vpack.c.b16 %v1752, %v1752
        %v1769 = vpack.c.b16 %v1753, %v1753
        %v1770 = vpack.c.b16 %v1754, %v1754
        %v1771 = vpack.c.b16 %v1755, %v1755
        %v1772 = vpack.c.b16 %v1756, %v1756
        %1789 = vst [vmem:[%s223] sm:$0xf] %v1757
        %1790 = vst [vmem:[%s223 + $0x4] sm:$0xf] %v1758
        %1791 = vst [vmem:[%s223 + $0x8] sm:$0xf] %v1759
        %1792 = vst [vmem:[%s223 + $0xc] sm:$0xf] %v1760
        %1793 = vst [vmem:[%s223 + $0x10] sm:$0xf] %v1761
        %1794 = vst [vmem:[%s223 + $0x14] sm:$0xf] %v1762
        %1795 = vst [vmem:[%s223 + $0x18] sm:$0xf] %v1763
        %1796 = vst [vmem:[%s223 + $0x1c] sm:$0xf] %v1764
        %1797 = vst [vmem:[%s223 + $0x20] sm:$0xf] %v1765
        %1798 = vst [vmem:[%s223 + $0x24] sm:$0xf] %v1766
        %1799 = vst [vmem:[%s223 + $0x28] sm:$0xf] %v1767
        %1800 = vst [vmem:[%s223 + $0x2c] sm:$0xf] %v1768
        %1801 = vst [vmem:[%s223 + $0x30] sm:$0xf] %v1769
        %1802 = vst [vmem:[%s223 + $0x34] sm:$0xf] %v1770
        %1803 = vst [vmem:[%s223 + $0x38] sm:$0xf] %v1771
        %1804 = vst [vmem:[%s223 + $0x3c] sm:$0xf] %v1772
        %v1805 = vunpack.c.l.bf16 %v1725
        %v1806 = vunpack.c.h.bf16 %v1725
        %v1807 = vunpack.c.l.bf16 %v1726
        %v1808 = vunpack.c.h.bf16 %v1726
        %v1809 = vunpack.c.l.bf16 %v1727
        %v1810 = vunpack.c.h.bf16 %v1727
        %v1811 = vunpack.c.l.bf16 %v1728
        %v1812 = vunpack.c.h.bf16 %v1728
        %v1813 = vunpack.c.l.bf16 %v1729
        %v1814 = vunpack.c.h.bf16 %v1729
        %v1815 = vunpack.c.l.bf16 %v1730
        %v1816 = vunpack.c.h.bf16 %v1730
        %v1817 = vunpack.c.l.bf16 %v1731
        %v1818 = vunpack.c.h.bf16 %v1731
        %v1819 = vunpack.c.l.bf16 %v1732
        %v1820 = vunpack.c.h.bf16 %v1732
        %v1821 = vadd.f32 %v1805, %v1806
        %v1822 = vadd.f32 %v1821, %v1807
        %v1823 = vadd.f32 %v1822, %v1808
        %v1824 = vadd.f32 %v1823, %v1809
        %v1825 = vadd.f32 %v1824, %v1810
        %v1826 = vadd.f32 %v1825, %v1811
        %v1827 = vadd.f32 %v1826, %v1812
        %v1828 = vadd.f32 %v1827, %v1813
        %v1829 = vadd.f32 %v1828, %v1814
        %v1830 = vadd.f32 %v1829, %v1815
        %v1831 = vadd.f32 %v1830, %v1816
        %v1832 = vadd.f32 %v1831, %v1817
        %v1833 = vadd.f32 %v1832, %v1818
        %v1834 = vadd.f32 %v1833, %v1819
        %v1835 = vadd.f32 %v1834, %v1820
        %v1836 = vrot.slane %v1835, 4
        %v1837 = vadd.f32 %v1835, %v1836
        %v1838 = vrot.slane %v1837, 2
        %v1839 = vadd.f32 %v1837, %v1838
        %v1840 = vrot.slane %v1839, 1
        %v1841 = vadd.f32 %v1839, %v1840
        %v1842 = vmul.f32 %v1805, %v1805
        %v1843 = vmul.f32 %v1806, %v1806
        %v1844 = vmul.f32 %v1807, %v1807
        %v1845 = vmul.f32 %v1808, %v1808
        %v1846 = vmul.f32 %v1809, %v1809
        %v1847 = vmul.f32 %v1810, %v1810
        %v1848 = vmul.f32 %v1811, %v1811
        %v1849 = vmul.f32 %v1812, %v1812
        %v1850 = vmul.f32 %v1813, %v1813
        %v1851 = vmul.f32 %v1814, %v1814
        %v1852 = vmul.f32 %v1815, %v1815
        %v1853 = vmul.f32 %v1816, %v1816
        %v1854 = vmul.f32 %v1817, %v1817
        %v1855 = vmul.f32 %v1818, %v1818
        %v1856 = vmul.f32 %v1819, %v1819
        %v1857 = vmul.f32 %v1820, %v1820
        %v1858 = vadd.f32 %v1842, %v1843
        %v1859 = vadd.f32 %v1858, %v1844
        %v1860 = vadd.f32 %v1859, %v1845
        %v1861 = vadd.f32 %v1860, %v1846
        %v1862 = vadd.f32 %v1861, %v1847
        %v1863 = vadd.f32 %v1862, %v1848
        %v1864 = vadd.f32 %v1863, %v1849
        %v1865 = vadd.f32 %v1864, %v1850
        %v1866 = vadd.f32 %v1865, %v1851
        %v1867 = vadd.f32 %v1866, %v1852
        %v1868 = vadd.f32 %v1867, %v1853
        %v1869 = vadd.f32 %v1868, %v1854
        %v1870 = vadd.f32 %v1869, %v1855
        %v1871 = vadd.f32 %v1870, %v1856
        %v1872 = vadd.f32 %v1871, %v1857
        %v1873 = vrot.slane %v1872, 4
        %v1874 = vadd.f32 %v1872, %v1873
        %v1875 = vrot.slane %v1874, 2
        %v1876 = vadd.f32 %v1874, %v1875
        %v1877 = vrot.slane %v1876, 1
        %v1878 = vadd.f32 %v1876, %v1877
        %vm1879 = vcmask 1040384
        %v1880 = vsel %vm1879, %v1841, %v1878
        %1881 = vst [vmem:[%s230] sm:$0x3] %v1880
        %s1882 = sand.u32 %s94, 1
        %s1883 = scalar_lea.sflag [#allocation5], %s1882
        %s1884 = sand.u32 %s94, 1
        %s1885 = smul.addr %s1884, 64
        %s1886 = scalar_lea.vmem [#allocation8], %s1885
        %s1887 = sand.u32 %s122, 1
        %s1888 = scalar_lea.sflag [#allocation10], %s1887
        %s1889 = sand.u32 %s122, 1
        %s1890 = smul.addr %s1889, 2
        %s1891 = scalar_lea.vmem [#allocation9], %s1890
        // Predicated region
        $region37: #{resblock_forward.3} parent=27 // pred_check
          %p1892 = pneg %p104
        $region38: #{resblock_forward.3} parent=27 // pred_check_branch
          %1894 = sbr.rel (%p1892) target = $region40
        $region39: #{resblock_forward.3} parent=27 // pred_region
          %s1895 = smul.u32 8, %s30
          %s1897 = ssub.s32 1024, 1024
          %1898 = vsyncadd %s1883, %s1897
          %s1899 = smul.addr %s1895, 2
          %s1900 = smul.addr %s29, 32
          %s1901 = sadd.s32 %s1899, %s1900
          %s1902 = smul.addr %s1901, 64
          %s1903 = scalar_lea.hbm %s2, %s1902
          %s1904 = sshll.u32 %s1886, 4
          %s1905 = int_to_ptr.vmem [resolvable:$true] %s1904
          %1910 = dma.vmem_to_hbm [thread:$0]  %s1905, 1024, %s1903, %s1883, 64, 64, 4
        $region40: #{resblock_forward.3} parent=27 // pred_fallthru
          _
        // Predicated region
        $region41: #{resblock_forward.3} parent=27 // pred_check
          %p1911 = pneg %p132
        $region42: #{resblock_forward.3} parent=27 // pred_check_branch
          %1913 = sbr.rel (%p1911) target = $region44
        $region43: #{resblock_forward.3} parent=27 // pred_region
          %s1915 = ssub.s32 32, 32
          %1916 = vsyncadd %s1888, %s1915
          %s1917 = smul.addr %s29, 2
          %s1918 = sadd.s32 %s30, %s1917
          %s1919 = smul.addr %s1918, 32
          %s1920 = scalar_lea.hbm %s3, %s1919
          %s1922 = sshll.u32 %s1891, 4
          %s1923 = int_to_ptr.vmem [resolvable:$true] %s1922
          %1925 = dma.vmem_to_hbm [thread:$0]  %s1923, 32, %s1920, %s1888
        $region44: #{resblock_forward.3} parent=27 // pred_fallthru
          _
      $region28: #{resblock_forward.3} parent=5 // pred_fallthru
        _
      %p1926 = scmp.le.s32.totalorder 2, %s20
      // Predicated region
      $region45: #{resblock_forward.3} parent=5 // pred_check
        %p1927 = pneg %p1926
      $region46: #{resblock_forward.3} parent=5 // pred_check_branch
        %1929 = sbr.rel (%p1927) target = $region48
      $region47: #{resblock_forward.3} parent=5 // pred_region
        %s1930 = ssub.s32 %s20, 2
        // Predicated region
        $region49: #{resblock_forward.3} parent=47 // pred_check
          %p1931 = pneg %p110
        $region50: #{resblock_forward.3} parent=47 // pred_check_branch
          %1933 = sbr.rel (%p1931) target = $region52
        $region51: #{resblock_forward.3} parent=47 // pred_region
          %s1934 = sand.u32 %s95, 1
          %s1935 = scalar_lea.sflag [#allocation5], %s1934
          %s1936 = sand.u32 %s95, 1
          %s1937 = smul.addr %s1936, 64
          %s1938 = scalar_lea.vmem [#allocation8], %s1937
          %1939 = dma.done %s1935, 1024
        $region52: #{resblock_forward.3} parent=47 // pred_fallthru
          _
        // Predicated region
        $region53: #{resblock_forward.3} parent=47 // pred_check
          %p1940 = pneg %p138
        $region54: #{resblock_forward.3} parent=47 // pred_check_branch
          %1942 = sbr.rel (%p1940) target = $region56
        $region55: #{resblock_forward.3} parent=47 // pred_region
          %s1943 = sand.u32 %s123, 1
          %s1944 = scalar_lea.sflag [#allocation10], %s1943
          %s1945 = sand.u32 %s123, 1
          %s1946 = smul.addr %s1945, 2
          %s1947 = scalar_lea.vmem [#allocation9], %s1946
          %1948 = dma.done %s1944, 32
        $region56: #{resblock_forward.3} parent=47 // pred_fallthru
          _
      $region48: #{resblock_forward.3} parent=5 // pred_fallthru
        _
    $region6: #{resblock_forward.3} parent=1 // loop_footer
      %s24 = sadd.s32 1, %s20
    $region7: #{resblock_forward.3} parent=1 // loop_footer_branch
      %19 = sbr.rel target = $region3
    $region8: #{resblock_forward.3} parent=1 // loop_exit
      _
    %1949 = vsyncpa [#allocation4], 1
    %s1950 = scalar_lea.sflag [#allocation4], 1
    %1951 = vsyncpa %s1950, 1
    %1952 = vsyncpa [#allocation7], 1
    %1953 = vsyncpa [#allocation5], 1
    %s1954 = scalar_lea.sflag [#allocation5], 1
    %1955 = vsyncpa %s1954, 1
    %1956 = vsyncpa [#allocation10], 1
    %s1957 = scalar_lea.sflag [#allocation10], 1
    %1958 = vsyncpa %s1957, 1

</llo_original>
